<compile_context>
chip_gen: v5e
topology: v5e:2x2
jax: 0.10.0
libtpu: 0.0.40
codegen_flags: <defaults>
</compile_context>

<pallas_src>
import functools

import jax
import jax.numpy as jnp
from jax import lax
from jax.experimental import pallas as pl
from jax.experimental.pallas import tpu as pltpu

EPS = 1e-5
GROUPS = 32
LANE = 128
# NOTE: on v6e/v7x (2x256 MXU) rounding Cp to 256 / emitting two 128-wide output tiles
# per step would fill the systolic columns for small channel counts; real SD widths
# (640/1280) already divide 256 so we keep 128-lane rounding here.

# tap order matches kh*3+kw with (kh, kw) = (dh+1, dw+1)
_TAPS = tuple((dh, dw) for dh in (-1, 0, 1) for dw in (-1, 0, 1))


def _pick_vmem_limit():
    """~80% of physical VMEM per generation (v5e/v6e ~100 MiB, v7x ~51 MiB)."""
    try:
        return int(pltpu.get_tpu_info().vmem_capacity_bytes * 0.8)
    except Exception:
        return 32 * 1024 * 1024  # conservative fallback, fits every generation


_VMEM_LIMIT = _pick_vmem_limit()


# ------------------------------- fused kernel ------------------------------ #

def _fused_gn_silu_conv3x3_kernel(x_ref, gamma_ref, beta_ref, gmat_ref, gexp_ref,
                                  mask_ref, w_ref, b_ref, e_ref, *rest,
                                  H, W, extra_mode):
    """GroupNorm(32)+SiLU -> 3x3 conv (9 per-tap MXU matmuls) -> +bias +extra, one image.

    x_ref     : (1, HW, C)       activation (f32 or bf16)
    gamma/beta: (1, C)           GroupNorm affine
    gmat_ref  : (C, G) f32       per-channel -> group-mean matrix (bakes 1/(cg*HW))
    gexp_ref  : (G, C) f32       group -> channel expansion (0/1)
    mask_ref  : (HW, 9) f32      per-tap destination-validity mask (zero halo)
    w_ref     : (9, C, Cp) bf16  conv weight, tap-major
    b_ref     : (1, Cp) f32      conv bias
    e_ref     : extra input:
                  "row_bias": (1, 1, Cp)  f32   precomputed SiLU(time)@W+b row
                  "add"     : (1, HW, Cp) f32   identity residual (added in f32)
                  "project" : (1, HW, Ce) bf16  residual image for fused 1x1 projection
    rest      : ("project" only) ew_ref (Ce, Cp) bf16, eb_ref (1, Cp) f32 ; then o_ref
    o_ref     : (1, HW, Cp)      output
    """
    if extra_mode == "project":
        ew_ref, eb_ref, o_ref = rest
    else:
        o_ref, = rest
    HW = H * W

    # ---- GroupNorm + SiLU: stats + elementwise math kept in f32 (VPU/EUP path) ----
    xf = x_ref[0].astype(jnp.float32)                                   # (HW, C)
    s = jnp.sum(xf, axis=0, keepdims=True)                              # (1, C)
    sq = jnp.sum(xf * xf, axis=0, keepdims=True)
    gmean = jnp.dot(s, gmat_ref[...], preferred_element_type=jnp.float32)   # (1, G)
    gmsq = jnp.dot(sq, gmat_ref[...], preferred_element_type=jnp.float32)
    mean = jnp.dot(gmean, gexp_ref[...], preferred_element_type=jnp.float32)  # (1, C)
    msq = jnp.dot(gmsq, gexp_ref[...], preferred_element_type=jnp.float32)
    rstd = lax.rsqrt(msq - mean * mean + EPS)
    scale = rstd * gamma_ref[...]                                       # fold affine
    offset = beta_ref[...] - mean * scale
    y = xf * scale + offset
    y = y * jax.nn.sigmoid(y)                                           # SiLU, f32

    # ---- 3x3 conv: 9 accumulating per-tap matmuls (roll + mask, no im2col scratch) --
    # Output row p takes input row p + dh*W + dw when inside the image; pltpu.roll
    # wraps out-of-range rows but the per-tap mask zeroes exactly those destinations.
    acc = None
    for t, (dh, dw) in enumerate(_TAPS):
        sh = dh * W + dw
        if sh == 0:
            yt = y                                                      # center tap
        else:
            yt = pltpu.roll(y, shift=(-sh) % HW, axis=0) * mask_ref[:, t:t + 1]
        contrib = jnp.dot(yt.astype(jnp.bfloat16), w_ref[t],
                          preferred_element_type=jnp.float32)           # (HW, Cp)
        acc = contrib if acc is None else acc + contrib

    # ---- extra term ----
    if extra_mode == "project":          # residual 1x1 projection (Cin != Cout)
        extra = jnp.dot(e_ref[0], ew_ref[...],
                        preferred_element_type=jnp.float32) + eb_ref[...]
    else:                                # "add": f32 residual; "row_bias": time row
        extra = e_ref[0].astype(jnp.float32)

    o_ref[0] = (acc + b_ref[...] + extra).astype(o_ref.dtype)


# ---------------------------- pallas_call wrapper --------------------------- #

def _fused_stage(x, gamma, beta, gmat, gexp, masks, w, b, extra, *,
                 extra_mode, H, W, out_dtype, ew=None, eb=None):
    B, HW, C = x.shape
    Cp = w.shape[2]
    G = gmat.shape[1]

    def _const(shape):
        # grid-invariant operand: constant index_map + single buffering
        nd = len(shape)
        return pl.BlockSpec(shape, lambda i, _n=nd: (0,) * _n,
                            pipeline_mode=pl.Buffered(1))

    in_specs = [
        pl.BlockSpec((1, HW, C), lambda i: (i, 0, 0)),        # activation (per image)
        _const((1, C)),                                       # gamma
        _const((1, C)),                                       # beta
        _const((C, G)),                                       # group-average matrix
        _const((G, C)),                                       # group->channel expand
        _const((HW, 9)),                                      # tap masks
        _const((9, C, Cp)),                                   # conv weight (bf16)
        _const((1, Cp)),                                      # conv bias
        pl.BlockSpec((1,) + extra.shape[1:], lambda i: (i, 0, 0)),  # extra (per image)
    ]
    args = [x, gamma, beta, gmat, gexp, masks, w, b, extra]
    if extra_mode == "project":
        in_specs += [_const(ew.shape), _const(eb.shape)]
        args += [ew, eb]

    kernel = functools.partial(_fused_gn_silu_conv3x3_kernel,
                               H=H, W=W, extra_mode=extra_mode)
    return pl.pallas_call(
        kernel,
        out_shape=jax.ShapeDtypeStruct((B, HW, Cp), out_dtype),
        grid=(B,),
        in_specs=in_specs,
        out_specs=pl.BlockSpec((1, HW, Cp), lambda i: (i, 0, 0)),
        compiler_params=pltpu.CompilerParams(
            dimension_semantics=("parallel",),
            vmem_limit_bytes=_VMEM_LIMIT),
    )(*args)


# ------------------------------- full forward ------------------------------- #

def unet_residual_block_nhwc(x_nhwc, time, p):
    """Forward of UNET_ResidualBlock on channels-last input. x_nhwc: (B, H, W, Cin)."""
    B, H, W, Cin = x_nhwc.shape
    Cout, Cp = p["cout"], p["cp"]
    HW = H * W
    x_flat = x_nhwc.reshape(B, HW, Cin)

    # Time MLP hoisted to XLA: one (B, n_time) @ (n_time, Cp) for the whole batch.
    t = time.astype(jnp.float32)
    t_bias = (t * jax.nn.sigmoid(t)) @ p["lin_w"] + p["lin_b"]          # (B, Cp)
    t_bias = t_bias[:, None, :]                                         # (B, 1, Cp)

    # Stage 1: GN1+SiLU -> conv1 -> +bias + time row   (bf16 inter-stage activation)
    h = _fused_stage(x_flat, p["gn1_gamma"], p["gn1_beta"], p["gn1_gmat"], p["gn1_gexp"],
                     p["masks"], p["conv1_w"], p["conv1_b"], t_bias,
                     extra_mode="row_bias", H=H, W=W, out_dtype=jnp.bfloat16)

    # Stage 2: GN2+SiLU -> conv2 -> +bias + residual
    if p["identity_residual"]:
        res = _pad_last(x_flat, Cp)           # f32 skip added directly (no bf16 rounding)
        mode, ew, eb = "add", None, None
    else:
        res = x_flat.astype(jnp.bfloat16)     # feeds the fused 1x1 projection matmul
        mode, ew, eb = "project", p["res_w"], p["res_b"]

    out = _fused_stage(h, p["gn2_gamma"], p["gn2_beta"], p["gn2_gmat"], p["gn2_gexp"],
                       p["masks"], p["conv2_w"], p["conv2_b"], res,
                       extra_mode=mode, ew=ew, eb=eb,
                       H=H, W=W, out_dtype=jnp.float32)

    return out[:, :, :Cout].reshape(B, H, W, Cout)                      # drop lane padding


def unet_residual_block(x_nchw, time, p):
    """NCHW wrapper matching the PyTorch module. NHWC callers should use the
    *_nhwc entry point directly and skip these two transposes."""
    x_nhwc = jnp.transpose(x_nchw, (0, 2, 3, 1))
    out = unet_residual_block_nhwc(x_nhwc, time, p)
    return jnp.transpose(out, (0, 3, 1, 2))


# -------------------------------- parameters -------------------------------- #

def make_params(key, Cin, Cout, n_time):
    ks = jax.random.split(key, 12)

    def nrm(k, shape, scale=0.05):
        return scale * jax.random.normal(k, shape, jnp.float32)

    return dict(
        gn1_gamma=1.0 + nrm(ks[0], (Cin,)),
        gn1_beta=nrm(ks[1], (Cin,)),
        conv1_w9=nrm(ks[2], (9, Cin, Cout)),       # (kh*3+kw, Cin, Cout)
        conv1_b=nrm(ks[3], (Cout,)),
        lin_w=nrm(ks[4], (n_time, Cout)),
        lin_b=nrm(ks[5], (Cout,)),
        gn2_gamma=1.0 + nrm(ks[6], (Cout,)),
        gn2_beta=nrm(ks[7], (Cout,)),
        conv2_w9=nrm(ks[8], (9, Cout, Cout)),
        conv2_b=nrm(ks[9], (Cout,)),
        res_w=nrm(ks[10], (Cin, Cout)),
        res_b=nrm(ks[11], (Cout,)),
    )


def _group_matrices(C, HW):
    """(C, G) averaging matrix (bakes 1/(cg*HW)) and (G, C) 0/1 expansion matrix."""
    cg = C // GROUPS
    gid = jnp.arange(C) // cg
    onehot = (gid[:, None] == jnp.arange(GROUPS)[None, :]).astype(jnp.float32)  # (C, G)
    return onehot / float(cg * HW), onehot.T


def _tap_masks(H, W):
    i = jnp.arange(H * W) // W
    j = jnp.arange(H * W) % W
    cols = []
    for dh, dw in _TAPS:
        cols.append((i + dh >= 0) & (i + dh < H) & (j + dw >= 0) & (j + dw < W))
    return jnp.stack(cols, axis=1).astype(jnp.float32)                  # (HW, 9)


def _pad_last(a, target):
    pad = target - a.shape[-1]
    return a if pad == 0 else jnp.pad(a, [(0, 0)] * (a.ndim - 1) + [(0, pad)])


def pack_params(p, Cin, Cout, H, W):
    """Pre-cast / pre-pad parameters into the layouts the fused kernels expect."""
    assert Cin % GROUPS == 0 and Cout % GROUPS == 0
    HW = H * W
    Cp = -(-Cout // LANE) * LANE                 # lane-pad Cout so stores are >=128 wide
    pc = Cp - Cout

    gmat1, gexp1 = _group_matrices(Cin, HW)
    gmat2, gexp2 = _group_matrices(Cout, HW)
    gmat2 = jnp.pad(gmat2, ((0, pc), (0, 0)))    # padded-channel rows contribute nothing
    gexp2 = jnp.pad(gexp2, ((0, 0), (0, pc)))    # padded channels get zero mean/var

    return dict(
        cout=Cout, cp=Cp,
        identity_residual=(Cin == Cout),
        masks=_tap_masks(H, W),
        gn1_gamma=p["gn1_gamma"][None, :],
        gn1_beta=p["gn1_beta"][None, :],
        gn1_gmat=gmat1, gn1_gexp=gexp1,
        conv1_w=_pad_last(p["conv1_w9"], Cp).astype(jnp.bfloat16),      # (9, Cin, Cp)
        conv1_b=_pad_last(p["conv1_b"][None, :], Cp),
        lin_w=_pad_last(p["lin_w"], Cp),                                # stays f32 (XLA)
        lin_b=_pad_last(p["lin_b"], Cp),
        gn2_gamma=_pad_last(p["gn2_gamma"][None, :], Cp),
        gn2_beta=_pad_last(p["gn2_beta"][None, :], Cp),
        gn2_gmat=gmat2, gn2_gexp=gexp2,
        conv2_w=jnp.pad(p["conv2_w9"],
                        ((0, 0), (0, pc), (0, pc))).astype(jnp.bfloat16),  # (9, Cp, Cp)
        conv2_b=_pad_last(p["conv2_b"][None, :], Cp),
        res_w=_pad_last(p["res_w"], Cp).astype(jnp.bfloat16),           # (Cin, Cp)
        res_b=_pad_last(p["res_b"][None, :], Cp),
    )


# ---------------------------- pure-JAX reference ----------------------------- #

def _ref_group_norm(x, gamma, beta):
    B, C, H, W = x.shape
    xg = x.reshape(B, GROUPS, -1)
    mean = xg.mean(-1, keepdims=True)
    var = ((xg - mean) ** 2).mean(-1, keepdims=True)
    xn = ((xg - mean) / jnp.sqrt(var + EPS)).reshape(B, C, H, W)
    return xn * gamma.reshape(1, C, 1, 1) + beta.reshape(1, C, 1, 1)


def _ref_silu(x):
    return x * jax.nn.sigmoid(x)


def _ref_conv3x3(x, w9, b):
    Cin, Cout = w9.shape[1], w9.shape[2]
    w = w9.reshape(3, 3, Cin, Cout).transpose(3, 2, 0, 1)               # OIHW
    y = lax.conv_general_dilated(x, w, (1, 1), "SAME",
                                 dimension_numbers=("NCHW", "OIHW", "NCHW"))
    return y + b.reshape(1, Cout, 1, 1)


def ref_forward(x, time, p):
    Cin, Cout = x.shape[1], p["conv1_w9"].shape[2]
    h = _ref_silu(_ref_group_norm(x, p["gn1_gamma"], p["gn1_beta"]))
    h = _ref_conv3x3(h, p["conv1_w9"], p["conv1_b"])
    t = _ref_silu(time) @ p["lin_w"] + p["lin_b"]
    h = h + t[:, :, None, None]
    h = _ref_silu(_ref_group_norm(h, p["gn2_gamma"], p["gn2_beta"]))
    h = _ref_conv3x3(h, p["conv2_w9"], p["conv2_b"])
    if Cin == Cout:
        res = x
    else:
        res = jnp.einsum("bchw,co->bohw", x, p["res_w"]) + p["res_b"].reshape(1, Cout, 1, 1)
    return h + res


# ----------------------------------- main ------------------------------------ #

if __name__ == "__main__":
    B, H, W, n_time = 2, 16, 16, 128
    key = jax.random.PRNGKey(0)

    # (Cin != Cout) exercises the fused 1x1 residual projection;
    # (Cin == Cout) exercises the direct f32 identity-residual add.
    for Cin, Cout in ((32, 64), (64, 64)):
        key, kx, kt, kp = jax.random.split(key, 4)
        x = jax.random.normal(kx, (B, Cin, H, W), jnp.float32)
        time = jax.random.normal(kt, (B, n_time), jnp.float32)
        raw = make_params(kp, Cin, Cout, n_time)
        params = pack_params(raw, Cin, Cout, H, W)

        out = jax.block_until_ready(unet_residual_block(x, time, params))
        assert out.shape == (B, Cout, H, W)

        ref = ref_forward(x, time, raw)
        # bf16 MXU operands + bf16 inter-stage activation vs the pure-f32 reference.
        if not bool(jnp.allclose(out, ref, atol=3e-2, rtol=3e-2)):
            raise AssertionError(
                f"Cin={Cin}, Cout={Cout}: mismatch vs f32 reference, "
                f"max abs diff = {float(jnp.max(jnp.abs(out - ref)))}")

    print("KERNEL_OK")
</pallas_src>

<mosaic_0001>
module attributes {stable_mosaic.version = 11 : i64} {
  func.func @_fused_gn_silu_conv3x3_kernel(%arg0: i32, %arg1: memref<1x256x32xf32, #tpu.memory_space<vmem>>, %arg2: memref<1x32xf32, #tpu.memory_space<vmem>>, %arg3: memref<1x32xf32, #tpu.memory_space<vmem>>, %arg4: memref<32x32xf32, #tpu.memory_space<vmem>>, %arg5: memref<32x32xf32, #tpu.memory_space<vmem>>, %arg6: memref<256x9xf32, #tpu.memory_space<vmem>>, %arg7: memref<9x32x128xbf16, #tpu.memory_space<vmem>>, %arg8: memref<1x128xf32, #tpu.memory_space<vmem>>, %arg9: memref<1x1x128xf32, #tpu.memory_space<vmem>>, %arg10: memref<1x256x128xbf16, #tpu.memory_space<vmem>>) attributes {dimension_semantics = [#tpu.dimension_semantics<parallel>], iteration_bounds = array<i64: 2>, scalar_prefetch = 0 : i64, scratch_operands = 0 : i64, tpu.core_type = #tpu.core_type<tc>, window_params = [{transform_indices = @transform_0, window_bounds = array<i64: 1, 256, 32>}, {pipeline_mode = #tpu.pipeline_mode<synchronous>, transform_indices = @transform_1, window_bounds = array<i64: 1, 32>}, {pipeline_mode = #tpu.pipeline_mode<synchronous>, transform_indices = @transform_2, window_bounds = array<i64: 1, 32>}, {pipeline_mode = #tpu.pipeline_mode<synchronous>, transform_indices = @transform_3, window_bounds = array<i64: 32, 32>}, {pipeline_mode = #tpu.pipeline_mode<synchronous>, transform_indices = @transform_4, window_bounds = array<i64: 32, 32>}, {pipeline_mode = #tpu.pipeline_mode<synchronous>, transform_indices = @transform_5, window_bounds = array<i64: 256, 9>}, {pipeline_mode = #tpu.pipeline_mode<synchronous>, transform_indices = @transform_6, window_bounds = array<i64: 9, 32, 128>}, {pipeline_mode = #tpu.pipeline_mode<synchronous>, transform_indices = @transform_7, window_bounds = array<i64: 1, 128>}, {transform_indices = @transform_8, window_bounds = array<i64: 1, 1, 128>}, {transform_indices = @transform_9, window_bounds = array<i64: 1, 256, 128>}]} {
    %c0 = arith.constant 0 : index
    %c0_0 = arith.constant 0 : index
    %c0_1 = arith.constant 0 : index
    %0 = vector.load %arg1[%c0, %c0_0, %c0_1] : memref<1x256x32xf32, #tpu.memory_space<vmem>>, vector<1x256x32xf32>
    %1 = vector.shape_cast %0 : vector<1x256x32xf32> to vector<256x32xf32>
    %cst = arith.constant dense<0.000000e+00> : vector<32xf32>
    %2 = vector.multi_reduction <add>, %1, %cst [0] : vector<256x32xf32> to vector<32xf32>
    %3 = vector.shape_cast %2 : vector<32xf32> to vector<1x32xf32>
    %4 = arith.mulf %1, %1 : vector<256x32xf32>
    %cst_2 = arith.constant dense<0.000000e+00> : vector<32xf32>
    %5 = vector.multi_reduction <add>, %4, %cst_2 [0] : vector<256x32xf32> to vector<32xf32>
    %6 = vector.shape_cast %5 : vector<32xf32> to vector<1x32xf32>
    %c0_3 = arith.constant 0 : index
    %c0_4 = arith.constant 0 : index
    %7 = vector.load %arg4[%c0_3, %c0_4] : memref<32x32xf32, #tpu.memory_space<vmem>>, vector<32x32xf32>
    %cst_5 = arith.constant dense<0.000000e+00> : vector<1x32xf32>
    %8 = tpu.matmul %3, %7, %cst_5 {dimension_numbers = #tpu.dot_dimension_numbers<[1], [0], [0], [1], [0, 0, 1, 1], [], []>} : vector<1x32xf32>, vector<32x32xf32>, vector<1x32xf32> -> vector<1x32xf32>
    %c0_6 = arith.constant 0 : index
    %c0_7 = arith.constant 0 : index
    %9 = vector.load %arg4[%c0_6, %c0_7] : memref<32x32xf32, #tpu.memory_space<vmem>>, vector<32x32xf32>
    %cst_8 = arith.constant dense<0.000000e+00> : vector<1x32xf32>
    %10 = tpu.matmul %6, %9, %cst_8 {dimension_numbers = #tpu.dot_dimension_numbers<[1], [0], [0], [1], [0, 0, 1, 1], [], []>} : vector<1x32xf32>, vector<32x32xf32>, vector<1x32xf32> -> vector<1x32xf32>
    %c0_9 = arith.constant 0 : index
    %c0_10 = arith.constant 0 : index
    %11 = vector.load %arg5[%c0_9, %c0_10] : memref<32x32xf32, #tpu.memory_space<vmem>>, vector<32x32xf32>
    %cst_11 = arith.constant dense<0.000000e+00> : vector<1x32xf32>
    %12 = tpu.matmul %8, %11, %cst_11 {dimension_numbers = #tpu.dot_dimension_numbers<[1], [0], [0], [1], [0, 0, 1, 1], [], []>} : vector<1x32xf32>, vector<32x32xf32>, vector<1x32xf32> -> vector<1x32xf32>
    %c0_12 = arith.constant 0 : index
    %c0_13 = arith.constant 0 : index
    %13 = vector.load %arg5[%c0_12, %c0_13] : memref<32x32xf32, #tpu.memory_space<vmem>>, vector<32x32xf32>
    %cst_14 = arith.constant dense<0.000000e+00> : vector<1x32xf32>
    %14 = tpu.matmul %10, %13, %cst_14 {dimension_numbers = #tpu.dot_dimension_numbers<[1], [0], [0], [1], [0, 0, 1, 1], [], []>} : vector<1x32xf32>, vector<32x32xf32>, vector<1x32xf32> -> vector<1x32xf32>
    %15 = arith.mulf %12, %12 : vector<1x32xf32>
    %16 = arith.subf %14, %15 : vector<1x32xf32>
    %cst_15 = arith.constant 9.99999974E-6 : f32
    %17 = vector.broadcast %cst_15 : f32 to vector<1x32xf32>
    %18 = arith.addf %16, %17 : vector<1x32xf32>
    %19 = math.rsqrt %18 : vector<1x32xf32>
    %c0_16 = arith.constant 0 : index
    %c0_17 = arith.constant 0 : index
    %20 = vector.load %arg2[%c0_16, %c0_17] : memref<1x32xf32, #tpu.memory_space<vmem>>, vector<1x32xf32>
    %21 = arith.mulf %19, %20 : vector<1x32xf32>
    %c0_18 = arith.constant 0 : index
    %c0_19 = arith.constant 0 : index
    %22 = vector.load %arg3[%c0_18, %c0_19] : memref<1x32xf32, #tpu.memory_space<vmem>>, vector<1x32xf32>
    %23 = arith.mulf %12, %21 : vector<1x32xf32>
    %24 = arith.subf %22, %23 : vector<1x32xf32>
    %25 = vector.broadcast %21 : vector<1x32xf32> to vector<256x32xf32>
    %26 = arith.mulf %1, %25 : vector<256x32xf32>
    %27 = vector.broadcast %24 : vector<1x32xf32> to vector<256x32xf32>
    %28 = arith.addf %26, %27 : vector<256x32xf32>
    %29 = arith.negf %28 : vector<256x32xf32>
    %30 = math.exp %29 : vector<256x32xf32>
    %cst_20 = arith.constant 1.000000e+00 : f32
    %31 = vector.broadcast %cst_20 : f32 to vector<256x32xf32>
    %32 = arith.addf %31, %30 : vector<256x32xf32>
    %33 = arith.divf %31, %32 : vector<256x32xf32>
    %34 = arith.mulf %28, %33 : vector<256x32xf32>
    %c17_i32 = arith.constant 17 : i32
    %35 = tpu.dynamic_rotate %34 by %c17_i32 dim 0 : vector<256x32xf32>, i32 -> vector<256x32xf32>
    %c0_21 = arith.constant 0 : index
    %c0_22 = arith.constant 0 : index
    %36 = vector.load %arg6[%c0_21, %c0_22] : memref<256x9xf32, #tpu.memory_space<vmem>>, vector<256x1xf32>
    %37 = vector.broadcast %36 : vector<256x1xf32> to vector<256x32xf32>
    %38 = arith.mulf %35, %37 : vector<256x32xf32>
    %39 = arith.truncf %38 : vector<256x32xf32> to vector<256x32xbf16>
    %c0_23 = arith.constant 0 : index
    %c0_24 = arith.constant 0 : index
    %c0_25 = arith.constant 0 : index
    %40 = vector.load %arg7[%c0_23, %c0_24, %c0_25] : memref<9x32x128xbf16, #tpu.memory_space<vmem>>, vector<1x32x128xbf16>
    %41 = vector.shape_cast %40 : vector<1x32x128xbf16> to vector<32x128xbf16>
    %cst_26 = arith.constant dense<0.000000e+00> : vector<256x128xf32>
    %42 = tpu.matmul %39, %41, %cst_26 {dimension_numbers = #tpu.dot_dimension_numbers<[1], [0], [0], [1], [0, 0, 1, 1], [], []>} : vector<256x32xbf16>, vector<32x128xbf16>, vector<256x128xf32> -> vector<256x128xf32>
    %c16_i32 = arith.constant 16 : i32
    %43 = tpu.dynamic_rotate %34 by %c16_i32 dim 0 : vector<256x32xf32>, i32 -> vector<256x32xf32>
    %c0_27 = arith.constant 0 : index
    %c1 = arith.constant 1 : index
    %44 = vector.load %arg6[%c0_27, %c1] : memref<256x9xf32, #tpu.memory_space<vmem>>, vector<256x1xf32>
    %45 = vector.broadcast %44 : vector<256x1xf32> to vector<256x32xf32>
    %46 = arith.mulf %43, %45 : vector<256x32xf32>
    %47 = arith.truncf %46 : vector<256x32xf32> to vector<256x32xbf16>
    %c1_28 = arith.constant 1 : index
    %c0_29 = arith.constant 0 : index
    %c0_30 = arith.constant 0 : index
    %48 = vector.load %arg7[%c1_28, %c0_29, %c0_30] : memref<9x32x128xbf16, #tpu.memory_space<vmem>>, vector<1x32x128xbf16>
    %49 = vector.shape_cast %48 : vector<1x32x128xbf16> to vector<32x128xbf16>
    %cst_31 = arith.constant dense<0.000000e+00> : vector<256x128xf32>
    %50 = tpu.matmul %47, %49, %cst_31 {dimension_numbers = #tpu.dot_dimension_numbers<[1], [0], [0], [1], [0, 0, 1, 1], [], []>} : vector<256x32xbf16>, vector<32x128xbf16>, vector<256x128xf32> -> vector<256x128xf32>
    %51 = arith.addf %42, %50 : vector<256x128xf32>
    %c15_i32 = arith.constant 15 : i32
    %52 = tpu.dynamic_rotate %34 by %c15_i32 dim 0 : vector<256x32xf32>, i32 -> vector<256x32xf32>
    %c0_32 = arith.constant 0 : index
    %c2 = arith.constant 2 : index
    %53 = vector.load %arg6[%c0_32, %c2] : memref<256x9xf32, #tpu.memory_space<vmem>>, vector<256x1xf32>
    %54 = vector.broadcast %53 : vector<256x1xf32> to vector<256x32xf32>
    %55 = arith.mulf %52, %54 : vector<256x32xf32>
    %56 = arith.truncf %55 : vector<256x32xf32> to vector<256x32xbf16>
    %c2_33 = arith.constant 2 : index
    %c0_34 = arith.constant 0 : index
    %c0_35 = arith.constant 0 : index
    %57 = vector.load %arg7[%c2_33, %c0_34, %c0_35] : memref<9x32x128xbf16, #tpu.memory_space<vmem>>, vector<1x32x128xbf16>
    %58 = vector.shape_cast %57 : vector<1x32x128xbf16> to vector<32x128xbf16>
    %cst_36 = arith.constant dense<0.000000e+00> : vector<256x128xf32>
    %59 = tpu.matmul %56, %58, %cst_36 {dimension_numbers = #tpu.dot_dimension_numbers<[1], [0], [0], [1], [0, 0, 1, 1], [], []>} : vector<256x32xbf16>, vector<32x128xbf16>, vector<256x128xf32> -> vector<256x128xf32>
    %60 = arith.addf %51, %59 : vector<256x128xf32>
    %c1_i32 = arith.constant 1 : i32
    %61 = tpu.dynamic_rotate %34 by %c1_i32 dim 0 : vector<256x32xf32>, i32 -> vector<256x32xf32>
    %c0_37 = arith.constant 0 : index
    %c3 = arith.constant 3 : index
    %62 = vector.load %arg6[%c0_37, %c3] : memref<256x9xf32, #tpu.memory_space<vmem>>, vector<256x1xf32>
    %63 = vector.broadcast %62 : vector<256x1xf32> to vector<256x32xf32>
    %64 = arith.mulf %61, %63 : vector<256x32xf32>
    %65 = arith.truncf %64 : vector<256x32xf32> to vector<256x32xbf16>
    %c3_38 = arith.constant 3 : index
    %c0_39 = arith.constant 0 : index
    %c0_40 = arith.constant 0 : index
    %66 = vector.load %arg7[%c3_38, %c0_39, %c0_40] : memref<9x32x128xbf16, #tpu.memory_space<vmem>>, vector<1x32x128xbf16>
    %67 = vector.shape_cast %66 : vector<1x32x128xbf16> to vector<32x128xbf16>
    %cst_41 = arith.constant dense<0.000000e+00> : vector<256x128xf32>
    %68 = tpu.matmul %65, %67, %cst_41 {dimension_numbers = #tpu.dot_dimension_numbers<[1], [0], [0], [1], [0, 0, 1, 1], [], []>} : vector<256x32xbf16>, vector<32x128xbf16>, vector<256x128xf32> -> vector<256x128xf32>
    %69 = arith.addf %60, %68 : vector<256x128xf32>
    %70 = arith.truncf %34 : vector<256x32xf32> to vector<256x32xbf16>
    %c4 = arith.constant 4 : index
    %c0_42 = arith.constant 0 : index
    %c0_43 = arith.constant 0 : index
    %71 = vector.load %arg7[%c4, %c0_42, %c0_43] : memref<9x32x128xbf16, #tpu.memory_space<vmem>>, vector<1x32x128xbf16>
    %72 = vector.shape_cast %71 : vector<1x32x128xbf16> to vector<32x128xbf16>
    %cst_44 = arith.constant dense<0.000000e+00> : vector<256x128xf32>
    %73 = tpu.matmul %70, %72, %cst_44 {dimension_numbers = #tpu.dot_dimension_numbers<[1], [0], [0], [1], [0, 0, 1, 1], [], []>} : vector<256x32xbf16>, vector<32x128xbf16>, vector<256x128xf32> -> vector<256x128xf32>
    %74 = arith.addf %69, %73 : vector<256x128xf32>
    %c255_i32 = arith.constant 255 : i32
    %75 = tpu.dynamic_rotate %34 by %c255_i32 dim 0 : vector<256x32xf32>, i32 -> vector<256x32xf32>
    %c0_45 = arith.constant 0 : index
    %c5 = arith.constant 5 : index
    %76 = vector.load %arg6[%c0_45, %c5] : memref<256x9xf32, #tpu.memory_space<vmem>>, vector<256x1xf32>
    %77 = vector.broadcast %76 : vector<256x1xf32> to vector<256x32xf32>
    %78 = arith.mulf %75, %77 : vector<256x32xf32>
    %79 = arith.truncf %78 : vector<256x32xf32> to vector<256x32xbf16>
    %c5_46 = arith.constant 5 : index
    %c0_47 = arith.constant 0 : index
    %c0_48 = arith.constant 0 : index
    %80 = vector.load %arg7[%c5_46, %c0_47, %c0_48] : memref<9x32x128xbf16, #tpu.memory_space<vmem>>, vector<1x32x128xbf16>
    %81 = vector.shape_cast %80 : vector<1x32x128xbf16> to vector<32x128xbf16>
    %cst_49 = arith.constant dense<0.000000e+00> : vector<256x128xf32>
    %82 = tpu.matmul %79, %81, %cst_49 {dimension_numbers = #tpu.dot_dimension_numbers<[1], [0], [0], [1], [0, 0, 1, 1], [], []>} : vector<256x32xbf16>, vector<32x128xbf16>, vector<256x128xf32> -> vector<256x128xf32>
    %83 = arith.addf %74, %82 : vector<256x128xf32>
    %c241_i32 = arith.constant 241 : i32
    %84 = tpu.dynamic_rotate %34 by %c241_i32 dim 0 : vector<256x32xf32>, i32 -> vector<256x32xf32>
    %c0_50 = arith.constant 0 : index
    %c6 = arith.constant 6 : index
    %85 = vector.load %arg6[%c0_50, %c6] : memref<256x9xf32, #tpu.memory_space<vmem>>, vector<256x1xf32>
    %86 = vector.broadcast %85 : vector<256x1xf32> to vector<256x32xf32>
    %87 = arith.mulf %84, %86 : vector<256x32xf32>
    %88 = arith.truncf %87 : vector<256x32xf32> to vector<256x32xbf16>
    %c6_51 = arith.constant 6 : index
    %c0_52 = arith.constant 0 : index
    %c0_53 = arith.constant 0 : index
    %89 = vector.load %arg7[%c6_51, %c0_52, %c0_53] : memref<9x32x128xbf16, #tpu.memory_space<vmem>>, vector<1x32x128xbf16>
    %90 = vector.shape_cast %89 : vector<1x32x128xbf16> to vector<32x128xbf16>
    %cst_54 = arith.constant dense<0.000000e+00> : vector<256x128xf32>
    %91 = tpu.matmul %88, %90, %cst_54 {dimension_numbers = #tpu.dot_dimension_numbers<[1], [0], [0], [1], [0, 0, 1, 1], [], []>} : vector<256x32xbf16>, vector<32x128xbf16>, vector<256x128xf32> -> vector<256x128xf32>
    %92 = arith.addf %83, %91 : vector<256x128xf32>
    %c240_i32 = arith.constant 240 : i32
    %93 = tpu.dynamic_rotate %34 by %c240_i32 dim 0 : vector<256x32xf32>, i32 -> vector<256x32xf32>
    %c0_55 = arith.constant 0 : index
    %c7 = arith.constant 7 : index
    %94 = vector.load %arg6[%c0_55, %c7] : memref<256x9xf32, #tpu.memory_space<vmem>>, vector<256x1xf32>
    %95 = vector.broadcast %94 : vector<256x1xf32> to vector<256x32xf32>
    %96 = arith.mulf %93, %95 : vector<256x32xf32>
    %97 = arith.truncf %96 : vector<256x32xf32> to vector<256x32xbf16>
    %c7_56 = arith.constant 7 : index
    %c0_57 = arith.constant 0 : index
    %c0_58 = arith.constant 0 : index
    %98 = vector.load %arg7[%c7_56, %c0_57, %c0_58] : memref<9x32x128xbf16, #tpu.memory_space<vmem>>, vector<1x32x128xbf16>
    %99 = vector.shape_cast %98 : vector<1x32x128xbf16> to vector<32x128xbf16>
    %cst_59 = arith.constant dense<0.000000e+00> : vector<256x128xf32>
    %100 = tpu.matmul %97, %99, %cst_59 {dimension_numbers = #tpu.dot_dimension_numbers<[1], [0], [0], [1], [0, 0, 1, 1], [], []>} : vector<256x32xbf16>, vector<32x128xbf16>, vector<256x128xf32> -> vector<256x128xf32>
    %101 = arith.addf %92, %100 : vector<256x128xf32>
    %c239_i32 = arith.constant 239 : i32
    %102 = tpu.dynamic_rotate %34 by %c239_i32 dim 0 : vector<256x32xf32>, i32 -> vector<256x32xf32>
    %c0_60 = arith.constant 0 : index
    %c8 = arith.constant 8 : index
    %103 = vector.load %arg6[%c0_60, %c8] : memref<256x9xf32, #tpu.memory_space<vmem>>, vector<256x1xf32>
    %104 = vector.broadcast %103 : vector<256x1xf32> to vector<256x32xf32>
    %105 = arith.mulf %102, %104 : vector<256x32xf32>
    %106 = arith.truncf %105 : vector<256x32xf32> to vector<256x32xbf16>
    %c8_61 = arith.constant 8 : index
    %c0_62 = arith.constant 0 : index
    %c0_63 = arith.constant 0 : index
    %107 = vector.load %arg7[%c8_61, %c0_62, %c0_63] : memref<9x32x128xbf16, #tpu.memory_space<vmem>>, vector<1x32x128xbf16>
    %108 = vector.shape_cast %107 : vector<1x32x128xbf16> to vector<32x128xbf16>
    %cst_64 = arith.constant dense<0.000000e+00> : vector<256x128xf32>
    %109 = tpu.matmul %106, %108, %cst_64 {dimension_numbers = #tpu.dot_dimension_numbers<[1], [0], [0], [1], [0, 0, 1, 1], [], []>} : vector<256x32xbf16>, vector<32x128xbf16>, vector<256x128xf32> -> vector<256x128xf32>
    %110 = arith.addf %101, %109 : vector<256x128xf32>
    %c0_65 = arith.constant 0 : index
    %c0_66 = arith.constant 0 : index
    %c0_67 = arith.constant 0 : index
    %111 = vector.load %arg9[%c0_65, %c0_66, %c0_67] : memref<1x1x128xf32, #tpu.memory_space<vmem>>, vector<1x1x128xf32>
    %112 = vector.shape_cast %111 : vector<1x1x128xf32> to vector<1x128xf32>
    %c0_68 = arith.constant 0 : index
    %c0_69 = arith.constant 0 : index
    %113 = vector.load %arg8[%c0_68, %c0_69] : memref<1x128xf32, #tpu.memory_space<vmem>>, vector<1x128xf32>
    %114 = vector.broadcast %113 : vector<1x128xf32> to vector<256x128xf32>
    %115 = arith.addf %110, %114 : vector<256x128xf32>
    %116 = vector.broadcast %112 : vector<1x128xf32> to vector<256x128xf32>
    %117 = arith.addf %115, %116 : vector<256x128xf32>
    %118 = arith.truncf %117 : vector<256x128xf32> to vector<256x128xbf16>
    %c0_70 = arith.constant 0 : index
    %c0_71 = arith.constant 0 : index
    %c0_72 = arith.constant 0 : index
    %119 = vector.load %arg10[%c0_70, %c0_71, %c0_72] : memref<1x256x128xbf16, #tpu.memory_space<vmem>>, vector<1x256x128xbf16>
    %120 = vector.shape_cast %119 : vector<1x256x128xbf16> to vector<256x128xbf16>
    %121 = vector.shape_cast %118 : vector<256x128xbf16> to vector<1x256x128xbf16>
    tpu.vector_store %arg10[%c0_70, %c0_71, %c0_72], %121 {strides = array<i32>} : memref<1x256x128xbf16, #tpu.memory_space<vmem>>, vector<1x256x128xbf16>,
    return
  }
  func.func @transform_0(%arg0: i32) -> (i32, i32, i32) {
    %c0_i32 = arith.constant 0 : i32
    %c0_i32_0 = arith.constant 0 : i32
    %c0_i32_1 = arith.constant 0 : i32
    return %arg0, %c0_i32, %c0_i32_0 : i32, i32, i32
  }
  func.func @transform_1(%arg0: i32) -> (i32, i32) {
    %c0_i32 = arith.constant 0 : i32
    %c0_i32_0 = arith.constant 0 : i32
    %c0_i32_1 = arith.constant 0 : i32
    return %c0_i32, %c0_i32_0 : i32, i32
  }
  func.func @transform_2(%arg0: i32) -> (i32, i32) {
    %c0_i32 = arith.constant 0 : i32
    %c0_i32_0 = arith.constant 0 : i32
    %c0_i32_1 = arith.constant 0 : i32
    return %c0_i32, %c0_i32_0 : i32, i32
  }
  func.func @transform_3(%arg0: i32) -> (i32, i32) {
    %c0_i32 = arith.constant 0 : i32
    %c0_i32_0 = arith.constant 0 : i32
    %c0_i32_1 = arith.constant 0 : i32
    return %c0_i32, %c0_i32_0 : i32, i32
  }
  func.func @transform_4(%arg0: i32) -> (i32, i32) {
    %c0_i32 = arith.constant 0 : i32
    %c0_i32_0 = arith.constant 0 : i32
    %c0_i32_1 = arith.constant 0 : i32
    return %c0_i32, %c0_i32_0 : i32, i32
  }
  func.func @transform_5(%arg0: i32) -> (i32, i32) {
    %c0_i32 = arith.constant 0 : i32
    %c0_i32_0 = arith.constant 0 : i32
    %c0_i32_1 = arith.constant 0 : i32
    return %c0_i32, %c0_i32_0 : i32, i32
  }
  func.func @transform_6(%arg0: i32) -> (i32, i32, i32) {
    %c0_i32 = arith.constant 0 : i32
    %c0_i32_0 = arith.constant 0 : i32
    %c0_i32_1 = arith.constant 0 : i32
    %c0_i32_2 = arith.constant 0 : i32
    return %c0_i32, %c0_i32_0, %c0_i32_1 : i32, i32, i32
  }
  func.func @transform_7(%arg0: i32) -> (i32, i32) {
    %c0_i32 = arith.constant 0 : i32
    %c0_i32_0 = arith.constant 0 : i32
    %c0_i32_1 = arith.constant 0 : i32
    return %c0_i32, %c0_i32_0 : i32, i32
  }
  func.func @transform_8(%arg0: i32) -> (i32, i32, i32) {
    %c0_i32 = arith.constant 0 : i32
    %c0_i32_0 = arith.constant 0 : i32
    %c0_i32_1 = arith.constant 0 : i32
    return %arg0, %c0_i32, %c0_i32_0 : i32, i32, i32
  }
  func.func @transform_9(%arg0: i32) -> (i32, i32, i32) {
    %c0_i32 = arith.constant 0 : i32
    %c0_i32_0 = arith.constant 0 : i32
    %c0_i32_1 = arith.constant 0 : i32
    return %arg0, %c0_i32, %c0_i32_0 : i32, i32, i32
  }
}

</mosaic_0001>

<llo_original>
// kernel: tpu_custom_call.1
$region0: #{tpu_custom_call.1}
  #allocation0 [shape = 'u32[]', space=smem, size = 0x4, offset = 0x4, fixed_abs, tag = 'smem constant byte address 0x4 - core index']
  #allocation1 [shape = 'u32[72,128]{1,0:T(1,128)}', space=vmem, size = 0x9000, scoped, tag = 'internal scratch']
  %s0 = inlined_call_operand.vmem [shape: f32[2,256,32], index: 0, kind: input, shape index: {}]
  %s1 = inlined_call_operand.vmem [shape: f32[1,32], index: 1, kind: input, shape index: {}]
  %s2 = inlined_call_operand.vmem [shape: f32[1,32], index: 2, kind: input, shape index: {}]
  %s3 = inlined_call_operand.vmem [shape: f32[32,32], index: 3, kind: input, shape index: {}]
  %s4 = inlined_call_operand.vmem [shape: f32[32,32], index: 4, kind: input, shape index: {}]
  %s5 = inlined_call_operand.vmem [shape: f32[256,9], index: 5, kind: input, shape index: {}]
  %s6 = inlined_call_operand.vmem [shape: bf16[9,32,128], index: 6, kind: input, shape index: {}]
  %s7 = inlined_call_operand.vmem [shape: f32[1,128], index: 7, kind: input, shape index: {}]
  %s8 = inlined_call_operand.vmem [shape: f32[2,1,128], index: 8, kind: input, shape index: {}]
  %s9 = inlined_call_operand.hbm [shape: bf16[2,256,128], index: 9, kind: output, shape index: {}]
  %s10 = sld [smem:[#allocation0]]
  $region69: #{tpu_custom_call.1} parent=0
    _
  %s12 = ssub.s32 1, %s10
  %s13 = scalar_select 0, %s12, %s10
  $region1: #{tpu_custom_call.1} parent=0
    #allocation2 [shape = 'u8[131072]{0}', space=vmem, size = 0x20000, scoped, tag = 'output window, operand 0']
    #allocation3 [shape = 's32[2]{0}', space=sflag, size = 0x8, scoped, tag = 'scoped memory for tpu_custom_call.1']
    %14 = vsyncpa [#allocation3], 0
    %s15 = scalar_lea.sflag [#allocation3], 1
    %16 = vsyncpa %s15, 0
    loop: start=0, step=1, limit=4
    $region2: #{tpu_custom_call.1} parent=1 // loop_pre_header
      _
    $region3: #{tpu_custom_call.1} parent=1 // loop_header
      %s18 = sphi 0, %s22
      %p19 = scmp.ge.s32.totalorder %s18, 4
      %s28 = sphi 0, %s30
      %s31 = sphi 0, %s28
      %s32 = sphi 0, %s31
      %s48 = sphi 0, %s32
      %s52 = sphi 0, %s52
      %s54 = sphi 0, %s52
      %s55 = sphi 0, %s54
      %s69 = sphi 0, %s55
      %s73 = sphi 0, %s73
      %s75 = sphi 0, %s73
      %s76 = sphi 0, %s75
      %s90 = sphi 0, %s76
      %s94 = sphi 0, %s94
      %s96 = sphi 0, %s94
      %s97 = sphi 0, %s96
      %s111 = sphi 0, %s97
      %s115 = sphi 0, %s115
      %s117 = sphi 0, %s115
      %s118 = sphi 0, %s117
      %s132 = sphi 0, %s118
      %s136 = sphi 0, %s136
      %s138 = sphi 0, %s136
      %s139 = sphi 0, %s138
      %s153 = sphi 0, %s139
      %s157 = sphi 0, %s157
      %s159 = sphi 0, %s157
      %s160 = sphi 0, %s159
      %s174 = sphi 0, %s160
      %s178 = sphi 0, %s178
      %s180 = sphi 0, %s178
      %s181 = sphi 0, %s180
      %s195 = sphi 0, %s181
      %s201 = sphi 0, %s203
      %s204 = sphi 0, %s201
      %s205 = sphi 0, %s204
      %s221 = sphi 0, %s205
      %s227 = sphi 0, %s229
      %s230 = sphi 0, %s227
      %s231 = sphi 0, %s230
      %s247 = sphi 0, %s231
    $region4: #{tpu_custom_call.1} parent=1 // loop_header_branch
      %21 = sbr.rel (%p19) target = $region8
    $region5: #{tpu_custom_call.1} parent=1 // loop_body
      %s23 = ssub.s32 %s18, 1
      %s24 = ssub.s32 %s18, 2
      %s25 = sadd.s32 %s18, 1
      %s26 = ssub.s32 %s18, %s25
      %p27 = scmp.eq.s32.totalorder %s26, 0
      %s29 = sadd.s32 %s28, 1
      %s30 = scalar_select %p27, %s28, %s29
      %p33 = pneg %p27
      %p34 = scmp.eq.s32.totalorder %s18, 1
      %p35 = por %p33, %p34
      %p36 = scmp.ne.s32.totalorder %s28, %s31
      %p37 = scmp.eq.s32.totalorder %s18, 0
      %p38 = por %p36, %p37
      %p39 = scmp.ne.s32.totalorder %s28, %s31
      %p40 = scmp.eq.s32.totalorder %s23, 1
      %p41 = por %p39, %p40
      %p42 = scmp.ne.s32.totalorder %s31, %s32
      %p43 = scmp.eq.s32.totalorder %s23, 0
      %p44 = por %p42, %p43
      %p45 = scmp.ne.s32.totalorder %s31, %s32
      %p46 = scmp.eq.s32.totalorder %s24, 1
      %p47 = por %p45, %p46
      %p49 = scmp.ne.s32.totalorder %s32, %s48
      %p50 = scmp.eq.s32.totalorder %s24, 0
      %p51 = por %p49, %p50
      %s53 = sadd.s32 %s52, 1
      %p56 = scmp.eq.s32.totalorder %s18, 1
      %p57 = scmp.ne.s32.totalorder %s52, %s54
      %p58 = scmp.eq.s32.totalorder %s18, 0
      %p59 = por %p57, %p58
      %p60 = scmp.ne.s32.totalorder %s52, %s54
      %p61 = scmp.eq.s32.totalorder %s23, 1
      %p62 = por %p60, %p61
      %p63 = scmp.ne.s32.totalorder %s54, %s55
      %p64 = scmp.eq.s32.totalorder %s23, 0
      %p65 = por %p63, %p64
      %p66 = scmp.ne.s32.totalorder %s54, %s55
      %p67 = scmp.eq.s32.totalorder %s24, 1
      %p68 = por %p66, %p67
      %p70 = scmp.ne.s32.totalorder %s55, %s69
      %p71 = scmp.eq.s32.totalorder %s24, 0
      %p72 = por %p70, %p71
      %s74 = sadd.s32 %s73, 1
      %p77 = scmp.eq.s32.totalorder %s18, 1
      %p78 = scmp.ne.s32.totalorder %s73, %s75
      %p79 = scmp.eq.s32.totalorder %s18, 0
      %p80 = por %p78, %p79
      %p81 = scmp.ne.s32.totalorder %s73, %s75
      %p82 = scmp.eq.s32.totalorder %s23, 1
      %p83 = por %p81, %p82
      %p84 = scmp.ne.s32.totalorder %s75, %s76
      %p85 = scmp.eq.s32.totalorder %s23, 0
      %p86 = por %p84, %p85
      %p87 = scmp.ne.s32.totalorder %s75, %s76
      %p88 = scmp.eq.s32.totalorder %s24, 1
      %p89 = por %p87, %p88
      %p91 = scmp.ne.s32.totalorder %s76, %s90
      %p92 = scmp.eq.s32.totalorder %s24, 0
      %p93 = por %p91, %p92
      %s95 = sadd.s32 %s94, 1
      %p98 = scmp.eq.s32.totalorder %s18, 1
      %p99 = scmp.ne.s32.totalorder %s94, %s96
      %p100 = scmp.eq.s32.totalorder %s18, 0
      %p101 = por %p99, %p100
      %p102 = scmp.ne.s32.totalorder %s94, %s96
      %p103 = scmp.eq.s32.totalorder %s23, 1
      %p104 = por %p102, %p103
      %p105 = scmp.ne.s32.totalorder %s96, %s97
      %p106 = scmp.eq.s32.totalorder %s23, 0
      %p107 = por %p105, %p106
      %p108 = scmp.ne.s32.totalorder %s96, %s97
      %p109 = scmp.eq.s32.totalorder %s24, 1
      %p110 = por %p108, %p109
      %p112 = scmp.ne.s32.totalorder %s97, %s111
      %p113 = scmp.eq.s32.totalorder %s24, 0
      %p114 = por %p112, %p113
      %s116 = sadd.s32 %s115, 1
      %p119 = scmp.eq.s32.totalorder %s18, 1
      %p120 = scmp.ne.s32.totalorder %s115, %s117
      %p121 = scmp.eq.s32.totalorder %s18, 0
      %p122 = por %p120, %p121
      %p123 = scmp.ne.s32.totalorder %s115, %s117
      %p124 = scmp.eq.s32.totalorder %s23, 1
      %p125 = por %p123, %p124
      %p126 = scmp.ne.s32.totalorder %s117, %s118
      %p127 = scmp.eq.s32.totalorder %s23, 0
      %p128 = por %p126, %p127
      %p129 = scmp.ne.s32.totalorder %s117, %s118
      %p130 = scmp.eq.s32.totalorder %s24, 1
      %p131 = por %p129, %p130
      %p133 = scmp.ne.s32.totalorder %s118, %s132
      %p134 = scmp.eq.s32.totalorder %s24, 0
      %p135 = por %p133, %p134
      %s137 = sadd.s32 %s136, 1
      %p140 = scmp.eq.s32.totalorder %s18, 1
      %p141 = scmp.ne.s32.totalorder %s136, %s138
      %p142 = scmp.eq.s32.totalorder %s18, 0
      %p143 = por %p141, %p142
      %p144 = scmp.ne.s32.totalorder %s136, %s138
      %p145 = scmp.eq.s32.totalorder %s23, 1
      %p146 = por %p144, %p145
      %p147 = scmp.ne.s32.totalorder %s138, %s139
      %p148 = scmp.eq.s32.totalorder %s23, 0
      %p149 = por %p147, %p148
      %p150 = scmp.ne.s32.totalorder %s138, %s139
      %p151 = scmp.eq.s32.totalorder %s24, 1
      %p152 = por %p150, %p151
      %p154 = scmp.ne.s32.totalorder %s139, %s153
      %p155 = scmp.eq.s32.totalorder %s24, 0
      %p156 = por %p154, %p155
      %s158 = sadd.s32 %s157, 1
      %p161 = scmp.eq.s32.totalorder %s18, 1
      %p162 = scmp.ne.s32.totalorder %s157, %s159
      %p163 = scmp.eq.s32.totalorder %s18, 0
      %p164 = por %p162, %p163
      %p165 = scmp.ne.s32.totalorder %s157, %s159
      %p166 = scmp.eq.s32.totalorder %s23, 1
      %p167 = por %p165, %p166
      %p168 = scmp.ne.s32.totalorder %s159, %s160
      %p169 = scmp.eq.s32.totalorder %s23, 0
      %p170 = por %p168, %p169
      %p171 = scmp.ne.s32.totalorder %s159, %s160
      %p172 = scmp.eq.s32.totalorder %s24, 1
      %p173 = por %p171, %p172
      %p175 = scmp.ne.s32.totalorder %s160, %s174
      %p176 = scmp.eq.s32.totalorder %s24, 0
      %p177 = por %p175, %p176
      %s179 = sadd.s32 %s178, 1
      %p182 = scmp.eq.s32.totalorder %s18, 1
      %p183 = scmp.ne.s32.totalorder %s178, %s180
      %p184 = scmp.eq.s32.totalorder %s18, 0
      %p185 = por %p183, %p184
      %p186 = scmp.ne.s32.totalorder %s178, %s180
      %p187 = scmp.eq.s32.totalorder %s23, 1
      %p188 = por %p186, %p187
      %p189 = scmp.ne.s32.totalorder %s180, %s181
      %p190 = scmp.eq.s32.totalorder %s23, 0
      %p191 = por %p189, %p190
      %p192 = scmp.ne.s32.totalorder %s180, %s181
      %p193 = scmp.eq.s32.totalorder %s24, 1
      %p194 = por %p192, %p193
      %p196 = scmp.ne.s32.totalorder %s181, %s195
      %p197 = scmp.eq.s32.totalorder %s24, 0
      %p198 = por %p196, %p197
      %s199 = ssub.s32 %s18, %s25
      %p200 = scmp.eq.s32.totalorder %s199, 0
      %s202 = sadd.s32 %s201, 1
      %s203 = scalar_select %p200, %s201, %s202
      %p206 = pneg %p200
      %p207 = scmp.eq.s32.totalorder %s18, 1
      %p208 = por %p206, %p207
      %p209 = scmp.ne.s32.totalorder %s201, %s204
      %p210 = scmp.eq.s32.totalorder %s18, 0
      %p211 = por %p209, %p210
      %p212 = scmp.ne.s32.totalorder %s201, %s204
      %p213 = scmp.eq.s32.totalorder %s23, 1
      %p214 = por %p212, %p213
      %p215 = scmp.ne.s32.totalorder %s204, %s205
      %p216 = scmp.eq.s32.totalorder %s23, 0
      %p217 = por %p215, %p216
      %p218 = scmp.ne.s32.totalorder %s204, %s205
      %p219 = scmp.eq.s32.totalorder %s24, 1
      %p220 = por %p218, %p219
      %p222 = scmp.ne.s32.totalorder %s205, %s221
      %p223 = scmp.eq.s32.totalorder %s24, 0
      %p224 = por %p222, %p223
      %s225 = ssub.s32 %s18, %s25
      %p226 = scmp.eq.s32.totalorder %s225, 0
      %s228 = sadd.s32 %s227, 1
      %s229 = scalar_select %p226, %s227, %s228
      %p232 = pneg %p226
      %p233 = scmp.eq.s32.totalorder %s18, 1
      %p234 = por %p232, %p233
      %p235 = scmp.ne.s32.totalorder %s227, %s230
      %p236 = scmp.eq.s32.totalorder %s18, 0
      %p237 = por %p235, %p236
      %p238 = scmp.ne.s32.totalorder %s227, %s230
      %p239 = scmp.eq.s32.totalorder %s23, 1
      %p240 = por %p238, %p239
      %p241 = scmp.ne.s32.totalorder %s230, %s231
      %p242 = scmp.eq.s32.totalorder %s23, 0
      %p243 = por %p241, %p242
      %p244 = scmp.ne.s32.totalorder %s230, %s231
      %p245 = scmp.eq.s32.totalorder %s24, 1
      %p246 = por %p244, %p245
      %p248 = scmp.ne.s32.totalorder %s231, %s247
      %p249 = scmp.eq.s32.totalorder %s24, 0
      %p250 = por %p248, %p249
      %p251 = scmp.le.s32.totalorder 1, %s18
      %p252 = scmp.lt.s32.totalorder %s18, 3
      %p253 = pnand %p251, %p252
      %p254 = pneg %p253
      // Predicated region
      $region9: #{tpu_custom_call.1} parent=5 // pred_check
        _
      $region10: #{tpu_custom_call.1} parent=5 // pred_check_branch
        %256 = sbr.rel (%p253) target = $region12
      $region11: #{tpu_custom_call.1} parent=5 // pred_region
        %s257 = ssub.s32 %s18, 1
        // Predicated region
        $region13: #{tpu_custom_call.1} parent=11 // pred_check
          %p258 = pneg %p65
        $region14: #{tpu_custom_call.1} parent=11 // pred_check_branch
          %260 = sbr.rel (%p258) target = $region16
        $region15: #{tpu_custom_call.1} parent=11 // pred_region
          _
        $region16: #{tpu_custom_call.1} parent=11 // pred_fallthru
          _
        // Predicated region
        $region17: #{tpu_custom_call.1} parent=11 // pred_check
          %p261 = pneg %p86
        $region18: #{tpu_custom_call.1} parent=11 // pred_check_branch
          %263 = sbr.rel (%p261) target = $region20
        $region19: #{tpu_custom_call.1} parent=11 // pred_region
          _
        $region20: #{tpu_custom_call.1} parent=11 // pred_fallthru
          _
        // Predicated region
        $region21: #{tpu_custom_call.1} parent=11 // pred_check
          %p264 = pneg %p107
        $region22: #{tpu_custom_call.1} parent=11 // pred_check_branch
          %266 = sbr.rel (%p264) target = $region24
        $region23: #{tpu_custom_call.1} parent=11 // pred_region
          _
        $region24: #{tpu_custom_call.1} parent=11 // pred_fallthru
          _
        // Predicated region
        $region25: #{tpu_custom_call.1} parent=11 // pred_check
          %p267 = pneg %p128
        $region26: #{tpu_custom_call.1} parent=11 // pred_check_branch
          %269 = sbr.rel (%p267) target = $region28
        $region27: #{tpu_custom_call.1} parent=11 // pred_region
          _
        $region28: #{tpu_custom_call.1} parent=11 // pred_fallthru
          _
        // Predicated region
        $region29: #{tpu_custom_call.1} parent=11 // pred_check
          %p270 = pneg %p149
        $region30: #{tpu_custom_call.1} parent=11 // pred_check_branch
          %272 = sbr.rel (%p270) target = $region32
        $region31: #{tpu_custom_call.1} parent=11 // pred_region
          _
        $region32: #{tpu_custom_call.1} parent=11 // pred_fallthru
          _
        // Predicated region
        $region33: #{tpu_custom_call.1} parent=11 // pred_check
          %p273 = pneg %p170
        $region34: #{tpu_custom_call.1} parent=11 // pred_check_branch
          %275 = sbr.rel (%p273) target = $region36
        $region35: #{tpu_custom_call.1} parent=11 // pred_region
          _
        $region36: #{tpu_custom_call.1} parent=11 // pred_fallthru
          _
        // Predicated region
        $region37: #{tpu_custom_call.1} parent=11 // pred_check
          %p276 = pneg %p191
        $region38: #{tpu_custom_call.1} parent=11 // pred_check_branch
          %278 = sbr.rel (%p276) target = $region40
        $region39: #{tpu_custom_call.1} parent=11 // pred_region
          _
        $region40: #{tpu_custom_call.1} parent=11 // pred_fallthru
          _
      $region12: #{tpu_custom_call.1} parent=5 // pred_fallthru
        _
      %p279 = scmp.lt.s32.totalorder %s18, 2
      // Predicated region
      $region41: #{tpu_custom_call.1} parent=5 // pred_check
        %p280 = pneg %p279
      $region42: #{tpu_custom_call.1} parent=5 // pred_check_branch
        %282 = sbr.rel (%p280) target = $region44
      $region43: #{tpu_custom_call.1} parent=5 // pred_region
        // Predicated region
        $region45: #{tpu_custom_call.1} parent=43 // pred_check
          %p283 = pneg %p38
        $region46: #{tpu_custom_call.1} parent=43 // pred_check_branch
          %285 = sbr.rel (%p283) target = $region48
        $region47: #{tpu_custom_call.1} parent=43 // pred_region
          %p286 = scmp.lt.s32.totalorder %s18, 1
          %s287 = scalar_select %p286, %s18, 1
          %s288 = smul.addr %s287, 32
          %s289 = smul.addr %s288, 8
          %s290 = scalar_lea.vmem %s0, %s289
        $region48: #{tpu_custom_call.1} parent=43 // pred_fallthru
          _
        // Predicated region
        $region49: #{tpu_custom_call.1} parent=43 // pred_check
          %p291 = pneg %p211
        $region50: #{tpu_custom_call.1} parent=43 // pred_check_branch
          %293 = sbr.rel (%p291) target = $region52
        $region51: #{tpu_custom_call.1} parent=43 // pred_region
          %p294 = scmp.lt.s32.totalorder %s18, 1
          %s295 = scalar_select %p294, %s18, 1
          %s296 = scalar_lea.vmem %s8, %s295
        $region52: #{tpu_custom_call.1} parent=43 // pred_fallthru
          _
      $region44: #{tpu_custom_call.1} parent=5 // pred_fallthru
        _
      %p297 = scmp.le.s32.totalorder 1, %s18
      %p298 = scmp.lt.s32.totalorder %s18, 3
      %p299 = pnand %p297, %p298
      %p300 = pneg %p299
      // Predicated region
      $region53: #{tpu_custom_call.1} parent=5 // pred_check
        _
      $region54: #{tpu_custom_call.1} parent=5 // pred_check_branch
        %302 = sbr.rel (%p299) target = $region56
      $region55: #{tpu_custom_call.1} parent=5 // pred_region
        %s303 = ssub.s32 %s18, 1
        %p304 = scmp.lt.s32.totalorder %s23, 1
        %s305 = scalar_select %p304, %s23, 1
        %s306 = smul.addr %s305, 32
        %s307 = smul.addr %s306, 8
        %s308 = scalar_lea.vmem %s0, %s307
        %p309 = pneg %p44
        %p310 = pneg %p41
        %p311 = pneg %p65
        %p312 = pneg %p62
        %p313 = pneg %p86
        %p314 = pneg %p83
        %p315 = pneg %p107
        %p316 = pneg %p104
        %p317 = pneg %p128
        %p318 = pneg %p125
        %p319 = pneg %p149
        %p320 = pneg %p146
        %p321 = pneg %p170
        %p322 = pneg %p167
        %p323 = pneg %p191
        %p324 = pneg %p188
        %p325 = scmp.lt.s32.totalorder %s23, 1
        %s326 = scalar_select %p325, %s23, 1
        %s327 = scalar_lea.vmem %s8, %s326
        %p328 = pneg %p217
        %p329 = pneg %p214
        %p330 = pneg %p243
        %p331 = pneg %p240
        %s332 = sand.u32 %s230, 1
        %s333 = scalar_lea.sflag [#allocation3], %s332
        %s334 = sand.u32 %s230, 1
        %s335 = smul.addr %s334, 128
        %s336 = scalar_lea.vmem [#allocation2], %s335
        %p337 = scmp.lt.s32.totalorder %s23, 1
        %s338 = scalar_select %p337, %s23, 1
        %s339 = smul.addr %s338, 32
        %s340 = smul.addr %s339, 8
        %s341 = scalar_lea.vmem %s0, %s340
        %p342 = scmp.lt.s32.totalorder %s23, 1
        %s343 = scalar_select %p342, %s23, 1
        %s344 = scalar_lea.vmem %s8, %s343
        %v346 = vld [vmem:[%s341] sm:$0xff]
        %v347 = vld [vmem:[%s341 + $0x8] sm:$0xff]
        %v348 = vld [vmem:[%s341 + $0x10] sm:$0xff]
        %v349 = vld [vmem:[%s341 + $0x18] sm:$0xff]
        %v350 = vld [vmem:[%s341 + $0x20] sm:$0xff]
        %v351 = vld [vmem:[%s341 + $0x28] sm:$0xff]
        %v352 = vld [vmem:[%s341 + $0x30] sm:$0xff]
        %v353 = vld [vmem:[%s341 + $0x38] sm:$0xff]
        %v354 = vld [vmem:[%s341 + $0x40] sm:$0xff]
        %v355 = vld [vmem:[%s341 + $0x48] sm:$0xff]
        %v356 = vld [vmem:[%s341 + $0x50] sm:$0xff]
        %v357 = vld [vmem:[%s341 + $0x58] sm:$0xff]
        %v358 = vld [vmem:[%s341 + $0x60] sm:$0xff]
        %v359 = vld [vmem:[%s341 + $0x68] sm:$0xff]
        %v360 = vld [vmem:[%s341 + $0x70] sm:$0xff]
        %v361 = vld [vmem:[%s341 + $0x78] sm:$0xff]
        %v362 = vld [vmem:[%s341 + $0x80] sm:$0xff]
        %v363 = vld [vmem:[%s341 + $0x88] sm:$0xff]
        %v364 = vld [vmem:[%s341 + $0x90] sm:$0xff]
        %v365 = vld [vmem:[%s341 + $0x98] sm:$0xff]
        %v366 = vld [vmem:[%s341 + $0xa0] sm:$0xff]
        %v367 = vld [vmem:[%s341 + $0xa8] sm:$0xff]
        %v368 = vld [vmem:[%s341 + $0xb0] sm:$0xff]
        %v369 = vld [vmem:[%s341 + $0xb8] sm:$0xff]
        %v370 = vld [vmem:[%s341 + $0xc0] sm:$0xff]
        %v371 = vld [vmem:[%s341 + $0xc8] sm:$0xff]
        %v372 = vld [vmem:[%s341 + $0xd0] sm:$0xff]
        %v373 = vld [vmem:[%s341 + $0xd8] sm:$0xff]
        %v374 = vld [vmem:[%s341 + $0xe0] sm:$0xff]
        %v375 = vld [vmem:[%s341 + $0xe8] sm:$0xff]
        %v376 = vld [vmem:[%s341 + $0xf0] sm:$0xff]
        %v377 = vld [vmem:[%s341 + $0xf8] sm:$0xff]
        %vm378 = vcmask 261120
        %v379 = vsel %vm378, %v346, 0.0
        %v380 = vsel %vm378, %v347, 0.0
        %v381 = vadd.f32 %v379, %v380
        %v382 = vsel %vm378, %v348, 0.0
        %v383 = vadd.f32 %v381, %v382
        %v384 = vsel %vm378, %v349, 0.0
        %v385 = vadd.f32 %v383, %v384
        %v386 = vsel %vm378, %v350, 0.0
        %v387 = vadd.f32 %v385, %v386
        %v388 = vsel %vm378, %v351, 0.0
        %v389 = vadd.f32 %v387, %v388
        %v390 = vsel %vm378, %v352, 0.0
        %v391 = vadd.f32 %v389, %v390
        %v392 = vsel %vm378, %v353, 0.0
        %v393 = vadd.f32 %v391, %v392
        %v394 = vsel %vm378, %v354, 0.0
        %v395 = vadd.f32 %v393, %v394
        %v396 = vsel %vm378, %v355, 0.0
        %v397 = vadd.f32 %v395, %v396
        %v398 = vsel %vm378, %v356, 0.0
        %v399 = vadd.f32 %v397, %v398
        %v400 = vsel %vm378, %v357, 0.0
        %v401 = vadd.f32 %v399, %v400
        %v402 = vsel %vm378, %v358, 0.0
        %v403 = vadd.f32 %v401, %v402
        %v404 = vsel %vm378, %v359, 0.0
        %v405 = vadd.f32 %v403, %v404
        %v406 = vsel %vm378, %v360, 0.0
        %v407 = vadd.f32 %v405, %v406
        %v408 = vsel %vm378, %v361, 0.0
        %v409 = vadd.f32 %v407, %v408
        %v410 = vsel %vm378, %v362, 0.0
        %v411 = vadd.f32 %v409, %v410
        %v412 = vsel %vm378, %v363, 0.0
        %v413 = vadd.f32 %v411, %v412
        %v414 = vsel %vm378, %v364, 0.0
        %v415 = vadd.f32 %v413, %v414
        %v416 = vsel %vm378, %v365, 0.0
        %v417 = vadd.f32 %v415, %v416
        %v418 = vsel %vm378, %v366, 0.0
        %v419 = vadd.f32 %v417, %v418
        %v420 = vsel %vm378, %v367, 0.0
        %v421 = vadd.f32 %v419, %v420
        %v422 = vsel %vm378, %v368, 0.0
        %v423 = vadd.f32 %v421, %v422
        %v424 = vsel %vm378, %v369, 0.0
        %v425 = vadd.f32 %v423, %v424
        %v426 = vsel %vm378, %v370, 0.0
        %v427 = vadd.f32 %v425, %v426
        %v428 = vsel %vm378, %v371, 0.0
        %v429 = vadd.f32 %v427, %v428
        %v430 = vsel %vm378, %v372, 0.0
        %v431 = vadd.f32 %v429, %v430
        %v432 = vsel %vm378, %v373, 0.0
        %v433 = vadd.f32 %v431, %v432
        %v434 = vsel %vm378, %v374, 0.0
        %v435 = vadd.f32 %v433, %v434
        %v436 = vsel %vm378, %v375, 0.0
        %v437 = vadd.f32 %v435, %v436
        %v438 = vsel %vm378, %v376, 0.0
        %v439 = vadd.f32 %v437, %v438
        %v440 = vsel %vm378, %v377, 0.0
        %v441 = vadd.f32 %v439, %v440
        %v442 = vrot.slane %v441, 4
        %v443 = vadd.f32 %v441, %v442
        %v444 = vrot.slane %v443, 2
        %v445 = vadd.f32 %v443, %v444
        %v446 = vrot.slane %v445, 1
        %v447 = vadd.f32 %v445, %v446
        %v448 = vmul.f32 %v346, %v346
        %v449 = vmul.f32 %v347, %v347
        %v450 = vmul.f32 %v348, %v348
        %v451 = vmul.f32 %v349, %v349
        %v452 = vmul.f32 %v350, %v350
        %v453 = vmul.f32 %v351, %v351
        %v454 = vmul.f32 %v352, %v352
        %v455 = vmul.f32 %v353, %v353
        %v456 = vmul.f32 %v354, %v354
        %v457 = vmul.f32 %v355, %v355
        %v458 = vmul.f32 %v356, %v356
        %v459 = vmul.f32 %v357, %v357
        %v460 = vmul.f32 %v358, %v358
        %v461 = vmul.f32 %v359, %v359
        %v462 = vmul.f32 %v360, %v360
        %v463 = vmul.f32 %v361, %v361
        %v464 = vmul.f32 %v362, %v362
        %v465 = vmul.f32 %v363, %v363
        %v466 = vmul.f32 %v364, %v364
        %v467 = vmul.f32 %v365, %v365
        %v468 = vmul.f32 %v366, %v366
        %v469 = vmul.f32 %v367, %v367
        %v470 = vmul.f32 %v368, %v368
        %v471 = vmul.f32 %v369, %v369
        %v472 = vmul.f32 %v370, %v370
        %v473 = vmul.f32 %v371, %v371
        %v474 = vmul.f32 %v372, %v372
        %v475 = vmul.f32 %v373, %v373
        %v476 = vmul.f32 %v374, %v374
        %v477 = vmul.f32 %v375, %v375
        %v478 = vmul.f32 %v376, %v376
        %v479 = vmul.f32 %v377, %v377
        %v480 = vsel %vm378, %v448, 0.0
        %v481 = vsel %vm378, %v449, 0.0
        %v482 = vadd.f32 %v480, %v481
        %v483 = vsel %vm378, %v450, 0.0
        %v484 = vadd.f32 %v482, %v483
        %v485 = vsel %vm378, %v451, 0.0
        %v486 = vadd.f32 %v484, %v485
        %v487 = vsel %vm378, %v452, 0.0
        %v488 = vadd.f32 %v486, %v487
        %v489 = vsel %vm378, %v453, 0.0
        %v490 = vadd.f32 %v488, %v489
        %v491 = vsel %vm378, %v454, 0.0
        %v492 = vadd.f32 %v490, %v491
        %v493 = vsel %vm378, %v455, 0.0
        %v494 = vadd.f32 %v492, %v493
        %v495 = vsel %vm378, %v456, 0.0
        %v496 = vadd.f32 %v494, %v495
        %v497 = vsel %vm378, %v457, 0.0
        %v498 = vadd.f32 %v496, %v497
        %v499 = vsel %vm378, %v458, 0.0
        %v500 = vadd.f32 %v498, %v499
        %v501 = vsel %vm378, %v459, 0.0
        %v502 = vadd.f32 %v500, %v501
        %v503 = vsel %vm378, %v460, 0.0
        %v504 = vadd.f32 %v502, %v503
        %v505 = vsel %vm378, %v461, 0.0
        %v506 = vadd.f32 %v504, %v505
        %v507 = vsel %vm378, %v462, 0.0
        %v508 = vadd.f32 %v506, %v507
        %v509 = vsel %vm378, %v463, 0.0
        %v510 = vadd.f32 %v508, %v509
        %v511 = vsel %vm378, %v464, 0.0
        %v512 = vadd.f32 %v510, %v511
        %v513 = vsel %vm378, %v465, 0.0
        %v514 = vadd.f32 %v512, %v513
        %v515 = vsel %vm378, %v466, 0.0
        %v516 = vadd.f32 %v514, %v515
        %v517 = vsel %vm378, %v467, 0.0
        %v518 = vadd.f32 %v516, %v517
        %v519 = vsel %vm378, %v468, 0.0
        %v520 = vadd.f32 %v518, %v519
        %v521 = vsel %vm378, %v469, 0.0
        %v522 = vadd.f32 %v520, %v521
        %v523 = vsel %vm378, %v470, 0.0
        %v524 = vadd.f32 %v522, %v523
        %v525 = vsel %vm378, %v471, 0.0
        %v526 = vadd.f32 %v524, %v525
        %v527 = vsel %vm378, %v472, 0.0
        %v528 = vadd.f32 %v526, %v527
        %v529 = vsel %vm378, %v473, 0.0
        %v530 = vadd.f32 %v528, %v529
        %v531 = vsel %vm378, %v474, 0.0
        %v532 = vadd.f32 %v530, %v531
        %v533 = vsel %vm378, %v475, 0.0
        %v534 = vadd.f32 %v532, %v533
        %v535 = vsel %vm378, %v476, 0.0
        %v536 = vadd.f32 %v534, %v535
        %v537 = vsel %vm378, %v477, 0.0
        %v538 = vadd.f32 %v536, %v537
        %v539 = vsel %vm378, %v478, 0.0
        %v540 = vadd.f32 %v538, %v539
        %v541 = vsel %vm378, %v479, 0.0
        %v542 = vadd.f32 %v540, %v541
        %v543 = vrot.slane %v542, 4
        %v544 = vadd.f32 %v542, %v543
        %v545 = vrot.slane %v544, 2
        %v546 = vadd.f32 %v544, %v545
        %v547 = vrot.slane %v546, 1
        %v548 = vadd.f32 %v546, %v547
        %v549 = vld [vmem:[%s3] sm:$0xff]
        %v550 = vld [vmem:[%s3 + $0x8] sm:$0xff]
        %v551 = vld [vmem:[%s3 + $0x10] sm:$0xff]
        %v552 = vld [vmem:[%s3 + $0x18] sm:$0xff]
        %v554 = vsel %vm378, %v447, 0
        %556 = vmatpush.msra.mxu0 0.0
        %557 = vmatpush.msra.mxu0 0.0
        %558 = vmatpush.msra.mxu0 0.0
        %559 = vmatpush.msra.mxu0 0.0
        %560 = vmatpush.msra.mxu0 0.0
        %561 = vmatpush.msra.mxu0 0.0
        %562 = vmatpush.msra.mxu0 0.0
        %563 = vmatpush.msra.mxu0 0.0
        %564 = vmatpush.msra.mxu0 0.0
        %565 = vmatpush.msra.mxu0 0.0
        %566 = vmatpush.msra.mxu0 0.0
        %567 = vmatpush.msra.mxu0 0.0
        %568 = vmatpush.msra.mxu0 %v552
        %569 = vmatpush.msra.mxu0 %v551
        %570 = vmatpush.msra.mxu0 %v550
        %571 = vmatpush.msra.mxu0 %v549
        %572 = vmatmul.f32.gmra.mxu0 %v554
        %v573 = vpop.f32.mrf.mxu0
        %v574 = vadd.f32 0.0, %v573
        %575 = vdwg.mxu0
        %v577 = vsel %vm378, %v548, 0
        %579 = vmatpush.msra.mxu0 0.0
        %580 = vmatpush.msra.mxu0 0.0
        %581 = vmatpush.msra.mxu0 0.0
        %582 = vmatpush.msra.mxu0 0.0
        %583 = vmatpush.msra.mxu0 0.0
        %584 = vmatpush.msra.mxu0 0.0
        %585 = vmatpush.msra.mxu0 0.0
        %586 = vmatpush.msra.mxu0 0.0
        %587 = vmatpush.msra.mxu0 0.0
        %588 = vmatpush.msra.mxu0 0.0
        %589 = vmatpush.msra.mxu0 0.0
        %590 = vmatpush.msra.mxu0 0.0
        %591 = vmatpush.msra.mxu0 %v552
        %592 = vmatpush.msra.mxu0 %v551
        %593 = vmatpush.msra.mxu0 %v550
        %594 = vmatpush.msra.mxu0 %v549
        %595 = vmatmul.f32.gmra.mxu0 %v577
        %v596 = vpop.f32.mrf.mxu0
        %v597 = vadd.f32 0.0, %v596
        %598 = vdwg.mxu0
        %v599 = vld [vmem:[%s4] sm:$0xff]
        %v600 = vld [vmem:[%s4 + $0x8] sm:$0xff]
        %v601 = vld [vmem:[%s4 + $0x10] sm:$0xff]
        %v602 = vld [vmem:[%s4 + $0x18] sm:$0xff]
        %v604 = vsel %vm378, %v574, 0
        %606 = vmatpush.msra.mxu0 0.0
        %607 = vmatpush.msra.mxu0 0.0
        %608 = vmatpush.msra.mxu0 0.0
        %609 = vmatpush.msra.mxu0 0.0
        %610 = vmatpush.msra.mxu0 0.0
        %611 = vmatpush.msra.mxu0 0.0
        %612 = vmatpush.msra.mxu0 0.0
        %613 = vmatpush.msra.mxu0 0.0
        %614 = vmatpush.msra.mxu0 0.0
        %615 = vmatpush.msra.mxu0 0.0
        %616 = vmatpush.msra.mxu0 0.0
        %617 = vmatpush.msra.mxu0 0.0
        %618 = vmatpush.msra.mxu0 %v602
        %619 = vmatpush.msra.mxu0 %v601
        %620 = vmatpush.msra.mxu0 %v600
        %621 = vmatpush.msra.mxu0 %v599
        %622 = vmatmul.f32.gmra.mxu0 %v604
        %v623 = vpop.f32.mrf.mxu0
        %v624 = vadd.f32 0.0, %v623
        %625 = vdwg.mxu0
        %v627 = vsel %vm378, %v597, 0
        %629 = vmatpush.msra.mxu0 0.0
        %630 = vmatpush.msra.mxu0 0.0
        %631 = vmatpush.msra.mxu0 0.0
        %632 = vmatpush.msra.mxu0 0.0
        %633 = vmatpush.msra.mxu0 0.0
        %634 = vmatpush.msra.mxu0 0.0
        %635 = vmatpush.msra.mxu0 0.0
        %636 = vmatpush.msra.mxu0 0.0
        %637 = vmatpush.msra.mxu0 0.0
        %638 = vmatpush.msra.mxu0 0.0
        %639 = vmatpush.msra.mxu0 0.0
        %640 = vmatpush.msra.mxu0 0.0
        %641 = vmatpush.msra.mxu0 %v602
        %642 = vmatpush.msra.mxu0 %v601
        %643 = vmatpush.msra.mxu0 %v600
        %644 = vmatpush.msra.mxu0 %v599
        %645 = vmatmul.f32.gmra.mxu0 %v627
        %v646 = vpop.f32.mrf.mxu0
        %v647 = vadd.f32 0.0, %v646
        %648 = vdwg.mxu0
        %v649 = vmul.f32 %v624, %v624
        %v650 = vsub.f32 %v647, %v649
        %v651 = vadd.f32 %v650, 1e-05
        %v652 = vrsqrt.pop %v651
        %v653 = vmul.f32 %v652, %v651
        %v654 = vmul.f32 %v653, %v652
        %v655 = vmul.f32 0.5, %v654
        %v656 = vsub.f32 1.5, %v655
        %v657 = vmul.f32 %v652, %v656
        %vm658 = vweird.f32 %v651
        %vm659 = vweird.f32 %v652
        %vm660 = vmor %vm658, %vm659
        %v661 = vsel %vm660, %v652, %v657
        %v662 = vld [vmem:[%s1] sm:$0x1]
        %v663 = vmul.f32 %v661, %v662
        %v664 = vld [vmem:[%s2] sm:$0x1]
        %v665 = vmul.f32 %v624, %v663
        %v666 = vsub.f32 %v664, %v665
        %v667 = vperm.slane %v663, 0
        %v668 = vmul.f32 %v346, %v667
        %v669 = vmul.f32 %v347, %v667
        %v670 = vmul.f32 %v348, %v667
        %v671 = vmul.f32 %v349, %v667
        %v672 = vmul.f32 %v350, %v667
        %v673 = vmul.f32 %v351, %v667
        %v674 = vmul.f32 %v352, %v667
        %v675 = vmul.f32 %v353, %v667
        %v676 = vmul.f32 %v354, %v667
        %v677 = vmul.f32 %v355, %v667
        %v678 = vmul.f32 %v356, %v667
        %v679 = vmul.f32 %v357, %v667
        %v680 = vmul.f32 %v358, %v667
        %v681 = vmul.f32 %v359, %v667
        %v682 = vmul.f32 %v360, %v667
        %v683 = vmul.f32 %v361, %v667
        %v684 = vmul.f32 %v362, %v667
        %v685 = vmul.f32 %v363, %v667
        %v686 = vmul.f32 %v364, %v667
        %v687 = vmul.f32 %v365, %v667
        %v688 = vmul.f32 %v366, %v667
        %v689 = vmul.f32 %v367, %v667
        %v690 = vmul.f32 %v368, %v667
        %v691 = vmul.f32 %v369, %v667
        %v692 = vmul.f32 %v370, %v667
        %v693 = vmul.f32 %v371, %v667
        %v694 = vmul.f32 %v372, %v667
        %v695 = vmul.f32 %v373, %v667
        %v696 = vmul.f32 %v374, %v667
        %v697 = vmul.f32 %v375, %v667
        %v698 = vmul.f32 %v376, %v667
        %v699 = vmul.f32 %v377, %v667
        %v701 = vperm.slane %v666, 0
        %v703 = vadd.f32 %v668, %v701
        %v704 = vadd.f32 %v669, %v701
        %v705 = vadd.f32 %v670, %v701
        %v706 = vadd.f32 %v671, %v701
        %v707 = vadd.f32 %v672, %v701
        %v708 = vadd.f32 %v673, %v701
        %v709 = vadd.f32 %v674, %v701
        %v710 = vadd.f32 %v675, %v701
        %v711 = vadd.f32 %v676, %v701
        %v712 = vadd.f32 %v677, %v701
        %v713 = vadd.f32 %v678, %v701
        %v714 = vadd.f32 %v679, %v701
        %v715 = vadd.f32 %v680, %v701
        %v716 = vadd.f32 %v681, %v701
        %v717 = vadd.f32 %v682, %v701
        %v718 = vadd.f32 %v683, %v701
        %v719 = vadd.f32 %v684, %v701
        %v720 = vadd.f32 %v685, %v701
        %v721 = vadd.f32 %v686, %v701
        %v722 = vadd.f32 %v687, %v701
        %v723 = vadd.f32 %v688, %v701
        %v724 = vadd.f32 %v689, %v701
        %v725 = vadd.f32 %v690, %v701
        %v726 = vadd.f32 %v691, %v701
        %v727 = vadd.f32 %v692, %v701
        %v728 = vadd.f32 %v693, %v701
        %v729 = vadd.f32 %v694, %v701
        %v730 = vadd.f32 %v695, %v701
        %v731 = vadd.f32 %v696, %v701
        %v732 = vadd.f32 %v697, %v701
        %v733 = vadd.f32 %v698, %v701
        %v734 = vadd.f32 %v699, %v701
        %v735 = vxor.u32 %v703, 2147483648
        %v736 = vxor.u32 %v704, 2147483648
        %v737 = vxor.u32 %v705, 2147483648
        %v738 = vxor.u32 %v706, 2147483648
        %v739 = vxor.u32 %v707, 2147483648
        %v740 = vxor.u32 %v708, 2147483648
        %v741 = vxor.u32 %v709, 2147483648
        %v742 = vxor.u32 %v710, 2147483648
        %v743 = vxor.u32 %v711, 2147483648
        %v744 = vxor.u32 %v712, 2147483648
        %v745 = vxor.u32 %v713, 2147483648
        %v746 = vxor.u32 %v714, 2147483648
        %v747 = vxor.u32 %v715, 2147483648
        %v748 = vxor.u32 %v716, 2147483648
        %v749 = vxor.u32 %v717, 2147483648
        %v750 = vxor.u32 %v718, 2147483648
        %v751 = vxor.u32 %v719, 2147483648
        %v752 = vxor.u32 %v720, 2147483648
        %v753 = vxor.u32 %v721, 2147483648
        %v754 = vxor.u32 %v722, 2147483648
        %v755 = vxor.u32 %v723, 2147483648
        %v756 = vxor.u32 %v724, 2147483648
        %v757 = vxor.u32 %v725, 2147483648
        %v758 = vxor.u32 %v726, 2147483648
        %v759 = vxor.u32 %v727, 2147483648
        %v760 = vxor.u32 %v728, 2147483648
        %v761 = vxor.u32 %v729, 2147483648
        %v762 = vxor.u32 %v730, 2147483648
        %v763 = vxor.u32 %v731, 2147483648
        %v764 = vxor.u32 %v732, 2147483648
        %v765 = vxor.u32 %v733, 2147483648
        %v766 = vxor.u32 %v734, 2147483648
        %v767 = vmul.f32 %v735, 1.442695
        %v768 = vpow.pop %v767
        %v769 = vmul.f32 %v736, 1.442695
        %v770 = vpow.pop %v769
        %v771 = vmul.f32 %v737, 1.442695
        %v772 = vpow.pop %v771
        %v773 = vmul.f32 %v738, 1.442695
        %v774 = vpow.pop %v773
        %v775 = vmul.f32 %v739, 1.442695
        %v776 = vpow.pop %v775
        %v777 = vmul.f32 %v740, 1.442695
        %v778 = vpow.pop %v777
        %v779 = vmul.f32 %v741, 1.442695
        %v780 = vpow.pop %v779
        %v781 = vmul.f32 %v742, 1.442695
        %v782 = vpow.pop %v781
        %v783 = vmul.f32 %v743, 1.442695
        %v784 = vpow.pop %v783
        %v785 = vmul.f32 %v744, 1.442695
        %v786 = vpow.pop %v785
        %v787 = vmul.f32 %v745, 1.442695
        %v788 = vpow.pop %v787
        %v789 = vmul.f32 %v746, 1.442695
        %v790 = vpow.pop %v789
        %v791 = vmul.f32 %v747, 1.442695
        %v792 = vpow.pop %v791
        %v793 = vmul.f32 %v748, 1.442695
        %v794 = vpow.pop %v793
        %v795 = vmul.f32 %v749, 1.442695
        %v796 = vpow.pop %v795
        %v797 = vmul.f32 %v750, 1.442695
        %v798 = vpow.pop %v797
        %v799 = vmul.f32 %v751, 1.442695
        %v800 = vpow.pop %v799
        %v801 = vmul.f32 %v752, 1.442695
        %v802 = vpow.pop %v801
        %v803 = vmul.f32 %v753, 1.442695
        %v804 = vpow.pop %v803
        %v805 = vmul.f32 %v754, 1.442695
        %v806 = vpow.pop %v805
        %v807 = vmul.f32 %v755, 1.442695
        %v808 = vpow.pop %v807
        %v809 = vmul.f32 %v756, 1.442695
        %v810 = vpow.pop %v809
        %v811 = vmul.f32 %v757, 1.442695
        %v812 = vpow.pop %v811
        %v813 = vmul.f32 %v758, 1.442695
        %v814 = vpow.pop %v813
        %v815 = vmul.f32 %v759, 1.442695
        %v816 = vpow.pop %v815
        %v817 = vmul.f32 %v760, 1.442695
        %v818 = vpow.pop %v817
        %v819 = vmul.f32 %v761, 1.442695
        %v820 = vpow.pop %v819
        %v821 = vmul.f32 %v762, 1.442695
        %v822 = vpow.pop %v821
        %v823 = vmul.f32 %v763, 1.442695
        %v824 = vpow.pop %v823
        %v825 = vmul.f32 %v764, 1.442695
        %v826 = vpow.pop %v825
        %v827 = vmul.f32 %v765, 1.442695
        %v828 = vpow.pop %v827
        %v829 = vmul.f32 %v766, 1.442695
        %v830 = vpow.pop %v829
        %v831 = vadd.f32 %v768, 1.0
        %v832 = vadd.f32 %v770, 1.0
        %v833 = vadd.f32 %v772, 1.0
        %v834 = vadd.f32 %v774, 1.0
        %v835 = vadd.f32 %v776, 1.0
        %v836 = vadd.f32 %v778, 1.0
        %v837 = vadd.f32 %v780, 1.0
        %v838 = vadd.f32 %v782, 1.0
        %v839 = vadd.f32 %v784, 1.0
        %v840 = vadd.f32 %v786, 1.0
        %v841 = vadd.f32 %v788, 1.0
        %v842 = vadd.f32 %v790, 1.0
        %v843 = vadd.f32 %v792, 1.0
        %v844 = vadd.f32 %v794, 1.0
        %v845 = vadd.f32 %v796, 1.0
        %v846 = vadd.f32 %v798, 1.0
        %v847 = vadd.f32 %v800, 1.0
        %v848 = vadd.f32 %v802, 1.0
        %v849 = vadd.f32 %v804, 1.0
        %v850 = vadd.f32 %v806, 1.0
        %v851 = vadd.f32 %v808, 1.0
        %v852 = vadd.f32 %v810, 1.0
        %v853 = vadd.f32 %v812, 1.0
        %v854 = vadd.f32 %v814, 1.0
        %v855 = vadd.f32 %v816, 1.0
        %v856 = vadd.f32 %v818, 1.0
        %v857 = vadd.f32 %v820, 1.0
        %v858 = vadd.f32 %v822, 1.0
        %v859 = vadd.f32 %v824, 1.0
        %v860 = vadd.f32 %v826, 1.0
        %v861 = vadd.f32 %v828, 1.0
        %v862 = vadd.f32 %v830, 1.0
        %v863 = vrcp.pop %v831
        %v864 = vmul.f32 %v831, %v863
        %v865 = vsub.f32 1.0, %v864
        %v866 = vmul.f32 %v863, %v865
        %v867 = vadd.f32 %v863, %v866
        %vm868 = vweird.f32 %v831
        %vm869 = vweird.f32 %v863
        %vm870 = vmor %vm868, %vm869
        %v871 = vsel %vm870, %v863, %v867
        %v872 = vand.u32 2147483647, %v831
        %vm873 = vcmp.eq.f32.partialorder %v872, 8.507059e+37
        %v874 = vand.u32 %v831, 2147483648
        %v875 = vor.u32 1.1754944e-38, %v874
        %v876 = vsel %vm873, %v875, %v871
        %v877 = vmul.f32 1.0, %v876
        %v878 = vrcp.pop %v832
        %v879 = vmul.f32 %v832, %v878
        %v880 = vsub.f32 1.0, %v879
        %v881 = vmul.f32 %v878, %v880
        %v882 = vadd.f32 %v878, %v881
        %vm883 = vweird.f32 %v832
        %vm884 = vweird.f32 %v878
        %vm885 = vmor %vm883, %vm884
        %v886 = vsel %vm885, %v878, %v882
        %v887 = vand.u32 2147483647, %v832
        %vm888 = vcmp.eq.f32.partialorder %v887, 8.507059e+37
        %v889 = vand.u32 %v832, 2147483648
        %v890 = vor.u32 1.1754944e-38, %v889
        %v891 = vsel %vm888, %v890, %v886
        %v892 = vmul.f32 1.0, %v891
        %v893 = vrcp.pop %v833
        %v894 = vmul.f32 %v833, %v893
        %v895 = vsub.f32 1.0, %v894
        %v896 = vmul.f32 %v893, %v895
        %v897 = vadd.f32 %v893, %v896
        %vm898 = vweird.f32 %v833
        %vm899 = vweird.f32 %v893
        %vm900 = vmor %vm898, %vm899
        %v901 = vsel %vm900, %v893, %v897
        %v902 = vand.u32 2147483647, %v833
        %vm903 = vcmp.eq.f32.partialorder %v902, 8.507059e+37
        %v904 = vand.u32 %v833, 2147483648
        %v905 = vor.u32 1.1754944e-38, %v904
        %v906 = vsel %vm903, %v905, %v901
        %v907 = vmul.f32 1.0, %v906
        %v908 = vrcp.pop %v834
        %v909 = vmul.f32 %v834, %v908
        %v910 = vsub.f32 1.0, %v909
        %v911 = vmul.f32 %v908, %v910
        %v912 = vadd.f32 %v908, %v911
        %vm913 = vweird.f32 %v834
        %vm914 = vweird.f32 %v908
        %vm915 = vmor %vm913, %vm914
        %v916 = vsel %vm915, %v908, %v912
        %v917 = vand.u32 2147483647, %v834
        %vm918 = vcmp.eq.f32.partialorder %v917, 8.507059e+37
        %v919 = vand.u32 %v834, 2147483648
        %v920 = vor.u32 1.1754944e-38, %v919
        %v921 = vsel %vm918, %v920, %v916
        %v922 = vmul.f32 1.0, %v921
        %v923 = vrcp.pop %v835
        %v924 = vmul.f32 %v835, %v923
        %v925 = vsub.f32 1.0, %v924
        %v926 = vmul.f32 %v923, %v925
        %v927 = vadd.f32 %v923, %v926
        %vm928 = vweird.f32 %v835
        %vm929 = vweird.f32 %v923
        %vm930 = vmor %vm928, %vm929
        %v931 = vsel %vm930, %v923, %v927
        %v932 = vand.u32 2147483647, %v835
        %vm933 = vcmp.eq.f32.partialorder %v932, 8.507059e+37
        %v934 = vand.u32 %v835, 2147483648
        %v935 = vor.u32 1.1754944e-38, %v934
        %v936 = vsel %vm933, %v935, %v931
        %v937 = vmul.f32 1.0, %v936
        %v938 = vrcp.pop %v836
        %v939 = vmul.f32 %v836, %v938
        %v940 = vsub.f32 1.0, %v939
        %v941 = vmul.f32 %v938, %v940
        %v942 = vadd.f32 %v938, %v941
        %vm943 = vweird.f32 %v836
        %vm944 = vweird.f32 %v938
        %vm945 = vmor %vm943, %vm944
        %v946 = vsel %vm945, %v938, %v942
        %v947 = vand.u32 2147483647, %v836
        %vm948 = vcmp.eq.f32.partialorder %v947, 8.507059e+37
        %v949 = vand.u32 %v836, 2147483648
        %v950 = vor.u32 1.1754944e-38, %v949
        %v951 = vsel %vm948, %v950, %v946
        %v952 = vmul.f32 1.0, %v951
        %v953 = vrcp.pop %v837
        %v954 = vmul.f32 %v837, %v953
        %v955 = vsub.f32 1.0, %v954
        %v956 = vmul.f32 %v953, %v955
        %v957 = vadd.f32 %v953, %v956
        %vm958 = vweird.f32 %v837
        %vm959 = vweird.f32 %v953
        %vm960 = vmor %vm958, %vm959
        %v961 = vsel %vm960, %v953, %v957
        %v962 = vand.u32 2147483647, %v837
        %vm963 = vcmp.eq.f32.partialorder %v962, 8.507059e+37
        %v964 = vand.u32 %v837, 2147483648
        %v965 = vor.u32 1.1754944e-38, %v964
        %v966 = vsel %vm963, %v965, %v961
        %v967 = vmul.f32 1.0, %v966
        %v968 = vrcp.pop %v838
        %v969 = vmul.f32 %v838, %v968
        %v970 = vsub.f32 1.0, %v969
        %v971 = vmul.f32 %v968, %v970
        %v972 = vadd.f32 %v968, %v971
        %vm973 = vweird.f32 %v838
        %vm974 = vweird.f32 %v968
        %vm975 = vmor %vm973, %vm974
        %v976 = vsel %vm975, %v968, %v972
        %v977 = vand.u32 2147483647, %v838
        %vm978 = vcmp.eq.f32.partialorder %v977, 8.507059e+37
        %v979 = vand.u32 %v838, 2147483648
        %v980 = vor.u32 1.1754944e-38, %v979
        %v981 = vsel %vm978, %v980, %v976
        %v982 = vmul.f32 1.0, %v981
        %v983 = vrcp.pop %v839
        %v984 = vmul.f32 %v839, %v983
        %v985 = vsub.f32 1.0, %v984
        %v986 = vmul.f32 %v983, %v985
        %v987 = vadd.f32 %v983, %v986
        %vm988 = vweird.f32 %v839
        %vm989 = vweird.f32 %v983
        %vm990 = vmor %vm988, %vm989
        %v991 = vsel %vm990, %v983, %v987
        %v992 = vand.u32 2147483647, %v839
        %vm993 = vcmp.eq.f32.partialorder %v992, 8.507059e+37
        %v994 = vand.u32 %v839, 2147483648
        %v995 = vor.u32 1.1754944e-38, %v994
        %v996 = vsel %vm993, %v995, %v991
        %v997 = vmul.f32 1.0, %v996
        %v998 = vrcp.pop %v840
        %v999 = vmul.f32 %v840, %v998
        %v1000 = vsub.f32 1.0, %v999
        %v1001 = vmul.f32 %v998, %v1000
        %v1002 = vadd.f32 %v998, %v1001
        %vm1003 = vweird.f32 %v840
        %vm1004 = vweird.f32 %v998
        %vm1005 = vmor %vm1003, %vm1004
        %v1006 = vsel %vm1005, %v998, %v1002
        %v1007 = vand.u32 2147483647, %v840
        %vm1008 = vcmp.eq.f32.partialorder %v1007, 8.507059e+37
        %v1009 = vand.u32 %v840, 2147483648
        %v1010 = vor.u32 1.1754944e-38, %v1009
        %v1011 = vsel %vm1008, %v1010, %v1006
        %v1012 = vmul.f32 1.0, %v1011
        %v1013 = vrcp.pop %v841
        %v1014 = vmul.f32 %v841, %v1013
        %v1015 = vsub.f32 1.0, %v1014
        %v1016 = vmul.f32 %v1013, %v1015
        %v1017 = vadd.f32 %v1013, %v1016
        %vm1018 = vweird.f32 %v841
        %vm1019 = vweird.f32 %v1013
        %vm1020 = vmor %vm1018, %vm1019
        %v1021 = vsel %vm1020, %v1013, %v1017
        %v1022 = vand.u32 2147483647, %v841
        %vm1023 = vcmp.eq.f32.partialorder %v1022, 8.507059e+37
        %v1024 = vand.u32 %v841, 2147483648
        %v1025 = vor.u32 1.1754944e-38, %v1024
        %v1026 = vsel %vm1023, %v1025, %v1021
        %v1027 = vmul.f32 1.0, %v1026
        %v1028 = vrcp.pop %v842
        %v1029 = vmul.f32 %v842, %v1028
        %v1030 = vsub.f32 1.0, %v1029
        %v1031 = vmul.f32 %v1028, %v1030
        %v1032 = vadd.f32 %v1028, %v1031
        %vm1033 = vweird.f32 %v842
        %vm1034 = vweird.f32 %v1028
        %vm1035 = vmor %vm1033, %vm1034
        %v1036 = vsel %vm1035, %v1028, %v1032
        %v1037 = vand.u32 2147483647, %v842
        %vm1038 = vcmp.eq.f32.partialorder %v1037, 8.507059e+37
        %v1039 = vand.u32 %v842, 2147483648
        %v1040 = vor.u32 1.1754944e-38, %v1039
        %v1041 = vsel %vm1038, %v1040, %v1036
        %v1042 = vmul.f32 1.0, %v1041
        %v1043 = vrcp.pop %v843
        %v1044 = vmul.f32 %v843, %v1043
        %v1045 = vsub.f32 1.0, %v1044
        %v1046 = vmul.f32 %v1043, %v1045
        %v1047 = vadd.f32 %v1043, %v1046
        %vm1048 = vweird.f32 %v843
        %vm1049 = vweird.f32 %v1043
        %vm1050 = vmor %vm1048, %vm1049
        %v1051 = vsel %vm1050, %v1043, %v1047
        %v1052 = vand.u32 2147483647, %v843
        %vm1053 = vcmp.eq.f32.partialorder %v1052, 8.507059e+37
        %v1054 = vand.u32 %v843, 2147483648
        %v1055 = vor.u32 1.1754944e-38, %v1054
        %v1056 = vsel %vm1053, %v1055, %v1051
        %v1057 = vmul.f32 1.0, %v1056
        %v1058 = vrcp.pop %v844
        %v1059 = vmul.f32 %v844, %v1058
        %v1060 = vsub.f32 1.0, %v1059
        %v1061 = vmul.f32 %v1058, %v1060
        %v1062 = vadd.f32 %v1058, %v1061
        %vm1063 = vweird.f32 %v844
        %vm1064 = vweird.f32 %v1058
        %vm1065 = vmor %vm1063, %vm1064
        %v1066 = vsel %vm1065, %v1058, %v1062
        %v1067 = vand.u32 2147483647, %v844
        %vm1068 = vcmp.eq.f32.partialorder %v1067, 8.507059e+37
        %v1069 = vand.u32 %v844, 2147483648
        %v1070 = vor.u32 1.1754944e-38, %v1069
        %v1071 = vsel %vm1068, %v1070, %v1066
        %v1072 = vmul.f32 1.0, %v1071
        %v1073 = vrcp.pop %v845
        %v1074 = vmul.f32 %v845, %v1073
        %v1075 = vsub.f32 1.0, %v1074
        %v1076 = vmul.f32 %v1073, %v1075
        %v1077 = vadd.f32 %v1073, %v1076
        %vm1078 = vweird.f32 %v845
        %vm1079 = vweird.f32 %v1073
        %vm1080 = vmor %vm1078, %vm1079
        %v1081 = vsel %vm1080, %v1073, %v1077
        %v1082 = vand.u32 2147483647, %v845
        %vm1083 = vcmp.eq.f32.partialorder %v1082, 8.507059e+37
        %v1084 = vand.u32 %v845, 2147483648
        %v1085 = vor.u32 1.1754944e-38, %v1084
        %v1086 = vsel %vm1083, %v1085, %v1081
        %v1087 = vmul.f32 1.0, %v1086
        %v1088 = vrcp.pop %v846
        %v1089 = vmul.f32 %v846, %v1088
        %v1090 = vsub.f32 1.0, %v1089
        %v1091 = vmul.f32 %v1088, %v1090
        %v1092 = vadd.f32 %v1088, %v1091
        %vm1093 = vweird.f32 %v846
        %vm1094 = vweird.f32 %v1088
        %vm1095 = vmor %vm1093, %vm1094
        %v1096 = vsel %vm1095, %v1088, %v1092
        %v1097 = vand.u32 2147483647, %v846
        %vm1098 = vcmp.eq.f32.partialorder %v1097, 8.507059e+37
        %v1099 = vand.u32 %v846, 2147483648
        %v1100 = vor.u32 1.1754944e-38, %v1099
        %v1101 = vsel %vm1098, %v1100, %v1096
        %v1102 = vmul.f32 1.0, %v1101
        %v1103 = vrcp.pop %v847
        %v1104 = vmul.f32 %v847, %v1103
        %v1105 = vsub.f32 1.0, %v1104
        %v1106 = vmul.f32 %v1103, %v1105
        %v1107 = vadd.f32 %v1103, %v1106
        %vm1108 = vweird.f32 %v847
        %vm1109 = vweird.f32 %v1103
        %vm1110 = vmor %vm1108, %vm1109
        %v1111 = vsel %vm1110, %v1103, %v1107
        %v1112 = vand.u32 2147483647, %v847
        %vm1113 = vcmp.eq.f32.partialorder %v1112, 8.507059e+37
        %v1114 = vand.u32 %v847, 2147483648
        %v1115 = vor.u32 1.1754944e-38, %v1114
        %v1116 = vsel %vm1113, %v1115, %v1111
        %v1117 = vmul.f32 1.0, %v1116
        %v1118 = vrcp.pop %v848
        %v1119 = vmul.f32 %v848, %v1118
        %v1120 = vsub.f32 1.0, %v1119
        %v1121 = vmul.f32 %v1118, %v1120
        %v1122 = vadd.f32 %v1118, %v1121
        %vm1123 = vweird.f32 %v848
        %vm1124 = vweird.f32 %v1118
        %vm1125 = vmor %vm1123, %vm1124
        %v1126 = vsel %vm1125, %v1118, %v1122
        %v1127 = vand.u32 2147483647, %v848
        %vm1128 = vcmp.eq.f32.partialorder %v1127, 8.507059e+37
        %v1129 = vand.u32 %v848, 2147483648
        %v1130 = vor.u32 1.1754944e-38, %v1129
        %v1131 = vsel %vm1128, %v1130, %v1126
        %v1132 = vmul.f32 1.0, %v1131
        %v1133 = vrcp.pop %v849
        %v1134 = vmul.f32 %v849, %v1133
        %v1135 = vsub.f32 1.0, %v1134
        %v1136 = vmul.f32 %v1133, %v1135
        %v1137 = vadd.f32 %v1133, %v1136
        %vm1138 = vweird.f32 %v849
        %vm1139 = vweird.f32 %v1133
        %vm1140 = vmor %vm1138, %vm1139
        %v1141 = vsel %vm1140, %v1133, %v1137
        %v1142 = vand.u32 2147483647, %v849
        %vm1143 = vcmp.eq.f32.partialorder %v1142, 8.507059e+37
        %v1144 = vand.u32 %v849, 2147483648
        %v1145 = vor.u32 1.1754944e-38, %v1144
        %v1146 = vsel %vm1143, %v1145, %v1141
        %v1147 = vmul.f32 1.0, %v1146
        %v1148 = vrcp.pop %v850
        %v1149 = vmul.f32 %v850, %v1148
        %v1150 = vsub.f32 1.0, %v1149
        %v1151 = vmul.f32 %v1148, %v1150
        %v1152 = vadd.f32 %v1148, %v1151
        %vm1153 = vweird.f32 %v850
        %vm1154 = vweird.f32 %v1148
        %vm1155 = vmor %vm1153, %vm1154
        %v1156 = vsel %vm1155, %v1148, %v1152
        %v1157 = vand.u32 2147483647, %v850
        %vm1158 = vcmp.eq.f32.partialorder %v1157, 8.507059e+37
        %v1159 = vand.u32 %v850, 2147483648
        %v1160 = vor.u32 1.1754944e-38, %v1159
        %v1161 = vsel %vm1158, %v1160, %v1156
        %v1162 = vmul.f32 1.0, %v1161
        %v1163 = vrcp.pop %v851
        %v1164 = vmul.f32 %v851, %v1163
        %v1165 = vsub.f32 1.0, %v1164
        %v1166 = vmul.f32 %v1163, %v1165
        %v1167 = vadd.f32 %v1163, %v1166
        %vm1168 = vweird.f32 %v851
        %vm1169 = vweird.f32 %v1163
        %vm1170 = vmor %vm1168, %vm1169
        %v1171 = vsel %vm1170, %v1163, %v1167
        %v1172 = vand.u32 2147483647, %v851
        %vm1173 = vcmp.eq.f32.partialorder %v1172, 8.507059e+37
        %v1174 = vand.u32 %v851, 2147483648
        %v1175 = vor.u32 1.1754944e-38, %v1174
        %v1176 = vsel %vm1173, %v1175, %v1171
        %v1177 = vmul.f32 1.0, %v1176
        %v1178 = vrcp.pop %v852
        %v1179 = vmul.f32 %v852, %v1178
        %v1180 = vsub.f32 1.0, %v1179
        %v1181 = vmul.f32 %v1178, %v1180
        %v1182 = vadd.f32 %v1178, %v1181
        %vm1183 = vweird.f32 %v852
        %vm1184 = vweird.f32 %v1178
        %vm1185 = vmor %vm1183, %vm1184
        %v1186 = vsel %vm1185, %v1178, %v1182
        %v1187 = vand.u32 2147483647, %v852
        %vm1188 = vcmp.eq.f32.partialorder %v1187, 8.507059e+37
        %v1189 = vand.u32 %v852, 2147483648
        %v1190 = vor.u32 1.1754944e-38, %v1189
        %v1191 = vsel %vm1188, %v1190, %v1186
        %v1192 = vmul.f32 1.0, %v1191
        %v1193 = vrcp.pop %v853
        %v1194 = vmul.f32 %v853, %v1193
        %v1195 = vsub.f32 1.0, %v1194
        %v1196 = vmul.f32 %v1193, %v1195
        %v1197 = vadd.f32 %v1193, %v1196
        %vm1198 = vweird.f32 %v853
        %vm1199 = vweird.f32 %v1193
        %vm1200 = vmor %vm1198, %vm1199
        %v1201 = vsel %vm1200, %v1193, %v1197
        %v1202 = vand.u32 2147483647, %v853
        %vm1203 = vcmp.eq.f32.partialorder %v1202, 8.507059e+37
        %v1204 = vand.u32 %v853, 2147483648
        %v1205 = vor.u32 1.1754944e-38, %v1204
        %v1206 = vsel %vm1203, %v1205, %v1201
        %v1207 = vmul.f32 1.0, %v1206
        %v1208 = vrcp.pop %v854
        %v1209 = vmul.f32 %v854, %v1208
        %v1210 = vsub.f32 1.0, %v1209
        %v1211 = vmul.f32 %v1208, %v1210
        %v1212 = vadd.f32 %v1208, %v1211
        %vm1213 = vweird.f32 %v854
        %vm1214 = vweird.f32 %v1208
        %vm1215 = vmor %vm1213, %vm1214
        %v1216 = vsel %vm1215, %v1208, %v1212
        %v1217 = vand.u32 2147483647, %v854
        %vm1218 = vcmp.eq.f32.partialorder %v1217, 8.507059e+37
        %v1219 = vand.u32 %v854, 2147483648
        %v1220 = vor.u32 1.1754944e-38, %v1219
        %v1221 = vsel %vm1218, %v1220, %v1216
        %v1222 = vmul.f32 1.0, %v1221
        %v1223 = vrcp.pop %v855
        %v1224 = vmul.f32 %v855, %v1223
        %v1225 = vsub.f32 1.0, %v1224
        %v1226 = vmul.f32 %v1223, %v1225
        %v1227 = vadd.f32 %v1223, %v1226
        %vm1228 = vweird.f32 %v855
        %vm1229 = vweird.f32 %v1223
        %vm1230 = vmor %vm1228, %vm1229
        %v1231 = vsel %vm1230, %v1223, %v1227
        %v1232 = vand.u32 2147483647, %v855
        %vm1233 = vcmp.eq.f32.partialorder %v1232, 8.507059e+37
        %v1234 = vand.u32 %v855, 2147483648
        %v1235 = vor.u32 1.1754944e-38, %v1234
        %v1236 = vsel %vm1233, %v1235, %v1231
        %v1237 = vmul.f32 1.0, %v1236
        %v1238 = vrcp.pop %v856
        %v1239 = vmul.f32 %v856, %v1238
        %v1240 = vsub.f32 1.0, %v1239
        %v1241 = vmul.f32 %v1238, %v1240
        %v1242 = vadd.f32 %v1238, %v1241
        %vm1243 = vweird.f32 %v856
        %vm1244 = vweird.f32 %v1238
        %vm1245 = vmor %vm1243, %vm1244
        %v1246 = vsel %vm1245, %v1238, %v1242
        %v1247 = vand.u32 2147483647, %v856
        %vm1248 = vcmp.eq.f32.partialorder %v1247, 8.507059e+37
        %v1249 = vand.u32 %v856, 2147483648
        %v1250 = vor.u32 1.1754944e-38, %v1249
        %v1251 = vsel %vm1248, %v1250, %v1246
        %v1252 = vmul.f32 1.0, %v1251
        %v1253 = vrcp.pop %v857
        %v1254 = vmul.f32 %v857, %v1253
        %v1255 = vsub.f32 1.0, %v1254
        %v1256 = vmul.f32 %v1253, %v1255
        %v1257 = vadd.f32 %v1253, %v1256
        %vm1258 = vweird.f32 %v857
        %vm1259 = vweird.f32 %v1253
        %vm1260 = vmor %vm1258, %vm1259
        %v1261 = vsel %vm1260, %v1253, %v1257
        %v1262 = vand.u32 2147483647, %v857
        %vm1263 = vcmp.eq.f32.partialorder %v1262, 8.507059e+37
        %v1264 = vand.u32 %v857, 2147483648
        %v1265 = vor.u32 1.1754944e-38, %v1264
        %v1266 = vsel %vm1263, %v1265, %v1261
        %v1267 = vmul.f32 1.0, %v1266
        %v1268 = vrcp.pop %v858
        %v1269 = vmul.f32 %v858, %v1268
        %v1270 = vsub.f32 1.0, %v1269
        %v1271 = vmul.f32 %v1268, %v1270
        %v1272 = vadd.f32 %v1268, %v1271
        %vm1273 = vweird.f32 %v858
        %vm1274 = vweird.f32 %v1268
        %vm1275 = vmor %vm1273, %vm1274
        %v1276 = vsel %vm1275, %v1268, %v1272
        %v1277 = vand.u32 2147483647, %v858
        %vm1278 = vcmp.eq.f32.partialorder %v1277, 8.507059e+37
        %v1279 = vand.u32 %v858, 2147483648
        %v1280 = vor.u32 1.1754944e-38, %v1279
        %v1281 = vsel %vm1278, %v1280, %v1276
        %v1282 = vmul.f32 1.0, %v1281
        %v1283 = vrcp.pop %v859
        %v1284 = vmul.f32 %v859, %v1283
        %v1285 = vsub.f32 1.0, %v1284
        %v1286 = vmul.f32 %v1283, %v1285
        %v1287 = vadd.f32 %v1283, %v1286
        %vm1288 = vweird.f32 %v859
        %vm1289 = vweird.f32 %v1283
        %vm1290 = vmor %vm1288, %vm1289
        %v1291 = vsel %vm1290, %v1283, %v1287
        %v1292 = vand.u32 2147483647, %v859
        %vm1293 = vcmp.eq.f32.partialorder %v1292, 8.507059e+37
        %v1294 = vand.u32 %v859, 2147483648
        %v1295 = vor.u32 1.1754944e-38, %v1294
        %v1296 = vsel %vm1293, %v1295, %v1291
        %v1297 = vmul.f32 1.0, %v1296
        %v1298 = vrcp.pop %v860
        %v1299 = vmul.f32 %v860, %v1298
        %v1300 = vsub.f32 1.0, %v1299
        %v1301 = vmul.f32 %v1298, %v1300
        %v1302 = vadd.f32 %v1298, %v1301
        %vm1303 = vweird.f32 %v860
        %vm1304 = vweird.f32 %v1298
        %vm1305 = vmor %vm1303, %vm1304
        %v1306 = vsel %vm1305, %v1298, %v1302
        %v1307 = vand.u32 2147483647, %v860
        %vm1308 = vcmp.eq.f32.partialorder %v1307, 8.507059e+37
        %v1309 = vand.u32 %v860, 2147483648
        %v1310 = vor.u32 1.1754944e-38, %v1309
        %v1311 = vsel %vm1308, %v1310, %v1306
        %v1312 = vmul.f32 1.0, %v1311
        %v1313 = vrcp.pop %v861
        %v1314 = vmul.f32 %v861, %v1313
        %v1315 = vsub.f32 1.0, %v1314
        %v1316 = vmul.f32 %v1313, %v1315
        %v1317 = vadd.f32 %v1313, %v1316
        %vm1318 = vweird.f32 %v861
        %vm1319 = vweird.f32 %v1313
        %vm1320 = vmor %vm1318, %vm1319
        %v1321 = vsel %vm1320, %v1313, %v1317
        %v1322 = vand.u32 2147483647, %v861
        %vm1323 = vcmp.eq.f32.partialorder %v1322, 8.507059e+37
        %v1324 = vand.u32 %v861, 2147483648
        %v1325 = vor.u32 1.1754944e-38, %v1324
        %v1326 = vsel %vm1323, %v1325, %v1321
        %v1327 = vmul.f32 1.0, %v1326
        %v1328 = vrcp.pop %v862
        %v1329 = vmul.f32 %v862, %v1328
        %v1330 = vsub.f32 1.0, %v1329
        %v1331 = vmul.f32 %v1328, %v1330
        %v1332 = vadd.f32 %v1328, %v1331
        %vm1333 = vweird.f32 %v862
        %vm1334 = vweird.f32 %v1328
        %vm1335 = vmor %vm1333, %vm1334
        %v1336 = vsel %vm1335, %v1328, %v1332
        %v1337 = vand.u32 2147483647, %v862
        %vm1338 = vcmp.eq.f32.partialorder %v1337, 8.507059e+37
        %v1339 = vand.u32 %v862, 2147483648
        %v1340 = vor.u32 1.1754944e-38, %v1339
        %v1341 = vsel %vm1338, %v1340, %v1336
        %v1342 = vmul.f32 1.0, %v1341
        %v1343 = vmul.f32 %v703, %v877
        %v1344 = vmul.f32 %v704, %v892
        %v1345 = vmul.f32 %v705, %v907
        %v1346 = vmul.f32 %v706, %v922
        %v1347 = vmul.f32 %v707, %v937
        %v1348 = vmul.f32 %v708, %v952
        %v1349 = vmul.f32 %v709, %v967
        %v1350 = vmul.f32 %v710, %v982
        %v1351 = vmul.f32 %v711, %v997
        %v1352 = vmul.f32 %v712, %v1012
        %v1353 = vmul.f32 %v713, %v1027
        %v1354 = vmul.f32 %v714, %v1042
        %v1355 = vmul.f32 %v715, %v1057
        %v1356 = vmul.f32 %v716, %v1072
        %v1357 = vmul.f32 %v717, %v1087
        %v1358 = vmul.f32 %v718, %v1102
        %v1359 = vmul.f32 %v719, %v1117
        %v1360 = vmul.f32 %v720, %v1132
        %v1361 = vmul.f32 %v721, %v1147
        %v1362 = vmul.f32 %v722, %v1162
        %v1363 = vmul.f32 %v723, %v1177
        %v1364 = vmul.f32 %v724, %v1192
        %v1365 = vmul.f32 %v725, %v1207
        %v1366 = vmul.f32 %v726, %v1222
        %v1367 = vmul.f32 %v727, %v1237
        %v1368 = vmul.f32 %v728, %v1252
        %v1369 = vmul.f32 %v729, %v1267
        %v1370 = vmul.f32 %v730, %v1282
        %v1371 = vmul.f32 %v731, %v1297
        %v1372 = vmul.f32 %v732, %v1312
        %v1373 = vmul.f32 %v733, %v1327
        %v1374 = vmul.f32 %v734, %v1342
        %v1375 = vrot.slane %v1343, 7
        %v1376 = vrot.slane %v1344, 7
        %v1377 = vrot.slane %v1345, 7
        %v1378 = vrot.slane %v1346, 7
        %v1379 = vrot.slane %v1347, 7
        %v1380 = vrot.slane %v1348, 7
        %v1381 = vrot.slane %v1349, 7
        %v1382 = vrot.slane %v1350, 7
        %v1383 = vrot.slane %v1351, 7
        %v1384 = vrot.slane %v1352, 7
        %v1385 = vrot.slane %v1353, 7
        %v1386 = vrot.slane %v1354, 7
        %v1387 = vrot.slane %v1355, 7
        %v1388 = vrot.slane %v1356, 7
        %v1389 = vrot.slane %v1357, 7
        %v1390 = vrot.slane %v1358, 7
        %v1391 = vrot.slane %v1359, 7
        %v1392 = vrot.slane %v1360, 7
        %v1393 = vrot.slane %v1361, 7
        %v1394 = vrot.slane %v1362, 7
        %v1395 = vrot.slane %v1363, 7
        %v1396 = vrot.slane %v1364, 7
        %v1397 = vrot.slane %v1365, 7
        %v1398 = vrot.slane %v1366, 7
        %v1399 = vrot.slane %v1367, 7
        %v1400 = vrot.slane %v1368, 7
        %v1401 = vrot.slane %v1369, 7
        %v1402 = vrot.slane %v1370, 7
        %v1403 = vrot.slane %v1371, 7
        %v1404 = vrot.slane %v1372, 7
        %v1405 = vrot.slane %v1373, 7
        %v1406 = vrot.slane %v1374, 7
        %v1407 = vlaneseq
        %v1408 = vshrl.u32 %v1407, 7
        %vm1409 = vcmp.lt.s32.totalorder %v1408, 1
        %v1410 = vsel %vm1409, %v1405, %v1406
        %v1411 = vsel %vm1409, %v1404, %v1405
        %v1412 = vsel %vm1409, %v1403, %v1404
        %v1413 = vsel %vm1409, %v1402, %v1403
        %v1414 = vsel %vm1409, %v1401, %v1402
        %v1415 = vsel %vm1409, %v1400, %v1401
        %v1416 = vsel %vm1409, %v1399, %v1400
        %v1417 = vsel %vm1409, %v1398, %v1399
        %v1418 = vsel %vm1409, %v1397, %v1398
        %v1419 = vsel %vm1409, %v1396, %v1397
        %v1420 = vsel %vm1409, %v1395, %v1396
        %v1421 = vsel %vm1409, %v1394, %v1395
        %v1422 = vsel %vm1409, %v1393, %v1394
        %v1423 = vsel %vm1409, %v1392, %v1393
        %v1424 = vsel %vm1409, %v1391, %v1392
        %v1425 = vsel %vm1409, %v1390, %v1391
        %v1426 = vsel %vm1409, %v1389, %v1390
        %v1427 = vsel %vm1409, %v1388, %v1389
        %v1428 = vsel %vm1409, %v1387, %v1388
        %v1429 = vsel %vm1409, %v1386, %v1387
        %v1430 = vsel %vm1409, %v1385, %v1386
        %v1431 = vsel %vm1409, %v1384, %v1385
        %v1432 = vsel %vm1409, %v1383, %v1384
        %v1433 = vsel %vm1409, %v1382, %v1383
        %v1434 = vsel %vm1409, %v1381, %v1382
        %v1435 = vsel %vm1409, %v1380, %v1381
        %v1436 = vsel %vm1409, %v1379, %v1380
        %v1437 = vsel %vm1409, %v1378, %v1379
        %v1438 = vsel %vm1409, %v1377, %v1378
        %v1439 = vsel %vm1409, %v1376, %v1377
        %v1440 = vsel %vm1409, %v1375, %v1376
        %v1441 = vsel %vm1409, %v1406, %v1375
        %v1442 = vld [vmem:[%s5] sm:$0xff]
        %v1443 = vld [vmem:[%s5 + $0x8] sm:$0xff]
        %v1444 = vld [vmem:[%s5 + $0x10] sm:$0xff]
        %v1445 = vld [vmem:[%s5 + $0x18] sm:$0xff]
        %v1446 = vld [vmem:[%s5 + $0x20] sm:$0xff]
        %v1447 = vld [vmem:[%s5 + $0x28] sm:$0xff]
        %v1448 = vld [vmem:[%s5 + $0x30] sm:$0xff]
        %v1449 = vld [vmem:[%s5 + $0x38] sm:$0xff]
        %v1450 = vld [vmem:[%s5 + $0x40] sm:$0xff]
        %v1451 = vld [vmem:[%s5 + $0x48] sm:$0xff]
        %v1452 = vld [vmem:[%s5 + $0x50] sm:$0xff]
        %v1453 = vld [vmem:[%s5 + $0x58] sm:$0xff]
        %v1454 = vld [vmem:[%s5 + $0x60] sm:$0xff]
        %v1455 = vld [vmem:[%s5 + $0x68] sm:$0xff]
        %v1456 = vld [vmem:[%s5 + $0x70] sm:$0xff]
        %v1457 = vld [vmem:[%s5 + $0x78] sm:$0xff]
        %v1458 = vld [vmem:[%s5 + $0x80] sm:$0xff]
        %v1459 = vld [vmem:[%s5 + $0x88] sm:$0xff]
        %v1460 = vld [vmem:[%s5 + $0x90] sm:$0xff]
        %v1461 = vld [vmem:[%s5 + $0x98] sm:$0xff]
        %v1462 = vld [vmem:[%s5 + $0xa0] sm:$0xff]
        %v1463 = vld [vmem:[%s5 + $0xa8] sm:$0xff]
        %v1464 = vld [vmem:[%s5 + $0xb0] sm:$0xff]
        %v1465 = vld [vmem:[%s5 + $0xb8] sm:$0xff]
        %v1466 = vld [vmem:[%s5 + $0xc0] sm:$0xff]
        %v1467 = vld [vmem:[%s5 + $0xc8] sm:$0xff]
        %v1468 = vld [vmem:[%s5 + $0xd0] sm:$0xff]
        %v1469 = vld [vmem:[%s5 + $0xd8] sm:$0xff]
        %v1470 = vld [vmem:[%s5 + $0xe0] sm:$0xff]
        %v1471 = vld [vmem:[%s5 + $0xe8] sm:$0xff]
        %v1472 = vld [vmem:[%s5 + $0xf0] sm:$0xff]
        %v1473 = vld [vmem:[%s5 + $0xf8] sm:$0xff]
        %1475 = vset.pattern.permute.xlu0 0
        %1476 = vperm.xlu0 %1475, %v1442
        %v1477 = vpop.permute.xlu0 %1476
        %1480 = vset.pattern.permute.xlu0 0
        %1481 = vperm.xlu0 %1480, %v1443
        %v1482 = vpop.permute.xlu0 %1481
        %1485 = vset.pattern.permute.xlu0 0
        %1486 = vperm.xlu0 %1485, %v1444
        %v1487 = vpop.permute.xlu0 %1486
        %1490 = vset.pattern.permute.xlu0 0
        %1491 = vperm.xlu0 %1490, %v1445
        %v1492 = vpop.permute.xlu0 %1491
        %1495 = vset.pattern.permute.xlu0 0
        %1496 = vperm.xlu0 %1495, %v1446
        %v1497 = vpop.permute.xlu0 %1496
        %1500 = vset.pattern.permute.xlu0 0
        %1501 = vperm.xlu0 %1500, %v1447
        %v1502 = vpop.permute.xlu0 %1501
        %1505 = vset.pattern.permute.xlu0 0
        %1506 = vperm.xlu0 %1505, %v1448
        %v1507 = vpop.permute.xlu0 %1506
        %1510 = vset.pattern.permute.xlu0 0
        %1511 = vperm.xlu0 %1510, %v1449
        %v1512 = vpop.permute.xlu0 %1511
        %1515 = vset.pattern.permute.xlu0 0
        %1516 = vperm.xlu0 %1515, %v1450
        %v1517 = vpop.permute.xlu0 %1516
        %1520 = vset.pattern.permute.xlu0 0
        %1521 = vperm.xlu0 %1520, %v1451
        %v1522 = vpop.permute.xlu0 %1521
        %1525 = vset.pattern.permute.xlu0 0
        %1526 = vperm.xlu0 %1525, %v1452
        %v1527 = vpop.permute.xlu0 %1526
        %1530 = vset.pattern.permute.xlu0 0
        %1531 = vperm.xlu0 %1530, %v1453
        %v1532 = vpop.permute.xlu0 %1531
        %1535 = vset.pattern.permute.xlu0 0
        %1536 = vperm.xlu0 %1535, %v1454
        %v1537 = vpop.permute.xlu0 %1536
        %1540 = vset.pattern.permute.xlu0 0
        %1541 = vperm.xlu0 %1540, %v1455
        %v1542 = vpop.permute.xlu0 %1541
        %1545 = vset.pattern.permute.xlu0 0
        %1546 = vperm.xlu0 %1545, %v1456
        %v1547 = vpop.permute.xlu0 %1546
        %1550 = vset.pattern.permute.xlu0 0
        %1551 = vperm.xlu0 %1550, %v1457
        %v1552 = vpop.permute.xlu0 %1551
        %1555 = vset.pattern.permute.xlu0 0
        %1556 = vperm.xlu0 %1555, %v1458
        %v1557 = vpop.permute.xlu0 %1556
        %1560 = vset.pattern.permute.xlu0 0
        %1561 = vperm.xlu0 %1560, %v1459
        %v1562 = vpop.permute.xlu0 %1561
        %1565 = vset.pattern.permute.xlu0 0
        %1566 = vperm.xlu0 %1565, %v1460
        %v1567 = vpop.permute.xlu0 %1566
        %1570 = vset.pattern.permute.xlu0 0
        %1571 = vperm.xlu0 %1570, %v1461
        %v1572 = vpop.permute.xlu0 %1571
        %1575 = vset.pattern.permute.xlu0 0
        %1576 = vperm.xlu0 %1575, %v1462
        %v1577 = vpop.permute.xlu0 %1576
        %1580 = vset.pattern.permute.xlu0 0
        %1581 = vperm.xlu0 %1580, %v1463
        %v1582 = vpop.permute.xlu0 %1581
        %1585 = vset.pattern.permute.xlu0 0
        %1586 = vperm.xlu0 %1585, %v1464
        %v1587 = vpop.permute.xlu0 %1586
        %1590 = vset.pattern.permute.xlu0 0
        %1591 = vperm.xlu0 %1590, %v1465
        %v1592 = vpop.permute.xlu0 %1591
        %1595 = vset.pattern.permute.xlu0 0
        %1596 = vperm.xlu0 %1595, %v1466
        %v1597 = vpop.permute.xlu0 %1596
        %1600 = vset.pattern.permute.xlu0 0
        %1601 = vperm.xlu0 %1600, %v1467
        %v1602 = vpop.permute.xlu0 %1601
        %1605 = vset.pattern.permute.xlu0 0
        %1606 = vperm.xlu0 %1605, %v1468
        %v1607 = vpop.permute.xlu0 %1606
        %1610 = vset.pattern.permute.xlu0 0
        %1611 = vperm.xlu0 %1610, %v1469
        %v1612 = vpop.permute.xlu0 %1611
        %1615 = vset.pattern.permute.xlu0 0
        %1616 = vperm.xlu0 %1615, %v1470
        %v1617 = vpop.permute.xlu0 %1616
        %1620 = vset.pattern.permute.xlu0 0
        %1621 = vperm.xlu0 %1620, %v1471
        %v1622 = vpop.permute.xlu0 %1621
        %1625 = vset.pattern.permute.xlu0 0
        %1626 = vperm.xlu0 %1625, %v1472
        %v1627 = vpop.permute.xlu0 %1626
        %1630 = vset.pattern.permute.xlu0 0
        %1631 = vperm.xlu0 %1630, %v1473
        %v1632 = vpop.permute.xlu0 %1631
        %v1634 = vmul.f32 %v1411, %v1477
        %v1635 = vmul.f32 %v1410, %v1482
        %v1636 = vmul.f32 %v1441, %v1487
        %v1637 = vmul.f32 %v1440, %v1492
        %v1638 = vmul.f32 %v1439, %v1497
        %v1639 = vmul.f32 %v1438, %v1502
        %v1640 = vmul.f32 %v1437, %v1507
        %v1641 = vmul.f32 %v1436, %v1512
        %v1642 = vmul.f32 %v1435, %v1517
        %v1643 = vmul.f32 %v1434, %v1522
        %v1644 = vmul.f32 %v1433, %v1527
        %v1645 = vmul.f32 %v1432, %v1532
        %v1646 = vmul.f32 %v1431, %v1537
        %v1647 = vmul.f32 %v1430, %v1542
        %v1648 = vmul.f32 %v1429, %v1547
        %v1649 = vmul.f32 %v1428, %v1552
        %v1650 = vmul.f32 %v1427, %v1557
        %v1651 = vmul.f32 %v1426, %v1562
        %v1652 = vmul.f32 %v1425, %v1567
        %v1653 = vmul.f32 %v1424, %v1572
        %v1654 = vmul.f32 %v1423, %v1577
        %v1655 = vmul.f32 %v1422, %v1582
        %v1656 = vmul.f32 %v1421, %v1587
        %v1657 = vmul.f32 %v1420, %v1592
        %v1658 = vmul.f32 %v1419, %v1597
        %v1659 = vmul.f32 %v1418, %v1602
        %v1660 = vmul.f32 %v1417, %v1607
        %v1661 = vmul.f32 %v1416, %v1612
        %v1662 = vmul.f32 %v1415, %v1617
        %v1663 = vmul.f32 %v1414, %v1622
        %v1664 = vmul.f32 %v1413, %v1627
        %v1665 = vmul.f32 %v1412, %v1632
        %v1666 = vpack.c.bf16 %v1635, %v1634
        %v1667 = vpack.c.bf16 %v1637, %v1636
        %v1668 = vpack.c.bf16 %v1639, %v1638
        %v1669 = vpack.c.bf16 %v1641, %v1640
        %v1670 = vpack.c.bf16 %v1643, %v1642
        %v1671 = vpack.c.bf16 %v1645, %v1644
        %v1672 = vpack.c.bf16 %v1647, %v1646
        %v1673 = vpack.c.bf16 %v1649, %v1648
        %v1674 = vpack.c.bf16 %v1651, %v1650
        %v1675 = vpack.c.bf16 %v1653, %v1652
        %v1676 = vpack.c.bf16 %v1655, %v1654
        %v1677 = vpack.c.bf16 %v1657, %v1656
        %v1678 = vpack.c.bf16 %v1659, %v1658
        %v1679 = vpack.c.bf16 %v1661, %v1660
        %v1680 = vpack.c.bf16 %v1663, %v1662
        %v1681 = vpack.c.bf16 %v1665, %v1664
        %v1682 = vld [vmem:[%s6] sm:$0xf]
        %v1683 = vld [vmem:[%s6 + $0x4] sm:$0xf]
        %v1684 = vld [vmem:[%s6 + $0x8] sm:$0xf]
        %v1685 = vld [vmem:[%s6 + $0xc] sm:$0xf]
        %1686 = vset.pattern.permute.xlu0 1
        %1687 = vperm.xlu0 %1686, %v1442
        %v1688 = vpop.permute.xlu0 %1687
        %1690 = vset.pattern.permute.xlu0 1
        %1691 = vperm.xlu0 %1690, %v1443
        %v1692 = vpop.permute.xlu0 %1691
        %1694 = vset.pattern.permute.xlu0 1
        %1695 = vperm.xlu0 %1694, %v1444
        %v1696 = vpop.permute.xlu0 %1695
        %1698 = vset.pattern.permute.xlu0 1
        %1699 = vperm.xlu0 %1698, %v1445
        %v1700 = vpop.permute.xlu0 %1699
        %1702 = vset.pattern.permute.xlu0 1
        %1703 = vperm.xlu0 %1702, %v1446
        %v1704 = vpop.permute.xlu0 %1703
        %1706 = vset.pattern.permute.xlu0 1
        %1707 = vperm.xlu0 %1706, %v1447
        %v1708 = vpop.permute.xlu0 %1707
        %1710 = vset.pattern.permute.xlu0 1
        %1711 = vperm.xlu0 %1710, %v1448
        %v1712 = vpop.permute.xlu0 %1711
        %1714 = vset.pattern.permute.xlu0 1
        %1715 = vperm.xlu0 %1714, %v1449
        %v1716 = vpop.permute.xlu0 %1715
        %1718 = vset.pattern.permute.xlu0 1
        %1719 = vperm.xlu0 %1718, %v1450
        %v1720 = vpop.permute.xlu0 %1719
        %1722 = vset.pattern.permute.xlu0 1
        %1723 = vperm.xlu0 %1722, %v1451
        %v1724 = vpop.permute.xlu0 %1723
        %1726 = vset.pattern.permute.xlu0 1
        %1727 = vperm.xlu0 %1726, %v1452
        %v1728 = vpop.permute.xlu0 %1727
        %1730 = vset.pattern.permute.xlu0 1
        %1731 = vperm.xlu0 %1730, %v1453
        %v1732 = vpop.permute.xlu0 %1731
        %1734 = vset.pattern.permute.xlu0 1
        %1735 = vperm.xlu0 %1734, %v1454
        %v1736 = vpop.permute.xlu0 %1735
        %1738 = vset.pattern.permute.xlu0 1
        %1739 = vperm.xlu0 %1738, %v1455
        %v1740 = vpop.permute.xlu0 %1739
        %1742 = vset.pattern.permute.xlu0 1
        %1743 = vperm.xlu0 %1742, %v1456
        %v1744 = vpop.permute.xlu0 %1743
        %1746 = vset.pattern.permute.xlu0 1
        %1747 = vperm.xlu0 %1746, %v1457
        %v1748 = vpop.permute.xlu0 %1747
        %1750 = vset.pattern.permute.xlu0 1
        %1751 = vperm.xlu0 %1750, %v1458
        %v1752 = vpop.permute.xlu0 %1751
        %1754 = vset.pattern.permute.xlu0 1
        %1755 = vperm.xlu0 %1754, %v1459
        %v1756 = vpop.permute.xlu0 %1755
        %1758 = vset.pattern.permute.xlu0 1
        %1759 = vperm.xlu0 %1758, %v1460
        %v1760 = vpop.permute.xlu0 %1759
        %1762 = vset.pattern.permute.xlu0 1
        %1763 = vperm.xlu0 %1762, %v1461
        %v1764 = vpop.permute.xlu0 %1763
        %1766 = vset.pattern.permute.xlu0 1
        %1767 = vperm.xlu0 %1766, %v1462
        %v1768 = vpop.permute.xlu0 %1767
        %1770 = vset.pattern.permute.xlu0 1
        %1771 = vperm.xlu0 %1770, %v1463
        %v1772 = vpop.permute.xlu0 %1771
        %1774 = vset.pattern.permute.xlu0 1
        %1775 = vperm.xlu0 %1774, %v1464
        %v1776 = vpop.permute.xlu0 %1775
        %1778 = vset.pattern.permute.xlu0 1
        %1779 = vperm.xlu0 %1778, %v1465
        %v1780 = vpop.permute.xlu0 %1779
        %1782 = vset.pattern.permute.xlu0 1
        %1783 = vperm.xlu0 %1782, %v1466
        %v1784 = vpop.permute.xlu0 %1783
        %1786 = vset.pattern.permute.xlu0 1
        %1787 = vperm.xlu0 %1786, %v1467
        %v1788 = vpop.permute.xlu0 %1787
        %1790 = vset.pattern.permute.xlu0 1
        %1791 = vperm.xlu0 %1790, %v1468
        %v1792 = vpop.permute.xlu0 %1791
        %1794 = vset.pattern.permute.xlu0 1
        %1795 = vperm.xlu0 %1794, %v1469
        %v1796 = vpop.permute.xlu0 %1795
        %1798 = vset.pattern.permute.xlu0 1
        %1799 = vperm.xlu0 %1798, %v1470
        %v1800 = vpop.permute.xlu0 %1799
        %1802 = vset.pattern.permute.xlu0 1
        %1803 = vperm.xlu0 %1802, %v1471
        %v1804 = vpop.permute.xlu0 %1803
        %1806 = vset.pattern.permute.xlu0 1
        %1807 = vperm.xlu0 %1806, %v1472
        %v1808 = vpop.permute.xlu0 %1807
        %1810 = vset.pattern.permute.xlu0 1
        %1811 = vperm.xlu0 %1810, %v1473
        %v1812 = vpop.permute.xlu0 %1811
        %v1814 = vmul.f32 %v1373, %v1688
        %v1815 = vmul.f32 %v1374, %v1692
        %v1816 = vmul.f32 %v1343, %v1696
        %v1817 = vmul.f32 %v1344, %v1700
        %v1818 = vmul.f32 %v1345, %v1704
        %v1819 = vmul.f32 %v1346, %v1708
        %v1820 = vmul.f32 %v1347, %v1712
        %v1821 = vmul.f32 %v1348, %v1716
        %v1822 = vmul.f32 %v1349, %v1720
        %v1823 = vmul.f32 %v1350, %v1724
        %v1824 = vmul.f32 %v1351, %v1728
        %v1825 = vmul.f32 %v1352, %v1732
        %v1826 = vmul.f32 %v1353, %v1736
        %v1827 = vmul.f32 %v1354, %v1740
        %v1828 = vmul.f32 %v1355, %v1744
        %v1829 = vmul.f32 %v1356, %v1748
        %v1830 = vmul.f32 %v1357, %v1752
        %v1831 = vmul.f32 %v1358, %v1756
        %v1832 = vmul.f32 %v1359, %v1760
        %v1833 = vmul.f32 %v1360, %v1764
        %v1834 = vmul.f32 %v1361, %v1768
        %v1835 = vmul.f32 %v1362, %v1772
        %v1836 = vmul.f32 %v1363, %v1776
        %v1837 = vmul.f32 %v1364, %v1780
        %v1838 = vmul.f32 %v1365, %v1784
        %v1839 = vmul.f32 %v1366, %v1788
        %v1840 = vmul.f32 %v1367, %v1792
        %v1841 = vmul.f32 %v1368, %v1796
        %v1842 = vmul.f32 %v1369, %v1800
        %v1843 = vmul.f32 %v1370, %v1804
        %v1844 = vmul.f32 %v1371, %v1808
        %v1845 = vmul.f32 %v1372, %v1812
        %v1846 = vpack.c.bf16 %v1815, %v1814
        %v1847 = vpack.c.bf16 %v1817, %v1816
        %v1848 = vpack.c.bf16 %v1819, %v1818
        %v1849 = vpack.c.bf16 %v1821, %v1820
        %v1850 = vpack.c.bf16 %v1823, %v1822
        %v1851 = vpack.c.bf16 %v1825, %v1824
        %v1852 = vpack.c.bf16 %v1827, %v1826
        %v1853 = vpack.c.bf16 %v1829, %v1828
        %v1854 = vpack.c.bf16 %v1831, %v1830
        %v1855 = vpack.c.bf16 %v1833, %v1832
        %v1856 = vpack.c.bf16 %v1835, %v1834
        %v1857 = vpack.c.bf16 %v1837, %v1836
        %v1858 = vpack.c.bf16 %v1839, %v1838
        %v1859 = vpack.c.bf16 %v1841, %v1840
        %v1860 = vpack.c.bf16 %v1843, %v1842
        %v1861 = vpack.c.bf16 %v1845, %v1844
        %s1862 = scalar_lea.vmem %s6, 16
        %v1863 = vld [vmem:[%s1862] sm:$0xf]
        %v1864 = vld [vmem:[%s1862 + $0x4] sm:$0xf]
        %v1865 = vld [vmem:[%s1862 + $0x8] sm:$0xf]
        %v1866 = vld [vmem:[%s1862 + $0xc] sm:$0xf]
        %v1871 = vunpack.c.l.b16 %v1863
        %v1872 = vunpack.c.l.b16 %v1864
        %v1873 = vunpack.c.l.b16 %v1865
        %v1874 = vunpack.c.l.b16 %v1866
        %v1875 = vpack.c.b16 %v1872, %v1871
        %v1876 = vpack.c.b16 %v1874, %v1873
        %v1880 = vsel %vm378, %v1846, 0
        %v1883 = vsel %vm378, %v1847, 0
        %v1886 = vsel %vm378, %v1848, 0
        %v1889 = vsel %vm378, %v1849, 0
        %v1892 = vsel %vm378, %v1850, 0
        %v1895 = vsel %vm378, %v1851, 0
        %v1898 = vsel %vm378, %v1852, 0
        %v1901 = vsel %vm378, %v1853, 0
        %v1904 = vsel %vm378, %v1854, 0
        %v1907 = vsel %vm378, %v1855, 0
        %v1910 = vsel %vm378, %v1856, 0
        %v1913 = vsel %vm378, %v1857, 0
        %v1916 = vsel %vm378, %v1858, 0
        %v1919 = vsel %vm378, %v1859, 0
        %v1922 = vsel %vm378, %v1860, 0
        %v1925 = vsel %vm378, %v1861, 0
        %1927 = vmatpush.bf16.msra.mxu0 0
        %1928 = vmatpush.bf16.msra.mxu0 0
        %1929 = vmatpush.bf16.msra.mxu0 0
        %1930 = vmatpush.bf16.msra.mxu0 0
        %1931 = vmatpush.bf16.msra.mxu0 0
        %1932 = vmatpush.bf16.msra.mxu0 0
        %1933 = vmatpush.bf16.msra.mxu0 %v1876
        %1934 = vmatpush.bf16.msra.mxu0 %v1875
        %1935 = vmatmul.bf16.gmra.mxu0 %v1880
        %v1936 = vpop.f32.mrf.mxu0
        %v1937 = vadd.f32 0.0, %v1936
        %v1938 = vpop.f32.mrf.mxu0
        %v1939 = vadd.f32 0.0, %v1938
        %1940 = vmatmul.bf16.gmra.mxu0 %v1883
        %v1941 = vpop.f32.mrf.mxu0
        %v1942 = vadd.f32 0.0, %v1941
        %v1943 = vpop.f32.mrf.mxu0
        %v1944 = vadd.f32 0.0, %v1943
        %1945 = vmatmul.bf16.gmra.mxu0 %v1886
        %v1946 = vpop.f32.mrf.mxu0
        %v1947 = vadd.f32 0.0, %v1946
        %v1948 = vpop.f32.mrf.mxu0
        %v1949 = vadd.f32 0.0, %v1948
        %1950 = vmatmul.bf16.gmra.mxu0 %v1889
        %v1951 = vpop.f32.mrf.mxu0
        %v1952 = vadd.f32 0.0, %v1951
        %v1953 = vpop.f32.mrf.mxu0
        %v1954 = vadd.f32 0.0, %v1953
        %1955 = vmatmul.bf16.gmra.mxu0 %v1892
        %v1956 = vpop.f32.mrf.mxu0
        %v1957 = vadd.f32 0.0, %v1956
        %v1958 = vpop.f32.mrf.mxu0
        %v1959 = vadd.f32 0.0, %v1958
        %1960 = vmatmul.bf16.gmra.mxu0 %v1895
        %v1961 = vpop.f32.mrf.mxu0
        %v1962 = vadd.f32 0.0, %v1961
        %v1963 = vpop.f32.mrf.mxu0
        %v1964 = vadd.f32 0.0, %v1963
        %1965 = vmatmul.bf16.gmra.mxu0 %v1898
        %v1966 = vpop.f32.mrf.mxu0
        %v1967 = vadd.f32 0.0, %v1966
        %v1968 = vpop.f32.mrf.mxu0
        %v1969 = vadd.f32 0.0, %v1968
        %1970 = vmatmul.bf16.gmra.mxu0 %v1901
        %v1971 = vpop.f32.mrf.mxu0
        %v1972 = vadd.f32 0.0, %v1971
        %v1973 = vpop.f32.mrf.mxu0
        %v1974 = vadd.f32 0.0, %v1973
        %1975 = vmatmul.bf16.gmra.mxu0 %v1904
        %v1976 = vpop.f32.mrf.mxu0
        %v1977 = vadd.f32 0.0, %v1976
        %v1978 = vpop.f32.mrf.mxu0
        %v1979 = vadd.f32 0.0, %v1978
        %1980 = vmatmul.bf16.gmra.mxu0 %v1907
        %v1981 = vpop.f32.mrf.mxu0
        %v1982 = vadd.f32 0.0, %v1981
        %v1983 = vpop.f32.mrf.mxu0
        %v1984 = vadd.f32 0.0, %v1983
        %1985 = vmatmul.bf16.gmra.mxu0 %v1910
        %v1986 = vpop.f32.mrf.mxu0
        %v1987 = vadd.f32 0.0, %v1986
        %v1988 = vpop.f32.mrf.mxu0
        %v1989 = vadd.f32 0.0, %v1988
        %1990 = vmatmul.bf16.gmra.mxu0 %v1913
        %v1991 = vpop.f32.mrf.mxu0
        %v1992 = vadd.f32 0.0, %v1991
        %v1993 = vpop.f32.mrf.mxu0
        %v1994 = vadd.f32 0.0, %v1993
        %1995 = vmatmul.bf16.gmra.mxu0 %v1916
        %v1996 = vpop.f32.mrf.mxu0
        %v1997 = vadd.f32 0.0, %v1996
        %v1998 = vpop.f32.mrf.mxu0
        %v1999 = vadd.f32 0.0, %v1998
        %2000 = vmatmul.bf16.gmra.mxu0 %v1919
        %v2001 = vpop.f32.mrf.mxu0
        %v2002 = vadd.f32 0.0, %v2001
        %v2003 = vpop.f32.mrf.mxu0
        %v2004 = vadd.f32 0.0, %v2003
        %2005 = vmatmul.bf16.gmra.mxu0 %v1922
        %v2006 = vpop.f32.mrf.mxu0
        %v2007 = vadd.f32 0.0, %v2006
        %v2008 = vpop.f32.mrf.mxu0
        %v2009 = vadd.f32 0.0, %v2008
        %2010 = vmatmul.bf16.gmra.mxu0 %v1925
        %v2011 = vpop.f32.mrf.mxu0
        %v2012 = vadd.f32 0.0, %v2011
        %v2013 = vpop.f32.mrf.mxu0
        %v2014 = vadd.f32 0.0, %v2013
        %2015 = vdwg.mxu0
        %v2020 = vunpack.c.l.b16 %v1682
        %v2021 = vunpack.c.l.b16 %v1683
        %v2022 = vunpack.c.l.b16 %v1684
        %v2023 = vunpack.c.l.b16 %v1685
        %v2024 = vpack.c.b16 %v2021, %v2020
        %v2025 = vpack.c.b16 %v2023, %v2022
        %v2029 = vsel %vm378, %v1666, 0
        %v2032 = vsel %vm378, %v1667, 0
        %v2035 = vsel %vm378, %v1668, 0
        %v2038 = vsel %vm378, %v1669, 0
        %v2041 = vsel %vm378, %v1670, 0
        %v2044 = vsel %vm378, %v1671, 0
        %v2047 = vsel %vm378, %v1672, 0
        %v2050 = vsel %vm378, %v1673, 0
        %v2053 = vsel %vm378, %v1674, 0
        %v2056 = vsel %vm378, %v1675, 0
        %v2059 = vsel %vm378, %v1676, 0
        %v2062 = vsel %vm378, %v1677, 0
        %v2065 = vsel %vm378, %v1678, 0
        %v2068 = vsel %vm378, %v1679, 0
        %v2071 = vsel %vm378, %v1680, 0
        %v2074 = vsel %vm378, %v1681, 0
        %2076 = vmatpush.bf16.msra.mxu0 0
        %2077 = vmatpush.bf16.msra.mxu0 0
        %2078 = vmatpush.bf16.msra.mxu0 0
        %2079 = vmatpush.bf16.msra.mxu0 0
        %2080 = vmatpush.bf16.msra.mxu0 0
        %2081 = vmatpush.bf16.msra.mxu0 0
        %2082 = vmatpush.bf16.msra.mxu0 %v2025
        %2083 = vmatpush.bf16.msra.mxu0 %v2024
        %2084 = vmatmul.bf16.gmra.mxu0 %v2029
        %v2085 = vpop.f32.mrf.mxu0
        %v2086 = vadd.f32 %v1937, %v2085
        %v2087 = vpop.f32.mrf.mxu0
        %v2088 = vadd.f32 %v1939, %v2087
        %2089 = vmatmul.bf16.gmra.mxu0 %v2032
        %v2090 = vpop.f32.mrf.mxu0
        %v2091 = vadd.f32 %v1942, %v2090
        %v2092 = vpop.f32.mrf.mxu0
        %v2093 = vadd.f32 %v1944, %v2092
        %2094 = vmatmul.bf16.gmra.mxu0 %v2035
        %v2095 = vpop.f32.mrf.mxu0
        %v2096 = vadd.f32 %v1947, %v2095
        %v2097 = vpop.f32.mrf.mxu0
        %v2098 = vadd.f32 %v1949, %v2097
        %2099 = vmatmul.bf16.gmra.mxu0 %v2038
        %v2100 = vpop.f32.mrf.mxu0
        %v2101 = vadd.f32 %v1952, %v2100
        %v2102 = vpop.f32.mrf.mxu0
        %v2103 = vadd.f32 %v1954, %v2102
        %2104 = vmatmul.bf16.gmra.mxu0 %v2041
        %v2105 = vpop.f32.mrf.mxu0
        %v2106 = vadd.f32 %v1957, %v2105
        %v2107 = vpop.f32.mrf.mxu0
        %v2108 = vadd.f32 %v1959, %v2107
        %2109 = vmatmul.bf16.gmra.mxu0 %v2044
        %v2110 = vpop.f32.mrf.mxu0
        %v2111 = vadd.f32 %v1962, %v2110
        %v2112 = vpop.f32.mrf.mxu0
        %v2113 = vadd.f32 %v1964, %v2112
        %2114 = vmatmul.bf16.gmra.mxu0 %v2047
        %v2115 = vpop.f32.mrf.mxu0
        %v2116 = vadd.f32 %v1967, %v2115
        %v2117 = vpop.f32.mrf.mxu0
        %v2118 = vadd.f32 %v1969, %v2117
        %2119 = vmatmul.bf16.gmra.mxu0 %v2050
        %v2120 = vpop.f32.mrf.mxu0
        %v2121 = vadd.f32 %v1972, %v2120
        %v2122 = vpop.f32.mrf.mxu0
        %v2123 = vadd.f32 %v1974, %v2122
        %2124 = vmatmul.bf16.gmra.mxu0 %v2053
        %v2125 = vpop.f32.mrf.mxu0
        %v2126 = vadd.f32 %v1977, %v2125
        %v2127 = vpop.f32.mrf.mxu0
        %v2128 = vadd.f32 %v1979, %v2127
        %2129 = vmatmul.bf16.gmra.mxu0 %v2056
        %v2130 = vpop.f32.mrf.mxu0
        %v2131 = vadd.f32 %v1982, %v2130
        %v2132 = vpop.f32.mrf.mxu0
        %v2133 = vadd.f32 %v1984, %v2132
        %2134 = vmatmul.bf16.gmra.mxu0 %v2059
        %v2135 = vpop.f32.mrf.mxu0
        %v2136 = vadd.f32 %v1987, %v2135
        %v2137 = vpop.f32.mrf.mxu0
        %v2138 = vadd.f32 %v1989, %v2137
        %2139 = vmatmul.bf16.gmra.mxu0 %v2062
        %v2140 = vpop.f32.mrf.mxu0
        %v2141 = vadd.f32 %v1992, %v2140
        %v2142 = vpop.f32.mrf.mxu0
        %v2143 = vadd.f32 %v1994, %v2142
        %2144 = vmatmul.bf16.gmra.mxu0 %v2065
        %v2145 = vpop.f32.mrf.mxu0
        %v2146 = vadd.f32 %v1997, %v2145
        %v2147 = vpop.f32.mrf.mxu0
        %v2148 = vadd.f32 %v1999, %v2147
        %2149 = vmatmul.bf16.gmra.mxu0 %v2068
        %v2150 = vpop.f32.mrf.mxu0
        %v2151 = vadd.f32 %v2002, %v2150
        %v2152 = vpop.f32.mrf.mxu0
        %v2153 = vadd.f32 %v2004, %v2152
        %2154 = vmatmul.bf16.gmra.mxu0 %v2071
        %v2155 = vpop.f32.mrf.mxu0
        %v2156 = vadd.f32 %v2007, %v2155
        %v2157 = vpop.f32.mrf.mxu0
        %v2158 = vadd.f32 %v2009, %v2157
        %2159 = vmatmul.bf16.gmra.mxu0 %v2074
        %v2160 = vpop.f32.mrf.mxu0
        %v2161 = vadd.f32 %v2012, %v2160
        %v2162 = vpop.f32.mrf.mxu0
        %v2163 = vadd.f32 %v2014, %v2162
        %2164 = vdwg.mxu0
        %v2165 = vrot.slane %v1343, 1
        %v2166 = vrot.slane %v1344, 1
        %v2167 = vrot.slane %v1345, 1
        %v2168 = vrot.slane %v1346, 1
        %v2169 = vrot.slane %v1347, 1
        %v2170 = vrot.slane %v1348, 1
        %v2171 = vrot.slane %v1349, 1
        %v2172 = vrot.slane %v1350, 1
        %v2173 = vrot.slane %v1351, 1
        %v2174 = vrot.slane %v1352, 1
        %v2175 = vrot.slane %v1353, 1
        %v2176 = vrot.slane %v1354, 1
        %v2177 = vrot.slane %v1355, 1
        %v2178 = vrot.slane %v1356, 1
        %v2179 = vrot.slane %v1357, 1
        %v2180 = vrot.slane %v1358, 1
        %v2181 = vrot.slane %v1359, 1
        %v2182 = vrot.slane %v1360, 1
        %v2183 = vrot.slane %v1361, 1
        %v2184 = vrot.slane %v1362, 1
        %v2185 = vrot.slane %v1363, 1
        %v2186 = vrot.slane %v1364, 1
        %v2187 = vrot.slane %v1365, 1
        %v2188 = vrot.slane %v1366, 1
        %v2189 = vrot.slane %v1367, 1
        %v2190 = vrot.slane %v1368, 1
        %v2191 = vrot.slane %v1369, 1
        %v2192 = vrot.slane %v1370, 1
        %v2193 = vrot.slane %v1371, 1
        %v2194 = vrot.slane %v1372, 1
        %v2195 = vrot.slane %v1373, 1
        %v2196 = vrot.slane %v1374, 1
        %vm2197 = vcmp.lt.s32.totalorder %v1408, 7
        %v2198 = vsel %vm2197, %v2195, %v2196
        %v2199 = vsel %vm2197, %v2194, %v2195
        %v2200 = vsel %vm2197, %v2193, %v2194
        %v2201 = vsel %vm2197, %v2192, %v2193
        %v2202 = vsel %vm2197, %v2191, %v2192
        %v2203 = vsel %vm2197, %v2190, %v2191
        %v2204 = vsel %vm2197, %v2189, %v2190
        %v2205 = vsel %vm2197, %v2188, %v2189
        %v2206 = vsel %vm2197, %v2187, %v2188
        %v2207 = vsel %vm2197, %v2186, %v2187
        %v2208 = vsel %vm2197, %v2185, %v2186
        %v2209 = vsel %vm2197, %v2184, %v2185
        %v2210 = vsel %vm2197, %v2183, %v2184
        %v2211 = vsel %vm2197, %v2182, %v2183
        %v2212 = vsel %vm2197, %v2181, %v2182
        %v2213 = vsel %vm2197, %v2180, %v2181
        %v2214 = vsel %vm2197, %v2179, %v2180
        %v2215 = vsel %vm2197, %v2178, %v2179
        %v2216 = vsel %vm2197, %v2177, %v2178
        %v2217 = vsel %vm2197, %v2176, %v2177
        %v2218 = vsel %vm2197, %v2175, %v2176
        %v2219 = vsel %vm2197, %v2174, %v2175
        %v2220 = vsel %vm2197, %v2173, %v2174
        %v2221 = vsel %vm2197, %v2172, %v2173
        %v2222 = vsel %vm2197, %v2171, %v2172
        %v2223 = vsel %vm2197, %v2170, %v2171
        %v2224 = vsel %vm2197, %v2169, %v2170
        %v2225 = vsel %vm2197, %v2168, %v2169
        %v2226 = vsel %vm2197, %v2167, %v2168
        %v2227 = vsel %vm2197, %v2166, %v2167
        %v2228 = vsel %vm2197, %v2165, %v2166
        %v2229 = vsel %vm2197, %v2196, %v2165
        %2230 = vset.pattern.permute.xlu0 2
        %2231 = vperm.xlu0 %2230, %v1442
        %v2232 = vpop.permute.xlu0 %2231
        %2234 = vset.pattern.permute.xlu0 2
        %2235 = vperm.xlu0 %2234, %v1443
        %v2236 = vpop.permute.xlu0 %2235
        %2238 = vset.pattern.permute.xlu0 2
        %2239 = vperm.xlu0 %2238, %v1444
        %v2240 = vpop.permute.xlu0 %2239
        %2242 = vset.pattern.permute.xlu0 2
        %2243 = vperm.xlu0 %2242, %v1445
        %v2244 = vpop.permute.xlu0 %2243
        %2246 = vset.pattern.permute.xlu0 2
        %2247 = vperm.xlu0 %2246, %v1446
        %v2248 = vpop.permute.xlu0 %2247
        %2250 = vset.pattern.permute.xlu0 2
        %2251 = vperm.xlu0 %2250, %v1447
        %v2252 = vpop.permute.xlu0 %2251
        %2254 = vset.pattern.permute.xlu0 2
        %2255 = vperm.xlu0 %2254, %v1448
        %v2256 = vpop.permute.xlu0 %2255
        %2258 = vset.pattern.permute.xlu0 2
        %2259 = vperm.xlu0 %2258, %v1449
        %v2260 = vpop.permute.xlu0 %2259
        %2262 = vset.pattern.permute.xlu0 2
        %2263 = vperm.xlu0 %2262, %v1450
        %v2264 = vpop.permute.xlu0 %2263
        %2266 = vset.pattern.permute.xlu0 2
        %2267 = vperm.xlu0 %2266, %v1451
        %v2268 = vpop.permute.xlu0 %2267
        %2270 = vset.pattern.permute.xlu0 2
        %2271 = vperm.xlu0 %2270, %v1452
        %v2272 = vpop.permute.xlu0 %2271
        %2274 = vset.pattern.permute.xlu0 2
        %2275 = vperm.xlu0 %2274, %v1453
        %v2276 = vpop.permute.xlu0 %2275
        %2278 = vset.pattern.permute.xlu0 2
        %2279 = vperm.xlu0 %2278, %v1454
        %v2280 = vpop.permute.xlu0 %2279
        %2282 = vset.pattern.permute.xlu0 2
        %2283 = vperm.xlu0 %2282, %v1455
        %v2284 = vpop.permute.xlu0 %2283
        %2286 = vset.pattern.permute.xlu0 2
        %2287 = vperm.xlu0 %2286, %v1456
        %v2288 = vpop.permute.xlu0 %2287
        %2290 = vset.pattern.permute.xlu0 2
        %2291 = vperm.xlu0 %2290, %v1457
        %v2292 = vpop.permute.xlu0 %2291
        %2294 = vset.pattern.permute.xlu0 2
        %2295 = vperm.xlu0 %2294, %v1458
        %v2296 = vpop.permute.xlu0 %2295
        %2298 = vset.pattern.permute.xlu0 2
        %2299 = vperm.xlu0 %2298, %v1459
        %v2300 = vpop.permute.xlu0 %2299
        %2302 = vset.pattern.permute.xlu0 2
        %2303 = vperm.xlu0 %2302, %v1460
        %v2304 = vpop.permute.xlu0 %2303
        %2306 = vset.pattern.permute.xlu0 2
        %2307 = vperm.xlu0 %2306, %v1461
        %v2308 = vpop.permute.xlu0 %2307
        %2310 = vset.pattern.permute.xlu0 2
        %2311 = vperm.xlu0 %2310, %v1462
        %v2312 = vpop.permute.xlu0 %2311
        %2314 = vset.pattern.permute.xlu0 2
        %2315 = vperm.xlu0 %2314, %v1463
        %v2316 = vpop.permute.xlu0 %2315
        %2318 = vset.pattern.permute.xlu0 2
        %2319 = vperm.xlu0 %2318, %v1464
        %v2320 = vpop.permute.xlu0 %2319
        %2322 = vset.pattern.permute.xlu0 2
        %2323 = vperm.xlu0 %2322, %v1465
        %v2324 = vpop.permute.xlu0 %2323
        %2326 = vset.pattern.permute.xlu0 2
        %2327 = vperm.xlu0 %2326, %v1466
        %v2328 = vpop.permute.xlu0 %2327
        %2330 = vset.pattern.permute.xlu0 2
        %2331 = vperm.xlu0 %2330, %v1467
        %v2332 = vpop.permute.xlu0 %2331
        %2334 = vset.pattern.permute.xlu0 2
        %2335 = vperm.xlu0 %2334, %v1468
        %v2336 = vpop.permute.xlu0 %2335
        %2338 = vset.pattern.permute.xlu0 2
        %2339 = vperm.xlu0 %2338, %v1469
        %v2340 = vpop.permute.xlu0 %2339
        %2342 = vset.pattern.permute.xlu0 2
        %2343 = vperm.xlu0 %2342, %v1470
        %v2344 = vpop.permute.xlu0 %2343
        %2346 = vset.pattern.permute.xlu0 2
        %2347 = vperm.xlu0 %2346, %v1471
        %v2348 = vpop.permute.xlu0 %2347
        %2350 = vset.pattern.permute.xlu0 2
        %2351 = vperm.xlu0 %2350, %v1472
        %v2352 = vpop.permute.xlu0 %2351
        %2354 = vset.pattern.permute.xlu0 2
        %2355 = vperm.xlu0 %2354, %v1473
        %v2356 = vpop.permute.xlu0 %2355
        %v2358 = vmul.f32 %v2198, %v2232
        %v2359 = vmul.f32 %v2229, %v2236
        %v2360 = vmul.f32 %v2228, %v2240
        %v2361 = vmul.f32 %v2227, %v2244
        %v2362 = vmul.f32 %v2226, %v2248
        %v2363 = vmul.f32 %v2225, %v2252
        %v2364 = vmul.f32 %v2224, %v2256
        %v2365 = vmul.f32 %v2223, %v2260
        %v2366 = vmul.f32 %v2222, %v2264
        %v2367 = vmul.f32 %v2221, %v2268
        %v2368 = vmul.f32 %v2220, %v2272
        %v2369 = vmul.f32 %v2219, %v2276
        %v2370 = vmul.f32 %v2218, %v2280
        %v2371 = vmul.f32 %v2217, %v2284
        %v2372 = vmul.f32 %v2216, %v2288
        %v2373 = vmul.f32 %v2215, %v2292
        %v2374 = vmul.f32 %v2214, %v2296
        %v2375 = vmul.f32 %v2213, %v2300
        %v2376 = vmul.f32 %v2212, %v2304
        %v2377 = vmul.f32 %v2211, %v2308
        %v2378 = vmul.f32 %v2210, %v2312
        %v2379 = vmul.f32 %v2209, %v2316
        %v2380 = vmul.f32 %v2208, %v2320
        %v2381 = vmul.f32 %v2207, %v2324
        %v2382 = vmul.f32 %v2206, %v2328
        %v2383 = vmul.f32 %v2205, %v2332
        %v2384 = vmul.f32 %v2204, %v2336
        %v2385 = vmul.f32 %v2203, %v2340
        %v2386 = vmul.f32 %v2202, %v2344
        %v2387 = vmul.f32 %v2201, %v2348
        %v2388 = vmul.f32 %v2200, %v2352
        %v2389 = vmul.f32 %v2199, %v2356
        %v2390 = vpack.c.bf16 %v2359, %v2358
        %v2391 = vpack.c.bf16 %v2361, %v2360
        %v2392 = vpack.c.bf16 %v2363, %v2362
        %v2393 = vpack.c.bf16 %v2365, %v2364
        %v2394 = vpack.c.bf16 %v2367, %v2366
        %v2395 = vpack.c.bf16 %v2369, %v2368
        %v2396 = vpack.c.bf16 %v2371, %v2370
        %v2397 = vpack.c.bf16 %v2373, %v2372
        %v2398 = vpack.c.bf16 %v2375, %v2374
        %v2399 = vpack.c.bf16 %v2377, %v2376
        %v2400 = vpack.c.bf16 %v2379, %v2378
        %v2401 = vpack.c.bf16 %v2381, %v2380
        %v2402 = vpack.c.bf16 %v2383, %v2382
        %v2403 = vpack.c.bf16 %v2385, %v2384
        %v2404 = vpack.c.bf16 %v2387, %v2386
        %v2405 = vpack.c.bf16 %v2389, %v2388
        %s2406 = scalar_lea.vmem %s6, 32
        %v2407 = vld [vmem:[%s2406] sm:$0xf]
        %v2408 = vld [vmem:[%s2406 + $0x4] sm:$0xf]
        %v2409 = vld [vmem:[%s2406 + $0x8] sm:$0xf]
        %v2410 = vld [vmem:[%s2406 + $0xc] sm:$0xf]
        %v2415 = vunpack.c.l.b16 %v2407
        %v2416 = vunpack.c.l.b16 %v2408
        %v2417 = vunpack.c.l.b16 %v2409
        %v2418 = vunpack.c.l.b16 %v2410
        %v2419 = vpack.c.b16 %v2416, %v2415
        %v2420 = vpack.c.b16 %v2418, %v2417
        %v2424 = vsel %vm378, %v2390, 0
        %v2427 = vsel %vm378, %v2391, 0
        %v2430 = vsel %vm378, %v2392, 0
        %v2433 = vsel %vm378, %v2393, 0
        %v2436 = vsel %vm378, %v2394, 0
        %v2439 = vsel %vm378, %v2395, 0
        %v2442 = vsel %vm378, %v2396, 0
        %v2445 = vsel %vm378, %v2397, 0
        %v2448 = vsel %vm378, %v2398, 0
        %v2451 = vsel %vm378, %v2399, 0
        %v2454 = vsel %vm378, %v2400, 0
        %v2457 = vsel %vm378, %v2401, 0
        %v2460 = vsel %vm378, %v2402, 0
        %v2463 = vsel %vm378, %v2403, 0
        %v2466 = vsel %vm378, %v2404, 0
        %v2469 = vsel %vm378, %v2405, 0
        %2471 = vmatpush.bf16.msra.mxu0 0
        %2472 = vmatpush.bf16.msra.mxu0 0
        %2473 = vmatpush.bf16.msra.mxu0 0
        %2474 = vmatpush.bf16.msra.mxu0 0
        %2475 = vmatpush.bf16.msra.mxu0 0
        %2476 = vmatpush.bf16.msra.mxu0 0
        %2477 = vmatpush.bf16.msra.mxu0 %v2420
        %2478 = vmatpush.bf16.msra.mxu0 %v2419
        %2479 = vmatmul.bf16.gmra.mxu0 %v2424
        %v2480 = vpop.f32.mrf.mxu0
        %v2481 = vadd.f32 0.0, %v2480
        %v2482 = vpop.f32.mrf.mxu0
        %v2483 = vadd.f32 0.0, %v2482
        %2484 = vmatmul.bf16.gmra.mxu0 %v2427
        %v2485 = vpop.f32.mrf.mxu0
        %v2486 = vadd.f32 0.0, %v2485
        %v2487 = vpop.f32.mrf.mxu0
        %v2488 = vadd.f32 0.0, %v2487
        %2489 = vmatmul.bf16.gmra.mxu0 %v2430
        %v2490 = vpop.f32.mrf.mxu0
        %v2491 = vadd.f32 0.0, %v2490
        %v2492 = vpop.f32.mrf.mxu0
        %v2493 = vadd.f32 0.0, %v2492
        %2494 = vmatmul.bf16.gmra.mxu0 %v2433
        %v2495 = vpop.f32.mrf.mxu0
        %v2496 = vadd.f32 0.0, %v2495
        %v2497 = vpop.f32.mrf.mxu0
        %v2498 = vadd.f32 0.0, %v2497
        %2499 = vmatmul.bf16.gmra.mxu0 %v2436
        %v2500 = vpop.f32.mrf.mxu0
        %v2501 = vadd.f32 0.0, %v2500
        %v2502 = vpop.f32.mrf.mxu0
        %v2503 = vadd.f32 0.0, %v2502
        %2504 = vmatmul.bf16.gmra.mxu0 %v2439
        %v2505 = vpop.f32.mrf.mxu0
        %v2506 = vadd.f32 0.0, %v2505
        %v2507 = vpop.f32.mrf.mxu0
        %v2508 = vadd.f32 0.0, %v2507
        %2509 = vmatmul.bf16.gmra.mxu0 %v2442
        %v2510 = vpop.f32.mrf.mxu0
        %v2511 = vadd.f32 0.0, %v2510
        %v2512 = vpop.f32.mrf.mxu0
        %v2513 = vadd.f32 0.0, %v2512
        %2514 = vmatmul.bf16.gmra.mxu0 %v2445
        %v2515 = vpop.f32.mrf.mxu0
        %v2516 = vadd.f32 0.0, %v2515
        %v2517 = vpop.f32.mrf.mxu0
        %v2518 = vadd.f32 0.0, %v2517
        %2519 = vmatmul.bf16.gmra.mxu0 %v2448
        %v2520 = vpop.f32.mrf.mxu0
        %v2521 = vadd.f32 0.0, %v2520
        %v2522 = vpop.f32.mrf.mxu0
        %v2523 = vadd.f32 0.0, %v2522
        %2524 = vmatmul.bf16.gmra.mxu0 %v2451
        %v2525 = vpop.f32.mrf.mxu0
        %v2526 = vadd.f32 0.0, %v2525
        %v2527 = vpop.f32.mrf.mxu0
        %v2528 = vadd.f32 0.0, %v2527
        %2529 = vmatmul.bf16.gmra.mxu0 %v2454
        %v2530 = vpop.f32.mrf.mxu0
        %v2531 = vadd.f32 0.0, %v2530
        %v2532 = vpop.f32.mrf.mxu0
        %v2533 = vadd.f32 0.0, %v2532
        %2534 = vmatmul.bf16.gmra.mxu0 %v2457
        %v2535 = vpop.f32.mrf.mxu0
        %v2536 = vadd.f32 0.0, %v2535
        %v2537 = vpop.f32.mrf.mxu0
        %v2538 = vadd.f32 0.0, %v2537
        %2539 = vmatmul.bf16.gmra.mxu0 %v2460
        %v2540 = vpop.f32.mrf.mxu0
        %v2541 = vadd.f32 0.0, %v2540
        %v2542 = vpop.f32.mrf.mxu0
        %v2543 = vadd.f32 0.0, %v2542
        %2544 = vmatmul.bf16.gmra.mxu0 %v2463
        %v2545 = vpop.f32.mrf.mxu0
        %v2546 = vadd.f32 0.0, %v2545
        %v2547 = vpop.f32.mrf.mxu0
        %v2548 = vadd.f32 0.0, %v2547
        %2549 = vmatmul.bf16.gmra.mxu0 %v2466
        %v2550 = vpop.f32.mrf.mxu0
        %v2551 = vadd.f32 0.0, %v2550
        %v2552 = vpop.f32.mrf.mxu0
        %v2553 = vadd.f32 0.0, %v2552
        %2554 = vmatmul.bf16.gmra.mxu0 %v2469
        %v2555 = vpop.f32.mrf.mxu0
        %v2556 = vadd.f32 0.0, %v2555
        %v2557 = vpop.f32.mrf.mxu0
        %v2558 = vadd.f32 0.0, %v2557
        %2559 = vdwg.mxu0
        %v2560 = vadd.f32 %v2086, %v2481
        %v2561 = vadd.f32 %v2088, %v2483
        %v2562 = vadd.f32 %v2091, %v2486
        %v2563 = vadd.f32 %v2093, %v2488
        %v2564 = vadd.f32 %v2096, %v2491
        %v2565 = vadd.f32 %v2098, %v2493
        %v2566 = vadd.f32 %v2101, %v2496
        %v2567 = vadd.f32 %v2103, %v2498
        %v2568 = vadd.f32 %v2106, %v2501
        %v2569 = vadd.f32 %v2108, %v2503
        %v2570 = vadd.f32 %v2111, %v2506
        %v2571 = vadd.f32 %v2113, %v2508
        %v2572 = vadd.f32 %v2116, %v2511
        %v2573 = vadd.f32 %v2118, %v2513
        %v2574 = vadd.f32 %v2121, %v2516
        %v2575 = vadd.f32 %v2123, %v2518
        %v2576 = vadd.f32 %v2126, %v2521
        %v2577 = vadd.f32 %v2128, %v2523
        %v2578 = vadd.f32 %v2131, %v2526
        %v2579 = vadd.f32 %v2133, %v2528
        %v2580 = vadd.f32 %v2136, %v2531
        %v2581 = vadd.f32 %v2138, %v2533
        %v2582 = vadd.f32 %v2141, %v2536
        %v2583 = vadd.f32 %v2143, %v2538
        %v2584 = vadd.f32 %v2146, %v2541
        %v2585 = vadd.f32 %v2148, %v2543
        %v2586 = vadd.f32 %v2151, %v2546
        %v2587 = vadd.f32 %v2153, %v2548
        %v2588 = vadd.f32 %v2156, %v2551
        %v2589 = vadd.f32 %v2158, %v2553
        %v2590 = vadd.f32 %v2161, %v2556
        %v2591 = vadd.f32 %v2163, %v2558
        %2592 = vset.pattern.permute.xlu0 3
        %2593 = vperm.xlu0 %2592, %v1442
        %v2594 = vpop.permute.xlu0 %2593
        %2596 = vset.pattern.permute.xlu0 3
        %2597 = vperm.xlu0 %2596, %v1443
        %v2598 = vpop.permute.xlu0 %2597
        %2600 = vset.pattern.permute.xlu0 3
        %2601 = vperm.xlu0 %2600, %v1444
        %v2602 = vpop.permute.xlu0 %2601
        %2604 = vset.pattern.permute.xlu0 3
        %2605 = vperm.xlu0 %2604, %v1445
        %v2606 = vpop.permute.xlu0 %2605
        %2608 = vset.pattern.permute.xlu0 3
        %2609 = vperm.xlu0 %2608, %v1446
        %v2610 = vpop.permute.xlu0 %2609
        %2612 = vset.pattern.permute.xlu0 3
        %2613 = vperm.xlu0 %2612, %v1447
        %v2614 = vpop.permute.xlu0 %2613
        %2616 = vset.pattern.permute.xlu0 3
        %2617 = vperm.xlu0 %2616, %v1448
        %v2618 = vpop.permute.xlu0 %2617
        %2620 = vset.pattern.permute.xlu0 3
        %2621 = vperm.xlu0 %2620, %v1449
        %v2622 = vpop.permute.xlu0 %2621
        %2624 = vset.pattern.permute.xlu0 3
        %2625 = vperm.xlu0 %2624, %v1450
        %v2626 = vpop.permute.xlu0 %2625
        %2628 = vset.pattern.permute.xlu0 3
        %2629 = vperm.xlu0 %2628, %v1451
        %v2630 = vpop.permute.xlu0 %2629
        %2632 = vset.pattern.permute.xlu0 3
        %2633 = vperm.xlu0 %2632, %v1452
        %v2634 = vpop.permute.xlu0 %2633
        %2636 = vset.pattern.permute.xlu0 3
        %2637 = vperm.xlu0 %2636, %v1453
        %v2638 = vpop.permute.xlu0 %2637
        %2640 = vset.pattern.permute.xlu0 3
        %2641 = vperm.xlu0 %2640, %v1454
        %v2642 = vpop.permute.xlu0 %2641
        %2644 = vset.pattern.permute.xlu0 3
        %2645 = vperm.xlu0 %2644, %v1455
        %v2646 = vpop.permute.xlu0 %2645
        %2648 = vset.pattern.permute.xlu0 3
        %2649 = vperm.xlu0 %2648, %v1456
        %v2650 = vpop.permute.xlu0 %2649
        %2652 = vset.pattern.permute.xlu0 3
        %2653 = vperm.xlu0 %2652, %v1457
        %v2654 = vpop.permute.xlu0 %2653
        %2656 = vset.pattern.permute.xlu0 3
        %2657 = vperm.xlu0 %2656, %v1458
        %v2658 = vpop.permute.xlu0 %2657
        %2660 = vset.pattern.permute.xlu0 3
        %2661 = vperm.xlu0 %2660, %v1459
        %v2662 = vpop.permute.xlu0 %2661
        %2664 = vset.pattern.permute.xlu0 3
        %2665 = vperm.xlu0 %2664, %v1460
        %v2666 = vpop.permute.xlu0 %2665
        %2668 = vset.pattern.permute.xlu0 3
        %2669 = vperm.xlu0 %2668, %v1461
        %v2670 = vpop.permute.xlu0 %2669
        %2672 = vset.pattern.permute.xlu0 3
        %2673 = vperm.xlu0 %2672, %v1462
        %v2674 = vpop.permute.xlu0 %2673
        %2676 = vset.pattern.permute.xlu0 3
        %2677 = vperm.xlu0 %2676, %v1463
        %v2678 = vpop.permute.xlu0 %2677
        %2680 = vset.pattern.permute.xlu0 3
        %2681 = vperm.xlu0 %2680, %v1464
        %v2682 = vpop.permute.xlu0 %2681
        %2684 = vset.pattern.permute.xlu0 3
        %2685 = vperm.xlu0 %2684, %v1465
        %v2686 = vpop.permute.xlu0 %2685
        %2688 = vset.pattern.permute.xlu0 3
        %2689 = vperm.xlu0 %2688, %v1466
        %v2690 = vpop.permute.xlu0 %2689
        %2692 = vset.pattern.permute.xlu0 3
        %2693 = vperm.xlu0 %2692, %v1467
        %v2694 = vpop.permute.xlu0 %2693
        %2696 = vset.pattern.permute.xlu0 3
        %2697 = vperm.xlu0 %2696, %v1468
        %v2698 = vpop.permute.xlu0 %2697
        %2700 = vset.pattern.permute.xlu0 3
        %2701 = vperm.xlu0 %2700, %v1469
        %v2702 = vpop.permute.xlu0 %2701
        %2704 = vset.pattern.permute.xlu0 3
        %2705 = vperm.xlu0 %2704, %v1470
        %v2706 = vpop.permute.xlu0 %2705
        %2708 = vset.pattern.permute.xlu0 3
        %2709 = vperm.xlu0 %2708, %v1471
        %v2710 = vpop.permute.xlu0 %2709
        %2712 = vset.pattern.permute.xlu0 3
        %2713 = vperm.xlu0 %2712, %v1472
        %v2714 = vpop.permute.xlu0 %2713
        %2716 = vset.pattern.permute.xlu0 3
        %2717 = vperm.xlu0 %2716, %v1473
        %v2718 = vpop.permute.xlu0 %2717
        %v2720 = vmul.f32 %v1441, %v2594
        %v2721 = vmul.f32 %v1440, %v2598
        %v2722 = vmul.f32 %v1439, %v2602
        %v2723 = vmul.f32 %v1438, %v2606
        %v2724 = vmul.f32 %v1437, %v2610
        %v2725 = vmul.f32 %v1436, %v2614
        %v2726 = vmul.f32 %v1435, %v2618
        %v2727 = vmul.f32 %v1434, %v2622
        %v2728 = vmul.f32 %v1433, %v2626
        %v2729 = vmul.f32 %v1432, %v2630
        %v2730 = vmul.f32 %v1431, %v2634
        %v2731 = vmul.f32 %v1430, %v2638
        %v2732 = vmul.f32 %v1429, %v2642
        %v2733 = vmul.f32 %v1428, %v2646
        %v2734 = vmul.f32 %v1427, %v2650
        %v2735 = vmul.f32 %v1426, %v2654
        %v2736 = vmul.f32 %v1425, %v2658
        %v2737 = vmul.f32 %v1424, %v2662
        %v2738 = vmul.f32 %v1423, %v2666
        %v2739 = vmul.f32 %v1422, %v2670
        %v2740 = vmul.f32 %v1421, %v2674
        %v2741 = vmul.f32 %v1420, %v2678
        %v2742 = vmul.f32 %v1419, %v2682
        %v2743 = vmul.f32 %v1418, %v2686
        %v2744 = vmul.f32 %v1417, %v2690
        %v2745 = vmul.f32 %v1416, %v2694
        %v2746 = vmul.f32 %v1415, %v2698
        %v2747 = vmul.f32 %v1414, %v2702
        %v2748 = vmul.f32 %v1413, %v2706
        %v2749 = vmul.f32 %v1412, %v2710
        %v2750 = vmul.f32 %v1411, %v2714
        %v2751 = vmul.f32 %v1410, %v2718
        %v2752 = vpack.c.bf16 %v2721, %v2720
        %v2753 = vpack.c.bf16 %v2723, %v2722
        %v2754 = vpack.c.bf16 %v2725, %v2724
        %v2755 = vpack.c.bf16 %v2727, %v2726
        %v2756 = vpack.c.bf16 %v2729, %v2728
        %v2757 = vpack.c.bf16 %v2731, %v2730
        %v2758 = vpack.c.bf16 %v2733, %v2732
        %v2759 = vpack.c.bf16 %v2735, %v2734
        %v2760 = vpack.c.bf16 %v2737, %v2736
        %v2761 = vpack.c.bf16 %v2739, %v2738
        %v2762 = vpack.c.bf16 %v2741, %v2740
        %v2763 = vpack.c.bf16 %v2743, %v2742
        %v2764 = vpack.c.bf16 %v2745, %v2744
        %v2765 = vpack.c.bf16 %v2747, %v2746
        %v2766 = vpack.c.bf16 %v2749, %v2748
        %v2767 = vpack.c.bf16 %v2751, %v2750
        %s2768 = scalar_lea.vmem %s6, 48
        %v2769 = vld [vmem:[%s2768] sm:$0xf]
        %v2770 = vld [vmem:[%s2768 + $0x4] sm:$0xf]
        %v2771 = vld [vmem:[%s2768 + $0x8] sm:$0xf]
        %v2772 = vld [vmem:[%s2768 + $0xc] sm:$0xf]
        %v2777 = vunpack.c.l.b16 %v2769
        %v2778 = vunpack.c.l.b16 %v2770
        %v2779 = vunpack.c.l.b16 %v2771
        %v2780 = vunpack.c.l.b16 %v2772
        %v2781 = vpack.c.b16 %v2778, %v2777
        %v2782 = vpack.c.b16 %v2780, %v2779
        %v2786 = vsel %vm378, %v2752, 0
        %v2789 = vsel %vm378, %v2753, 0
        %v2792 = vsel %vm378, %v2754, 0
        %v2795 = vsel %vm378, %v2755, 0
        %v2798 = vsel %vm378, %v2756, 0
        %v2801 = vsel %vm378, %v2757, 0
        %v2804 = vsel %vm378, %v2758, 0
        %v2807 = vsel %vm378, %v2759, 0
        %v2810 = vsel %vm378, %v2760, 0
        %v2813 = vsel %vm378, %v2761, 0
        %v2816 = vsel %vm378, %v2762, 0
        %v2819 = vsel %vm378, %v2763, 0
        %v2822 = vsel %vm378, %v2764, 0
        %v2825 = vsel %vm378, %v2765, 0
        %v2828 = vsel %vm378, %v2766, 0
        %v2831 = vsel %vm378, %v2767, 0
        %2833 = vmatpush.bf16.msra.mxu0 0
        %2834 = vmatpush.bf16.msra.mxu0 0
        %2835 = vmatpush.bf16.msra.mxu0 0
        %2836 = vmatpush.bf16.msra.mxu0 0
        %2837 = vmatpush.bf16.msra.mxu0 0
        %2838 = vmatpush.bf16.msra.mxu0 0
        %2839 = vmatpush.bf16.msra.mxu0 %v2782
        %2840 = vmatpush.bf16.msra.mxu0 %v2781
        %2841 = vmatmul.bf16.gmra.mxu0 %v2786
        %v2842 = vpop.f32.mrf.mxu0
        %v2843 = vadd.f32 0.0, %v2842
        %v2844 = vpop.f32.mrf.mxu0
        %v2845 = vadd.f32 0.0, %v2844
        %2846 = vmatmul.bf16.gmra.mxu0 %v2789
        %v2847 = vpop.f32.mrf.mxu0
        %v2848 = vadd.f32 0.0, %v2847
        %v2849 = vpop.f32.mrf.mxu0
        %v2850 = vadd.f32 0.0, %v2849
        %2851 = vmatmul.bf16.gmra.mxu0 %v2792
        %v2852 = vpop.f32.mrf.mxu0
        %v2853 = vadd.f32 0.0, %v2852
        %v2854 = vpop.f32.mrf.mxu0
        %v2855 = vadd.f32 0.0, %v2854
        %2856 = vmatmul.bf16.gmra.mxu0 %v2795
        %v2857 = vpop.f32.mrf.mxu0
        %v2858 = vadd.f32 0.0, %v2857
        %v2859 = vpop.f32.mrf.mxu0
        %v2860 = vadd.f32 0.0, %v2859
        %2861 = vmatmul.bf16.gmra.mxu0 %v2798
        %v2862 = vpop.f32.mrf.mxu0
        %v2863 = vadd.f32 0.0, %v2862
        %v2864 = vpop.f32.mrf.mxu0
        %v2865 = vadd.f32 0.0, %v2864
        %2866 = vmatmul.bf16.gmra.mxu0 %v2801
        %v2867 = vpop.f32.mrf.mxu0
        %v2868 = vadd.f32 0.0, %v2867
        %v2869 = vpop.f32.mrf.mxu0
        %v2870 = vadd.f32 0.0, %v2869
        %2871 = vmatmul.bf16.gmra.mxu0 %v2804
        %v2872 = vpop.f32.mrf.mxu0
        %v2873 = vadd.f32 0.0, %v2872
        %v2874 = vpop.f32.mrf.mxu0
        %v2875 = vadd.f32 0.0, %v2874
        %2876 = vmatmul.bf16.gmra.mxu0 %v2807
        %v2877 = vpop.f32.mrf.mxu0
        %v2878 = vadd.f32 0.0, %v2877
        %v2879 = vpop.f32.mrf.mxu0
        %v2880 = vadd.f32 0.0, %v2879
        %2881 = vmatmul.bf16.gmra.mxu0 %v2810
        %v2882 = vpop.f32.mrf.mxu0
        %v2883 = vadd.f32 0.0, %v2882
        %v2884 = vpop.f32.mrf.mxu0
        %v2885 = vadd.f32 0.0, %v2884
        %2886 = vmatmul.bf16.gmra.mxu0 %v2813
        %v2887 = vpop.f32.mrf.mxu0
        %v2888 = vadd.f32 0.0, %v2887
        %v2889 = vpop.f32.mrf.mxu0
        %v2890 = vadd.f32 0.0, %v2889
        %2891 = vmatmul.bf16.gmra.mxu0 %v2816
        %v2892 = vpop.f32.mrf.mxu0
        %v2893 = vadd.f32 0.0, %v2892
        %v2894 = vpop.f32.mrf.mxu0
        %v2895 = vadd.f32 0.0, %v2894
        %2896 = vmatmul.bf16.gmra.mxu0 %v2819
        %v2897 = vpop.f32.mrf.mxu0
        %v2898 = vadd.f32 0.0, %v2897
        %v2899 = vpop.f32.mrf.mxu0
        %v2900 = vadd.f32 0.0, %v2899
        %2901 = vmatmul.bf16.gmra.mxu0 %v2822
        %v2902 = vpop.f32.mrf.mxu0
        %v2903 = vadd.f32 0.0, %v2902
        %v2904 = vpop.f32.mrf.mxu0
        %v2905 = vadd.f32 0.0, %v2904
        %2906 = vmatmul.bf16.gmra.mxu0 %v2825
        %v2907 = vpop.f32.mrf.mxu0
        %v2908 = vadd.f32 0.0, %v2907
        %v2909 = vpop.f32.mrf.mxu0
        %v2910 = vadd.f32 0.0, %v2909
        %2911 = vmatmul.bf16.gmra.mxu0 %v2828
        %v2912 = vpop.f32.mrf.mxu0
        %v2913 = vadd.f32 0.0, %v2912
        %v2914 = vpop.f32.mrf.mxu0
        %v2915 = vadd.f32 0.0, %v2914
        %2916 = vmatmul.bf16.gmra.mxu0 %v2831
        %v2917 = vpop.f32.mrf.mxu0
        %v2918 = vadd.f32 0.0, %v2917
        %v2919 = vpop.f32.mrf.mxu0
        %v2920 = vadd.f32 0.0, %v2919
        %2921 = vdwg.mxu0
        %v2922 = vadd.f32 %v2560, %v2843
        %v2923 = vadd.f32 %v2561, %v2845
        %v2924 = vadd.f32 %v2562, %v2848
        %v2925 = vadd.f32 %v2563, %v2850
        %v2926 = vadd.f32 %v2564, %v2853
        %v2927 = vadd.f32 %v2565, %v2855
        %v2928 = vadd.f32 %v2566, %v2858
        %v2929 = vadd.f32 %v2567, %v2860
        %v2930 = vadd.f32 %v2568, %v2863
        %v2931 = vadd.f32 %v2569, %v2865
        %v2932 = vadd.f32 %v2570, %v2868
        %v2933 = vadd.f32 %v2571, %v2870
        %v2934 = vadd.f32 %v2572, %v2873
        %v2935 = vadd.f32 %v2573, %v2875
        %v2936 = vadd.f32 %v2574, %v2878
        %v2937 = vadd.f32 %v2575, %v2880
        %v2938 = vadd.f32 %v2576, %v2883
        %v2939 = vadd.f32 %v2577, %v2885
        %v2940 = vadd.f32 %v2578, %v2888
        %v2941 = vadd.f32 %v2579, %v2890
        %v2942 = vadd.f32 %v2580, %v2893
        %v2943 = vadd.f32 %v2581, %v2895
        %v2944 = vadd.f32 %v2582, %v2898
        %v2945 = vadd.f32 %v2583, %v2900
        %v2946 = vadd.f32 %v2584, %v2903
        %v2947 = vadd.f32 %v2585, %v2905
        %v2948 = vadd.f32 %v2586, %v2908
        %v2949 = vadd.f32 %v2587, %v2910
        %v2950 = vadd.f32 %v2588, %v2913
        %v2951 = vadd.f32 %v2589, %v2915
        %v2952 = vadd.f32 %v2590, %v2918
        %v2953 = vadd.f32 %v2591, %v2920
        %v2954 = vpack.c.bf16 %v1344, %v1343
        %v2955 = vpack.c.bf16 %v1346, %v1345
        %v2956 = vpack.c.bf16 %v1348, %v1347
        %v2957 = vpack.c.bf16 %v1350, %v1349
        %v2958 = vpack.c.bf16 %v1352, %v1351
        %v2959 = vpack.c.bf16 %v1354, %v1353
        %v2960 = vpack.c.bf16 %v1356, %v1355
        %v2961 = vpack.c.bf16 %v1358, %v1357
        %v2962 = vpack.c.bf16 %v1360, %v1359
        %v2963 = vpack.c.bf16 %v1362, %v1361
        %v2964 = vpack.c.bf16 %v1364, %v1363
        %v2965 = vpack.c.bf16 %v1366, %v1365
        %v2966 = vpack.c.bf16 %v1368, %v1367
        %v2967 = vpack.c.bf16 %v1370, %v1369
        %v2968 = vpack.c.bf16 %v1372, %v1371
        %v2969 = vpack.c.bf16 %v1374, %v1373
        %s2970 = scalar_lea.vmem %s6, 64
        %v2971 = vld [vmem:[%s2970] sm:$0xf]
        %v2972 = vld [vmem:[%s2970 + $0x4] sm:$0xf]
        %v2973 = vld [vmem:[%s2970 + $0x8] sm:$0xf]
        %v2974 = vld [vmem:[%s2970 + $0xc] sm:$0xf]
        %v2979 = vunpack.c.l.b16 %v2971
        %v2980 = vunpack.c.l.b16 %v2972
        %v2981 = vunpack.c.l.b16 %v2973
        %v2982 = vunpack.c.l.b16 %v2974
        %v2983 = vpack.c.b16 %v2980, %v2979
        %v2984 = vpack.c.b16 %v2982, %v2981
        %v2988 = vsel %vm378, %v2954, 0
        %v2991 = vsel %vm378, %v2955, 0
        %v2994 = vsel %vm378, %v2956, 0
        %v2997 = vsel %vm378, %v2957, 0
        %v3000 = vsel %vm378, %v2958, 0
        %v3003 = vsel %vm378, %v2959, 0
        %v3006 = vsel %vm378, %v2960, 0
        %v3009 = vsel %vm378, %v2961, 0
        %v3012 = vsel %vm378, %v2962, 0
        %v3015 = vsel %vm378, %v2963, 0
        %v3018 = vsel %vm378, %v2964, 0
        %v3021 = vsel %vm378, %v2965, 0
        %v3024 = vsel %vm378, %v2966, 0
        %v3027 = vsel %vm378, %v2967, 0
        %v3030 = vsel %vm378, %v2968, 0
        %v3033 = vsel %vm378, %v2969, 0
        %3035 = vmatpush.bf16.msra.mxu0 0
        %3036 = vmatpush.bf16.msra.mxu0 0
        %3037 = vmatpush.bf16.msra.mxu0 0
        %3038 = vmatpush.bf16.msra.mxu0 0
        %3039 = vmatpush.bf16.msra.mxu0 0
        %3040 = vmatpush.bf16.msra.mxu0 0
        %3041 = vmatpush.bf16.msra.mxu0 %v2984
        %3042 = vmatpush.bf16.msra.mxu0 %v2983
        %3043 = vmatmul.bf16.gmra.mxu0 %v2988
        %v3044 = vpop.f32.mrf.mxu0
        %v3045 = vadd.f32 0.0, %v3044
        %v3046 = vpop.f32.mrf.mxu0
        %v3047 = vadd.f32 0.0, %v3046
        %3048 = vmatmul.bf16.gmra.mxu0 %v2991
        %v3049 = vpop.f32.mrf.mxu0
        %v3050 = vadd.f32 0.0, %v3049
        %v3051 = vpop.f32.mrf.mxu0
        %v3052 = vadd.f32 0.0, %v3051
        %3053 = vmatmul.bf16.gmra.mxu0 %v2994
        %v3054 = vpop.f32.mrf.mxu0
        %v3055 = vadd.f32 0.0, %v3054
        %v3056 = vpop.f32.mrf.mxu0
        %v3057 = vadd.f32 0.0, %v3056
        %3058 = vmatmul.bf16.gmra.mxu0 %v2997
        %v3059 = vpop.f32.mrf.mxu0
        %v3060 = vadd.f32 0.0, %v3059
        %v3061 = vpop.f32.mrf.mxu0
        %v3062 = vadd.f32 0.0, %v3061
        %3063 = vmatmul.bf16.gmra.mxu0 %v3000
        %v3064 = vpop.f32.mrf.mxu0
        %v3065 = vadd.f32 0.0, %v3064
        %v3066 = vpop.f32.mrf.mxu0
        %v3067 = vadd.f32 0.0, %v3066
        %3068 = vmatmul.bf16.gmra.mxu0 %v3003
        %v3069 = vpop.f32.mrf.mxu0
        %v3070 = vadd.f32 0.0, %v3069
        %v3071 = vpop.f32.mrf.mxu0
        %v3072 = vadd.f32 0.0, %v3071
        %3073 = vmatmul.bf16.gmra.mxu0 %v3006
        %v3074 = vpop.f32.mrf.mxu0
        %v3075 = vadd.f32 0.0, %v3074
        %v3076 = vpop.f32.mrf.mxu0
        %v3077 = vadd.f32 0.0, %v3076
        %3078 = vmatmul.bf16.gmra.mxu0 %v3009
        %v3079 = vpop.f32.mrf.mxu0
        %v3080 = vadd.f32 0.0, %v3079
        %v3081 = vpop.f32.mrf.mxu0
        %v3082 = vadd.f32 0.0, %v3081
        %3083 = vmatmul.bf16.gmra.mxu0 %v3012
        %v3084 = vpop.f32.mrf.mxu0
        %v3085 = vadd.f32 0.0, %v3084
        %v3086 = vpop.f32.mrf.mxu0
        %v3087 = vadd.f32 0.0, %v3086
        %3088 = vmatmul.bf16.gmra.mxu0 %v3015
        %v3089 = vpop.f32.mrf.mxu0
        %v3090 = vadd.f32 0.0, %v3089
        %v3091 = vpop.f32.mrf.mxu0
        %v3092 = vadd.f32 0.0, %v3091
        %3093 = vmatmul.bf16.gmra.mxu0 %v3018
        %v3094 = vpop.f32.mrf.mxu0
        %v3095 = vadd.f32 0.0, %v3094
        %v3096 = vpop.f32.mrf.mxu0
        %v3097 = vadd.f32 0.0, %v3096
        %3098 = vmatmul.bf16.gmra.mxu0 %v3021
        %v3099 = vpop.f32.mrf.mxu0
        %v3100 = vadd.f32 0.0, %v3099
        %v3101 = vpop.f32.mrf.mxu0
        %v3102 = vadd.f32 0.0, %v3101
        %3103 = vmatmul.bf16.gmra.mxu0 %v3024
        %v3104 = vpop.f32.mrf.mxu0
        %v3105 = vadd.f32 0.0, %v3104
        %v3106 = vpop.f32.mrf.mxu0
        %v3107 = vadd.f32 0.0, %v3106
        %3108 = vmatmul.bf16.gmra.mxu0 %v3027
        %v3109 = vpop.f32.mrf.mxu0
        %v3110 = vadd.f32 0.0, %v3109
        %v3111 = vpop.f32.mrf.mxu0
        %v3112 = vadd.f32 0.0, %v3111
        %3113 = vmatmul.bf16.gmra.mxu0 %v3030
        %v3114 = vpop.f32.mrf.mxu0
        %v3115 = vadd.f32 0.0, %v3114
        %v3116 = vpop.f32.mrf.mxu0
        %v3117 = vadd.f32 0.0, %v3116
        %3118 = vmatmul.bf16.gmra.mxu0 %v3033
        %v3119 = vpop.f32.mrf.mxu0
        %v3120 = vadd.f32 0.0, %v3119
        %v3121 = vpop.f32.mrf.mxu0
        %v3122 = vadd.f32 0.0, %v3121
        %3123 = vdwg.mxu0
        %v3124 = vadd.f32 %v2922, %v3045
        %v3125 = vadd.f32 %v2923, %v3047
        %v3126 = vadd.f32 %v2924, %v3050
        %v3127 = vadd.f32 %v2925, %v3052
        %v3128 = vadd.f32 %v2926, %v3055
        %v3129 = vadd.f32 %v2927, %v3057
        %v3130 = vadd.f32 %v2928, %v3060
        %v3131 = vadd.f32 %v2929, %v3062
        %v3132 = vadd.f32 %v2930, %v3065
        %v3133 = vadd.f32 %v2931, %v3067
        %v3134 = vadd.f32 %v2932, %v3070
        %v3135 = vadd.f32 %v2933, %v3072
        %v3136 = vadd.f32 %v2934, %v3075
        %v3137 = vadd.f32 %v2935, %v3077
        %v3138 = vadd.f32 %v2936, %v3080
        %v3139 = vadd.f32 %v2937, %v3082
        %v3140 = vadd.f32 %v2938, %v3085
        %v3141 = vadd.f32 %v2939, %v3087
        %v3142 = vadd.f32 %v2940, %v3090
        %v3143 = vadd.f32 %v2941, %v3092
        %v3144 = vadd.f32 %v2942, %v3095
        %v3145 = vadd.f32 %v2943, %v3097
        %v3146 = vadd.f32 %v2944, %v3100
        %v3147 = vadd.f32 %v2945, %v3102
        %v3148 = vadd.f32 %v2946, %v3105
        %v3149 = vadd.f32 %v2947, %v3107
        %v3150 = vadd.f32 %v2948, %v3110
        %v3151 = vadd.f32 %v2949, %v3112
        %v3152 = vadd.f32 %v2950, %v3115
        %v3153 = vadd.f32 %v2951, %v3117
        %v3154 = vadd.f32 %v2952, %v3120
        %v3155 = vadd.f32 %v2953, %v3122
        %3156 = vset.pattern.permute.xlu0 5
        %3157 = vperm.xlu0 %3156, %v1442
        %v3158 = vpop.permute.xlu0 %3157
        %3160 = vset.pattern.permute.xlu0 5
        %3161 = vperm.xlu0 %3160, %v1443
        %v3162 = vpop.permute.xlu0 %3161
        %3164 = vset.pattern.permute.xlu0 5
        %3165 = vperm.xlu0 %3164, %v1444
        %v3166 = vpop.permute.xlu0 %3165
        %3168 = vset.pattern.permute.xlu0 5
        %3169 = vperm.xlu0 %3168, %v1445
        %v3170 = vpop.permute.xlu0 %3169
        %3172 = vset.pattern.permute.xlu0 5
        %3173 = vperm.xlu0 %3172, %v1446
        %v3174 = vpop.permute.xlu0 %3173
        %3176 = vset.pattern.permute.xlu0 5
        %3177 = vperm.xlu0 %3176, %v1447
        %v3178 = vpop.permute.xlu0 %3177
        %3180 = vset.pattern.permute.xlu0 5
        %3181 = vperm.xlu0 %3180, %v1448
        %v3182 = vpop.permute.xlu0 %3181
        %3184 = vset.pattern.permute.xlu0 5
        %3185 = vperm.xlu0 %3184, %v1449
        %v3186 = vpop.permute.xlu0 %3185
        %3188 = vset.pattern.permute.xlu0 5
        %3189 = vperm.xlu0 %3188, %v1450
        %v3190 = vpop.permute.xlu0 %3189
        %3192 = vset.pattern.permute.xlu0 5
        %3193 = vperm.xlu0 %3192, %v1451
        %v3194 = vpop.permute.xlu0 %3193
        %3196 = vset.pattern.permute.xlu0 5
        %3197 = vperm.xlu0 %3196, %v1452
        %v3198 = vpop.permute.xlu0 %3197
        %3200 = vset.pattern.permute.xlu0 5
        %3201 = vperm.xlu0 %3200, %v1453
        %v3202 = vpop.permute.xlu0 %3201
        %3204 = vset.pattern.permute.xlu0 5
        %3205 = vperm.xlu0 %3204, %v1454
        %v3206 = vpop.permute.xlu0 %3205
        %3208 = vset.pattern.permute.xlu0 5
        %3209 = vperm.xlu0 %3208, %v1455
        %v3210 = vpop.permute.xlu0 %3209
        %3212 = vset.pattern.permute.xlu0 5
        %3213 = vperm.xlu0 %3212, %v1456
        %v3214 = vpop.permute.xlu0 %3213
        %3216 = vset.pattern.permute.xlu0 5
        %3217 = vperm.xlu0 %3216, %v1457
        %v3218 = vpop.permute.xlu0 %3217
        %3220 = vset.pattern.permute.xlu0 5
        %3221 = vperm.xlu0 %3220, %v1458
        %v3222 = vpop.permute.xlu0 %3221
        %3224 = vset.pattern.permute.xlu0 5
        %3225 = vperm.xlu0 %3224, %v1459
        %v3226 = vpop.permute.xlu0 %3225
        %3228 = vset.pattern.permute.xlu0 5
        %3229 = vperm.xlu0 %3228, %v1460
        %v3230 = vpop.permute.xlu0 %3229
        %3232 = vset.pattern.permute.xlu0 5
        %3233 = vperm.xlu0 %3232, %v1461
        %v3234 = vpop.permute.xlu0 %3233
        %3236 = vset.pattern.permute.xlu0 5
        %3237 = vperm.xlu0 %3236, %v1462
        %v3238 = vpop.permute.xlu0 %3237
        %3240 = vset.pattern.permute.xlu0 5
        %3241 = vperm.xlu0 %3240, %v1463
        %v3242 = vpop.permute.xlu0 %3241
        %3244 = vset.pattern.permute.xlu0 5
        %3245 = vperm.xlu0 %3244, %v1464
        %v3246 = vpop.permute.xlu0 %3245
        %3248 = vset.pattern.permute.xlu0 5
        %3249 = vperm.xlu0 %3248, %v1465
        %v3250 = vpop.permute.xlu0 %3249
        %3252 = vset.pattern.permute.xlu0 5
        %3253 = vperm.xlu0 %3252, %v1466
        %v3254 = vpop.permute.xlu0 %3253
        %3256 = vset.pattern.permute.xlu0 5
        %3257 = vperm.xlu0 %3256, %v1467
        %v3258 = vpop.permute.xlu0 %3257
        %3260 = vset.pattern.permute.xlu0 5
        %3261 = vperm.xlu0 %3260, %v1468
        %v3262 = vpop.permute.xlu0 %3261
        %3264 = vset.pattern.permute.xlu0 5
        %3265 = vperm.xlu0 %3264, %v1469
        %v3266 = vpop.permute.xlu0 %3265
        %3268 = vset.pattern.permute.xlu0 5
        %3269 = vperm.xlu0 %3268, %v1470
        %v3270 = vpop.permute.xlu0 %3269
        %3272 = vset.pattern.permute.xlu0 5
        %3273 = vperm.xlu0 %3272, %v1471
        %v3274 = vpop.permute.xlu0 %3273
        %3276 = vset.pattern.permute.xlu0 5
        %3277 = vperm.xlu0 %3276, %v1472
        %v3278 = vpop.permute.xlu0 %3277
        %3280 = vset.pattern.permute.xlu0 5
        %3281 = vperm.xlu0 %3280, %v1473
        %v3282 = vpop.permute.xlu0 %3281
        %v3284 = vmul.f32 %v2228, %v3158
        %v3285 = vmul.f32 %v2227, %v3162
        %v3286 = vmul.f32 %v2226, %v3166
        %v3287 = vmul.f32 %v2225, %v3170
        %v3288 = vmul.f32 %v2224, %v3174
        %v3289 = vmul.f32 %v2223, %v3178
        %v3290 = vmul.f32 %v2222, %v3182
        %v3291 = vmul.f32 %v2221, %v3186
        %v3292 = vmul.f32 %v2220, %v3190
        %v3293 = vmul.f32 %v2219, %v3194
        %v3294 = vmul.f32 %v2218, %v3198
        %v3295 = vmul.f32 %v2217, %v3202
        %v3296 = vmul.f32 %v2216, %v3206
        %v3297 = vmul.f32 %v2215, %v3210
        %v3298 = vmul.f32 %v2214, %v3214
        %v3299 = vmul.f32 %v2213, %v3218
        %v3300 = vmul.f32 %v2212, %v3222
        %v3301 = vmul.f32 %v2211, %v3226
        %v3302 = vmul.f32 %v2210, %v3230
        %v3303 = vmul.f32 %v2209, %v3234
        %v3304 = vmul.f32 %v2208, %v3238
        %v3305 = vmul.f32 %v2207, %v3242
        %v3306 = vmul.f32 %v2206, %v3246
        %v3307 = vmul.f32 %v2205, %v3250
        %v3308 = vmul.f32 %v2204, %v3254
        %v3309 = vmul.f32 %v2203, %v3258
        %v3310 = vmul.f32 %v2202, %v3262
        %v3311 = vmul.f32 %v2201, %v3266
        %v3312 = vmul.f32 %v2200, %v3270
        %v3313 = vmul.f32 %v2199, %v3274
        %v3314 = vmul.f32 %v2198, %v3278
        %v3315 = vmul.f32 %v2229, %v3282
        %v3316 = vpack.c.bf16 %v3285, %v3284
        %v3317 = vpack.c.bf16 %v3287, %v3286
        %v3318 = vpack.c.bf16 %v3289, %v3288
        %v3319 = vpack.c.bf16 %v3291, %v3290
        %v3320 = vpack.c.bf16 %v3293, %v3292
        %v3321 = vpack.c.bf16 %v3295, %v3294
        %v3322 = vpack.c.bf16 %v3297, %v3296
        %v3323 = vpack.c.bf16 %v3299, %v3298
        %v3324 = vpack.c.bf16 %v3301, %v3300
        %v3325 = vpack.c.bf16 %v3303, %v3302
        %v3326 = vpack.c.bf16 %v3305, %v3304
        %v3327 = vpack.c.bf16 %v3307, %v3306
        %v3328 = vpack.c.bf16 %v3309, %v3308
        %v3329 = vpack.c.bf16 %v3311, %v3310
        %v3330 = vpack.c.bf16 %v3313, %v3312
        %v3331 = vpack.c.bf16 %v3315, %v3314
        %s3332 = scalar_lea.vmem %s6, 80
        %v3333 = vld [vmem:[%s3332] sm:$0xf]
        %v3334 = vld [vmem:[%s3332 + $0x4] sm:$0xf]
        %v3335 = vld [vmem:[%s3332 + $0x8] sm:$0xf]
        %v3336 = vld [vmem:[%s3332 + $0xc] sm:$0xf]
        %v3341 = vunpack.c.l.b16 %v3333
        %v3342 = vunpack.c.l.b16 %v3334
        %v3343 = vunpack.c.l.b16 %v3335
        %v3344 = vunpack.c.l.b16 %v3336
        %v3345 = vpack.c.b16 %v3342, %v3341
        %v3346 = vpack.c.b16 %v3344, %v3343
        %v3350 = vsel %vm378, %v3316, 0
        %v3353 = vsel %vm378, %v3317, 0
        %v3356 = vsel %vm378, %v3318, 0
        %v3359 = vsel %vm378, %v3319, 0
        %v3362 = vsel %vm378, %v3320, 0
        %v3365 = vsel %vm378, %v3321, 0
        %v3368 = vsel %vm378, %v3322, 0
        %v3371 = vsel %vm378, %v3323, 0
        %v3374 = vsel %vm378, %v3324, 0
        %v3377 = vsel %vm378, %v3325, 0
        %v3380 = vsel %vm378, %v3326, 0
        %v3383 = vsel %vm378, %v3327, 0
        %v3386 = vsel %vm378, %v3328, 0
        %v3389 = vsel %vm378, %v3329, 0
        %v3392 = vsel %vm378, %v3330, 0
        %v3395 = vsel %vm378, %v3331, 0
        %3397 = vmatpush.bf16.msra.mxu0 0
        %3398 = vmatpush.bf16.msra.mxu0 0
        %3399 = vmatpush.bf16.msra.mxu0 0
        %3400 = vmatpush.bf16.msra.mxu0 0
        %3401 = vmatpush.bf16.msra.mxu0 0
        %3402 = vmatpush.bf16.msra.mxu0 0
        %3403 = vmatpush.bf16.msra.mxu0 %v3346
        %3404 = vmatpush.bf16.msra.mxu0 %v3345
        %3405 = vmatmul.bf16.gmra.mxu0 %v3350
        %v3406 = vpop.f32.mrf.mxu0
        %v3407 = vadd.f32 0.0, %v3406
        %v3408 = vpop.f32.mrf.mxu0
        %v3409 = vadd.f32 0.0, %v3408
        %3410 = vmatmul.bf16.gmra.mxu0 %v3353
        %v3411 = vpop.f32.mrf.mxu0
        %v3412 = vadd.f32 0.0, %v3411
        %v3413 = vpop.f32.mrf.mxu0
        %v3414 = vadd.f32 0.0, %v3413
        %3415 = vmatmul.bf16.gmra.mxu0 %v3356
        %v3416 = vpop.f32.mrf.mxu0
        %v3417 = vadd.f32 0.0, %v3416
        %v3418 = vpop.f32.mrf.mxu0
        %v3419 = vadd.f32 0.0, %v3418
        %3420 = vmatmul.bf16.gmra.mxu0 %v3359
        %v3421 = vpop.f32.mrf.mxu0
        %v3422 = vadd.f32 0.0, %v3421
        %v3423 = vpop.f32.mrf.mxu0
        %v3424 = vadd.f32 0.0, %v3423
        %3425 = vmatmul.bf16.gmra.mxu0 %v3362
        %v3426 = vpop.f32.mrf.mxu0
        %v3427 = vadd.f32 0.0, %v3426
        %v3428 = vpop.f32.mrf.mxu0
        %v3429 = vadd.f32 0.0, %v3428
        %3430 = vmatmul.bf16.gmra.mxu0 %v3365
        %v3431 = vpop.f32.mrf.mxu0
        %v3432 = vadd.f32 0.0, %v3431
        %v3433 = vpop.f32.mrf.mxu0
        %v3434 = vadd.f32 0.0, %v3433
        %3435 = vmatmul.bf16.gmra.mxu0 %v3368
        %v3436 = vpop.f32.mrf.mxu0
        %v3437 = vadd.f32 0.0, %v3436
        %v3438 = vpop.f32.mrf.mxu0
        %v3439 = vadd.f32 0.0, %v3438
        %3440 = vmatmul.bf16.gmra.mxu0 %v3371
        %v3441 = vpop.f32.mrf.mxu0
        %v3442 = vadd.f32 0.0, %v3441
        %v3443 = vpop.f32.mrf.mxu0
        %v3444 = vadd.f32 0.0, %v3443
        %3445 = vmatmul.bf16.gmra.mxu0 %v3374
        %v3446 = vpop.f32.mrf.mxu0
        %v3447 = vadd.f32 0.0, %v3446
        %v3448 = vpop.f32.mrf.mxu0
        %v3449 = vadd.f32 0.0, %v3448
        %3450 = vmatmul.bf16.gmra.mxu0 %v3377
        %v3451 = vpop.f32.mrf.mxu0
        %v3452 = vadd.f32 0.0, %v3451
        %v3453 = vpop.f32.mrf.mxu0
        %v3454 = vadd.f32 0.0, %v3453
        %3455 = vmatmul.bf16.gmra.mxu0 %v3380
        %v3456 = vpop.f32.mrf.mxu0
        %v3457 = vadd.f32 0.0, %v3456
        %v3458 = vpop.f32.mrf.mxu0
        %v3459 = vadd.f32 0.0, %v3458
        %3460 = vmatmul.bf16.gmra.mxu0 %v3383
        %v3461 = vpop.f32.mrf.mxu0
        %v3462 = vadd.f32 0.0, %v3461
        %v3463 = vpop.f32.mrf.mxu0
        %v3464 = vadd.f32 0.0, %v3463
        %3465 = vmatmul.bf16.gmra.mxu0 %v3386
        %v3466 = vpop.f32.mrf.mxu0
        %v3467 = vadd.f32 0.0, %v3466
        %v3468 = vpop.f32.mrf.mxu0
        %v3469 = vadd.f32 0.0, %v3468
        %3470 = vmatmul.bf16.gmra.mxu0 %v3389
        %v3471 = vpop.f32.mrf.mxu0
        %v3472 = vadd.f32 0.0, %v3471
        %v3473 = vpop.f32.mrf.mxu0
        %v3474 = vadd.f32 0.0, %v3473
        %3475 = vmatmul.bf16.gmra.mxu0 %v3392
        %v3476 = vpop.f32.mrf.mxu0
        %v3477 = vadd.f32 0.0, %v3476
        %v3478 = vpop.f32.mrf.mxu0
        %v3479 = vadd.f32 0.0, %v3478
        %3480 = vmatmul.bf16.gmra.mxu0 %v3395
        %v3481 = vpop.f32.mrf.mxu0
        %v3482 = vadd.f32 0.0, %v3481
        %v3483 = vpop.f32.mrf.mxu0
        %v3484 = vadd.f32 0.0, %v3483
        %3485 = vdwg.mxu0
        %v3486 = vadd.f32 %v3124, %v3407
        %v3487 = vadd.f32 %v3125, %v3409
        %v3488 = vadd.f32 %v3126, %v3412
        %v3489 = vadd.f32 %v3127, %v3414
        %v3490 = vadd.f32 %v3128, %v3417
        %v3491 = vadd.f32 %v3129, %v3419
        %v3492 = vadd.f32 %v3130, %v3422
        %v3493 = vadd.f32 %v3131, %v3424
        %v3494 = vadd.f32 %v3132, %v3427
        %v3495 = vadd.f32 %v3133, %v3429
        %v3496 = vadd.f32 %v3134, %v3432
        %v3497 = vadd.f32 %v3135, %v3434
        %v3498 = vadd.f32 %v3136, %v3437
        %v3499 = vadd.f32 %v3137, %v3439
        %v3500 = vadd.f32 %v3138, %v3442
        %v3501 = vadd.f32 %v3139, %v3444
        %v3502 = vadd.f32 %v3140, %v3447
        %v3503 = vadd.f32 %v3141, %v3449
        %v3504 = vadd.f32 %v3142, %v3452
        %v3505 = vadd.f32 %v3143, %v3454
        %v3506 = vadd.f32 %v3144, %v3457
        %v3507 = vadd.f32 %v3145, %v3459
        %v3508 = vadd.f32 %v3146, %v3462
        %v3509 = vadd.f32 %v3147, %v3464
        %v3510 = vadd.f32 %v3148, %v3467
        %v3511 = vadd.f32 %v3149, %v3469
        %v3512 = vadd.f32 %v3150, %v3472
        %v3513 = vadd.f32 %v3151, %v3474
        %v3514 = vadd.f32 %v3152, %v3477
        %v3515 = vadd.f32 %v3153, %v3479
        %v3516 = vadd.f32 %v3154, %v3482
        %v3517 = vadd.f32 %v3155, %v3484
        %3518 = vset.pattern.permute.xlu0 6
        %3519 = vperm.xlu0 %3518, %v1442
        %v3520 = vpop.permute.xlu0 %3519
        %3522 = vset.pattern.permute.xlu0 6
        %3523 = vperm.xlu0 %3522, %v1443
        %v3524 = vpop.permute.xlu0 %3523
        %3526 = vset.pattern.permute.xlu0 6
        %3527 = vperm.xlu0 %3526, %v1444
        %v3528 = vpop.permute.xlu0 %3527
        %3530 = vset.pattern.permute.xlu0 6
        %3531 = vperm.xlu0 %3530, %v1445
        %v3532 = vpop.permute.xlu0 %3531
        %3534 = vset.pattern.permute.xlu0 6
        %3535 = vperm.xlu0 %3534, %v1446
        %v3536 = vpop.permute.xlu0 %3535
        %3538 = vset.pattern.permute.xlu0 6
        %3539 = vperm.xlu0 %3538, %v1447
        %v3540 = vpop.permute.xlu0 %3539
        %3542 = vset.pattern.permute.xlu0 6
        %3543 = vperm.xlu0 %3542, %v1448
        %v3544 = vpop.permute.xlu0 %3543
        %3546 = vset.pattern.permute.xlu0 6
        %3547 = vperm.xlu0 %3546, %v1449
        %v3548 = vpop.permute.xlu0 %3547
        %3550 = vset.pattern.permute.xlu0 6
        %3551 = vperm.xlu0 %3550, %v1450
        %v3552 = vpop.permute.xlu0 %3551
        %3554 = vset.pattern.permute.xlu0 6
        %3555 = vperm.xlu0 %3554, %v1451
        %v3556 = vpop.permute.xlu0 %3555
        %3558 = vset.pattern.permute.xlu0 6
        %3559 = vperm.xlu0 %3558, %v1452
        %v3560 = vpop.permute.xlu0 %3559
        %3562 = vset.pattern.permute.xlu0 6
        %3563 = vperm.xlu0 %3562, %v1453
        %v3564 = vpop.permute.xlu0 %3563
        %3566 = vset.pattern.permute.xlu0 6
        %3567 = vperm.xlu0 %3566, %v1454
        %v3568 = vpop.permute.xlu0 %3567
        %3570 = vset.pattern.permute.xlu0 6
        %3571 = vperm.xlu0 %3570, %v1455
        %v3572 = vpop.permute.xlu0 %3571
        %3574 = vset.pattern.permute.xlu0 6
        %3575 = vperm.xlu0 %3574, %v1456
        %v3576 = vpop.permute.xlu0 %3575
        %3578 = vset.pattern.permute.xlu0 6
        %3579 = vperm.xlu0 %3578, %v1457
        %v3580 = vpop.permute.xlu0 %3579
        %3582 = vset.pattern.permute.xlu0 6
        %3583 = vperm.xlu0 %3582, %v1458
        %v3584 = vpop.permute.xlu0 %3583
        %3586 = vset.pattern.permute.xlu0 6
        %3587 = vperm.xlu0 %3586, %v1459
        %v3588 = vpop.permute.xlu0 %3587
        %3590 = vset.pattern.permute.xlu0 6
        %3591 = vperm.xlu0 %3590, %v1460
        %v3592 = vpop.permute.xlu0 %3591
        %3594 = vset.pattern.permute.xlu0 6
        %3595 = vperm.xlu0 %3594, %v1461
        %v3596 = vpop.permute.xlu0 %3595
        %3598 = vset.pattern.permute.xlu0 6
        %3599 = vperm.xlu0 %3598, %v1462
        %v3600 = vpop.permute.xlu0 %3599
        %3602 = vset.pattern.permute.xlu0 6
        %3603 = vperm.xlu0 %3602, %v1463
        %v3604 = vpop.permute.xlu0 %3603
        %3606 = vset.pattern.permute.xlu0 6
        %3607 = vperm.xlu0 %3606, %v1464
        %v3608 = vpop.permute.xlu0 %3607
        %3610 = vset.pattern.permute.xlu0 6
        %3611 = vperm.xlu0 %3610, %v1465
        %v3612 = vpop.permute.xlu0 %3611
        %3614 = vset.pattern.permute.xlu0 6
        %3615 = vperm.xlu0 %3614, %v1466
        %v3616 = vpop.permute.xlu0 %3615
        %3618 = vset.pattern.permute.xlu0 6
        %3619 = vperm.xlu0 %3618, %v1467
        %v3620 = vpop.permute.xlu0 %3619
        %3622 = vset.pattern.permute.xlu0 6
        %3623 = vperm.xlu0 %3622, %v1468
        %v3624 = vpop.permute.xlu0 %3623
        %3626 = vset.pattern.permute.xlu0 6
        %3627 = vperm.xlu0 %3626, %v1469
        %v3628 = vpop.permute.xlu0 %3627
        %3630 = vset.pattern.permute.xlu0 6
        %3631 = vperm.xlu0 %3630, %v1470
        %v3632 = vpop.permute.xlu0 %3631
        %3634 = vset.pattern.permute.xlu0 6
        %3635 = vperm.xlu0 %3634, %v1471
        %v3636 = vpop.permute.xlu0 %3635
        %3638 = vset.pattern.permute.xlu0 6
        %3639 = vperm.xlu0 %3638, %v1472
        %v3640 = vpop.permute.xlu0 %3639
        %3642 = vset.pattern.permute.xlu0 6
        %3643 = vperm.xlu0 %3642, %v1473
        %v3644 = vpop.permute.xlu0 %3643
        %v3646 = vmul.f32 %v1439, %v3520
        %v3647 = vmul.f32 %v1438, %v3524
        %v3648 = vmul.f32 %v1437, %v3528
        %v3649 = vmul.f32 %v1436, %v3532
        %v3650 = vmul.f32 %v1435, %v3536
        %v3651 = vmul.f32 %v1434, %v3540
        %v3652 = vmul.f32 %v1433, %v3544
        %v3653 = vmul.f32 %v1432, %v3548
        %v3654 = vmul.f32 %v1431, %v3552
        %v3655 = vmul.f32 %v1430, %v3556
        %v3656 = vmul.f32 %v1429, %v3560
        %v3657 = vmul.f32 %v1428, %v3564
        %v3658 = vmul.f32 %v1427, %v3568
        %v3659 = vmul.f32 %v1426, %v3572
        %v3660 = vmul.f32 %v1425, %v3576
        %v3661 = vmul.f32 %v1424, %v3580
        %v3662 = vmul.f32 %v1423, %v3584
        %v3663 = vmul.f32 %v1422, %v3588
        %v3664 = vmul.f32 %v1421, %v3592
        %v3665 = vmul.f32 %v1420, %v3596
        %v3666 = vmul.f32 %v1419, %v3600
        %v3667 = vmul.f32 %v1418, %v3604
        %v3668 = vmul.f32 %v1417, %v3608
        %v3669 = vmul.f32 %v1416, %v3612
        %v3670 = vmul.f32 %v1415, %v3616
        %v3671 = vmul.f32 %v1414, %v3620
        %v3672 = vmul.f32 %v1413, %v3624
        %v3673 = vmul.f32 %v1412, %v3628
        %v3674 = vmul.f32 %v1411, %v3632
        %v3675 = vmul.f32 %v1410, %v3636
        %v3676 = vmul.f32 %v1441, %v3640
        %v3677 = vmul.f32 %v1440, %v3644
        %v3678 = vpack.c.bf16 %v3647, %v3646
        %v3679 = vpack.c.bf16 %v3649, %v3648
        %v3680 = vpack.c.bf16 %v3651, %v3650
        %v3681 = vpack.c.bf16 %v3653, %v3652
        %v3682 = vpack.c.bf16 %v3655, %v3654
        %v3683 = vpack.c.bf16 %v3657, %v3656
        %v3684 = vpack.c.bf16 %v3659, %v3658
        %v3685 = vpack.c.bf16 %v3661, %v3660
        %v3686 = vpack.c.bf16 %v3663, %v3662
        %v3687 = vpack.c.bf16 %v3665, %v3664
        %v3688 = vpack.c.bf16 %v3667, %v3666
        %v3689 = vpack.c.bf16 %v3669, %v3668
        %v3690 = vpack.c.bf16 %v3671, %v3670
        %v3691 = vpack.c.bf16 %v3673, %v3672
        %v3692 = vpack.c.bf16 %v3675, %v3674
        %v3693 = vpack.c.bf16 %v3677, %v3676
        %s3694 = scalar_lea.vmem %s6, 96
        %v3695 = vld [vmem:[%s3694] sm:$0xf]
        %v3696 = vld [vmem:[%s3694 + $0x4] sm:$0xf]
        %v3697 = vld [vmem:[%s3694 + $0x8] sm:$0xf]
        %v3698 = vld [vmem:[%s3694 + $0xc] sm:$0xf]
        %v3703 = vunpack.c.l.b16 %v3695
        %v3704 = vunpack.c.l.b16 %v3696
        %v3705 = vunpack.c.l.b16 %v3697
        %v3706 = vunpack.c.l.b16 %v3698
        %v3707 = vpack.c.b16 %v3704, %v3703
        %v3708 = vpack.c.b16 %v3706, %v3705
        %v3712 = vsel %vm378, %v3678, 0
        %v3715 = vsel %vm378, %v3679, 0
        %v3718 = vsel %vm378, %v3680, 0
        %v3721 = vsel %vm378, %v3681, 0
        %v3724 = vsel %vm378, %v3682, 0
        %v3727 = vsel %vm378, %v3683, 0
        %v3730 = vsel %vm378, %v3684, 0
        %v3733 = vsel %vm378, %v3685, 0
        %v3736 = vsel %vm378, %v3686, 0
        %v3739 = vsel %vm378, %v3687, 0
        %v3742 = vsel %vm378, %v3688, 0
        %v3745 = vsel %vm378, %v3689, 0
        %v3748 = vsel %vm378, %v3690, 0
        %v3751 = vsel %vm378, %v3691, 0
        %v3754 = vsel %vm378, %v3692, 0
        %v3757 = vsel %vm378, %v3693, 0
        %3759 = vmatpush.bf16.msra.mxu0 0
        %3760 = vmatpush.bf16.msra.mxu0 0
        %3761 = vmatpush.bf16.msra.mxu0 0
        %3762 = vmatpush.bf16.msra.mxu0 0
        %3763 = vmatpush.bf16.msra.mxu0 0
        %3764 = vmatpush.bf16.msra.mxu0 0
        %3765 = vmatpush.bf16.msra.mxu0 %v3708
        %3766 = vmatpush.bf16.msra.mxu0 %v3707
        %3767 = vmatmul.bf16.gmra.mxu0 %v3712
        %v3768 = vpop.f32.mrf.mxu0
        %v3769 = vadd.f32 0.0, %v3768
        %v3770 = vpop.f32.mrf.mxu0
        %v3771 = vadd.f32 0.0, %v3770
        %3772 = vmatmul.bf16.gmra.mxu0 %v3715
        %v3773 = vpop.f32.mrf.mxu0
        %v3774 = vadd.f32 0.0, %v3773
        %v3775 = vpop.f32.mrf.mxu0
        %v3776 = vadd.f32 0.0, %v3775
        %3777 = vmatmul.bf16.gmra.mxu0 %v3718
        %v3778 = vpop.f32.mrf.mxu0
        %v3779 = vadd.f32 0.0, %v3778
        %v3780 = vpop.f32.mrf.mxu0
        %v3781 = vadd.f32 0.0, %v3780
        %3782 = vmatmul.bf16.gmra.mxu0 %v3721
        %v3783 = vpop.f32.mrf.mxu0
        %v3784 = vadd.f32 0.0, %v3783
        %v3785 = vpop.f32.mrf.mxu0
        %v3786 = vadd.f32 0.0, %v3785
        %3787 = vmatmul.bf16.gmra.mxu0 %v3724
        %v3788 = vpop.f32.mrf.mxu0
        %v3789 = vadd.f32 0.0, %v3788
        %v3790 = vpop.f32.mrf.mxu0
        %v3791 = vadd.f32 0.0, %v3790
        %3792 = vmatmul.bf16.gmra.mxu0 %v3727
        %v3793 = vpop.f32.mrf.mxu0
        %v3794 = vadd.f32 0.0, %v3793
        %v3795 = vpop.f32.mrf.mxu0
        %v3796 = vadd.f32 0.0, %v3795
        %3797 = vmatmul.bf16.gmra.mxu0 %v3730
        %v3798 = vpop.f32.mrf.mxu0
        %v3799 = vadd.f32 0.0, %v3798
        %v3800 = vpop.f32.mrf.mxu0
        %v3801 = vadd.f32 0.0, %v3800
        %3802 = vmatmul.bf16.gmra.mxu0 %v3733
        %v3803 = vpop.f32.mrf.mxu0
        %v3804 = vadd.f32 0.0, %v3803
        %v3805 = vpop.f32.mrf.mxu0
        %v3806 = vadd.f32 0.0, %v3805
        %3807 = vmatmul.bf16.gmra.mxu0 %v3736
        %v3808 = vpop.f32.mrf.mxu0
        %v3809 = vadd.f32 0.0, %v3808
        %v3810 = vpop.f32.mrf.mxu0
        %v3811 = vadd.f32 0.0, %v3810
        %3812 = vmatmul.bf16.gmra.mxu0 %v3739
        %v3813 = vpop.f32.mrf.mxu0
        %v3814 = vadd.f32 0.0, %v3813
        %v3815 = vpop.f32.mrf.mxu0
        %v3816 = vadd.f32 0.0, %v3815
        %3817 = vmatmul.bf16.gmra.mxu0 %v3742
        %v3818 = vpop.f32.mrf.mxu0
        %v3819 = vadd.f32 0.0, %v3818
        %v3820 = vpop.f32.mrf.mxu0
        %v3821 = vadd.f32 0.0, %v3820
        %3822 = vmatmul.bf16.gmra.mxu0 %v3745
        %v3823 = vpop.f32.mrf.mxu0
        %v3824 = vadd.f32 0.0, %v3823
        %v3825 = vpop.f32.mrf.mxu0
        %v3826 = vadd.f32 0.0, %v3825
        %3827 = vmatmul.bf16.gmra.mxu0 %v3748
        %v3828 = vpop.f32.mrf.mxu0
        %v3829 = vadd.f32 0.0, %v3828
        %v3830 = vpop.f32.mrf.mxu0
        %v3831 = vadd.f32 0.0, %v3830
        %3832 = vmatmul.bf16.gmra.mxu0 %v3751
        %v3833 = vpop.f32.mrf.mxu0
        %v3834 = vadd.f32 0.0, %v3833
        %v3835 = vpop.f32.mrf.mxu0
        %v3836 = vadd.f32 0.0, %v3835
        %3837 = vmatmul.bf16.gmra.mxu0 %v3754
        %v3838 = vpop.f32.mrf.mxu0
        %v3839 = vadd.f32 0.0, %v3838
        %v3840 = vpop.f32.mrf.mxu0
        %v3841 = vadd.f32 0.0, %v3840
        %3842 = vmatmul.bf16.gmra.mxu0 %v3757
        %v3843 = vpop.f32.mrf.mxu0
        %v3844 = vadd.f32 0.0, %v3843
        %v3845 = vpop.f32.mrf.mxu0
        %v3846 = vadd.f32 0.0, %v3845
        %3847 = vdwg.mxu0
        %v3848 = vadd.f32 %v3486, %v3769
        %v3849 = vadd.f32 %v3487, %v3771
        %v3850 = vadd.f32 %v3488, %v3774
        %v3851 = vadd.f32 %v3489, %v3776
        %v3852 = vadd.f32 %v3490, %v3779
        %v3853 = vadd.f32 %v3491, %v3781
        %v3854 = vadd.f32 %v3492, %v3784
        %v3855 = vadd.f32 %v3493, %v3786
        %v3856 = vadd.f32 %v3494, %v3789
        %v3857 = vadd.f32 %v3495, %v3791
        %v3858 = vadd.f32 %v3496, %v3794
        %v3859 = vadd.f32 %v3497, %v3796
        %v3860 = vadd.f32 %v3498, %v3799
        %v3861 = vadd.f32 %v3499, %v3801
        %v3862 = vadd.f32 %v3500, %v3804
        %v3863 = vadd.f32 %v3501, %v3806
        %v3864 = vadd.f32 %v3502, %v3809
        %v3865 = vadd.f32 %v3503, %v3811
        %v3866 = vadd.f32 %v3504, %v3814
        %v3867 = vadd.f32 %v3505, %v3816
        %v3868 = vadd.f32 %v3506, %v3819
        %v3869 = vadd.f32 %v3507, %v3821
        %v3870 = vadd.f32 %v3508, %v3824
        %v3871 = vadd.f32 %v3509, %v3826
        %v3872 = vadd.f32 %v3510, %v3829
        %v3873 = vadd.f32 %v3511, %v3831
        %v3874 = vadd.f32 %v3512, %v3834
        %v3875 = vadd.f32 %v3513, %v3836
        %v3876 = vadd.f32 %v3514, %v3839
        %v3877 = vadd.f32 %v3515, %v3841
        %v3878 = vadd.f32 %v3516, %v3844
        %v3879 = vadd.f32 %v3517, %v3846
        %3880 = vset.pattern.permute.xlu0 7
        %3881 = vperm.xlu0 %3880, %v1442
        %v3882 = vpop.permute.xlu0 %3881
        %3884 = vset.pattern.permute.xlu0 7
        %3885 = vperm.xlu0 %3884, %v1443
        %v3886 = vpop.permute.xlu0 %3885
        %3888 = vset.pattern.permute.xlu0 7
        %3889 = vperm.xlu0 %3888, %v1444
        %v3890 = vpop.permute.xlu0 %3889
        %3892 = vset.pattern.permute.xlu0 7
        %3893 = vperm.xlu0 %3892, %v1445
        %v3894 = vpop.permute.xlu0 %3893
        %3896 = vset.pattern.permute.xlu0 7
        %3897 = vperm.xlu0 %3896, %v1446
        %v3898 = vpop.permute.xlu0 %3897
        %3900 = vset.pattern.permute.xlu0 7
        %3901 = vperm.xlu0 %3900, %v1447
        %v3902 = vpop.permute.xlu0 %3901
        %3904 = vset.pattern.permute.xlu0 7
        %3905 = vperm.xlu0 %3904, %v1448
        %v3906 = vpop.permute.xlu0 %3905
        %3908 = vset.pattern.permute.xlu0 7
        %3909 = vperm.xlu0 %3908, %v1449
        %v3910 = vpop.permute.xlu0 %3909
        %3912 = vset.pattern.permute.xlu0 7
        %3913 = vperm.xlu0 %3912, %v1450
        %v3914 = vpop.permute.xlu0 %3913
        %3916 = vset.pattern.permute.xlu0 7
        %3917 = vperm.xlu0 %3916, %v1451
        %v3918 = vpop.permute.xlu0 %3917
        %3920 = vset.pattern.permute.xlu0 7
        %3921 = vperm.xlu0 %3920, %v1452
        %v3922 = vpop.permute.xlu0 %3921
        %3924 = vset.pattern.permute.xlu0 7
        %3925 = vperm.xlu0 %3924, %v1453
        %v3926 = vpop.permute.xlu0 %3925
        %3928 = vset.pattern.permute.xlu0 7
        %3929 = vperm.xlu0 %3928, %v1454
        %v3930 = vpop.permute.xlu0 %3929
        %3932 = vset.pattern.permute.xlu0 7
        %3933 = vperm.xlu0 %3932, %v1455
        %v3934 = vpop.permute.xlu0 %3933
        %3936 = vset.pattern.permute.xlu0 7
        %3937 = vperm.xlu0 %3936, %v1456
        %v3938 = vpop.permute.xlu0 %3937
        %3940 = vset.pattern.permute.xlu0 7
        %3941 = vperm.xlu0 %3940, %v1457
        %v3942 = vpop.permute.xlu0 %3941
        %3944 = vset.pattern.permute.xlu0 7
        %3945 = vperm.xlu0 %3944, %v1458
        %v3946 = vpop.permute.xlu0 %3945
        %3948 = vset.pattern.permute.xlu0 7
        %3949 = vperm.xlu0 %3948, %v1459
        %v3950 = vpop.permute.xlu0 %3949
        %3952 = vset.pattern.permute.xlu0 7
        %3953 = vperm.xlu0 %3952, %v1460
        %v3954 = vpop.permute.xlu0 %3953
        %3956 = vset.pattern.permute.xlu0 7
        %3957 = vperm.xlu0 %3956, %v1461
        %v3958 = vpop.permute.xlu0 %3957
        %3960 = vset.pattern.permute.xlu0 7
        %3961 = vperm.xlu0 %3960, %v1462
        %v3962 = vpop.permute.xlu0 %3961
        %3964 = vset.pattern.permute.xlu0 7
        %3965 = vperm.xlu0 %3964, %v1463
        %v3966 = vpop.permute.xlu0 %3965
        %3968 = vset.pattern.permute.xlu0 7
        %3969 = vperm.xlu0 %3968, %v1464
        %v3970 = vpop.permute.xlu0 %3969
        %3972 = vset.pattern.permute.xlu0 7
        %3973 = vperm.xlu0 %3972, %v1465
        %v3974 = vpop.permute.xlu0 %3973
        %3976 = vset.pattern.permute.xlu0 7
        %3977 = vperm.xlu0 %3976, %v1466
        %v3978 = vpop.permute.xlu0 %3977
        %3980 = vset.pattern.permute.xlu0 7
        %3981 = vperm.xlu0 %3980, %v1467
        %v3982 = vpop.permute.xlu0 %3981
        %3984 = vset.pattern.permute.xlu0 7
        %3985 = vperm.xlu0 %3984, %v1468
        %v3986 = vpop.permute.xlu0 %3985
        %3988 = vset.pattern.permute.xlu0 7
        %3989 = vperm.xlu0 %3988, %v1469
        %v3990 = vpop.permute.xlu0 %3989
        %3992 = vset.pattern.permute.xlu0 7
        %3993 = vperm.xlu0 %3992, %v1470
        %v3994 = vpop.permute.xlu0 %3993
        %3996 = vset.pattern.permute.xlu0 7
        %3997 = vperm.xlu0 %3996, %v1471
        %v3998 = vpop.permute.xlu0 %3997
        %4000 = vset.pattern.permute.xlu0 7
        %4001 = vperm.xlu0 %4000, %v1472
        %v4002 = vpop.permute.xlu0 %4001
        %4004 = vset.pattern.permute.xlu0 7
        %4005 = vperm.xlu0 %4004, %v1473
        %v4006 = vpop.permute.xlu0 %4005
        %v4008 = vmul.f32 %v1345, %v3882
        %v4009 = vmul.f32 %v1346, %v3886
        %v4010 = vmul.f32 %v1347, %v3890
        %v4011 = vmul.f32 %v1348, %v3894
        %v4012 = vmul.f32 %v1349, %v3898
        %v4013 = vmul.f32 %v1350, %v3902
        %v4014 = vmul.f32 %v1351, %v3906
        %v4015 = vmul.f32 %v1352, %v3910
        %v4016 = vmul.f32 %v1353, %v3914
        %v4017 = vmul.f32 %v1354, %v3918
        %v4018 = vmul.f32 %v1355, %v3922
        %v4019 = vmul.f32 %v1356, %v3926
        %v4020 = vmul.f32 %v1357, %v3930
        %v4021 = vmul.f32 %v1358, %v3934
        %v4022 = vmul.f32 %v1359, %v3938
        %v4023 = vmul.f32 %v1360, %v3942
        %v4024 = vmul.f32 %v1361, %v3946
        %v4025 = vmul.f32 %v1362, %v3950
        %v4026 = vmul.f32 %v1363, %v3954
        %v4027 = vmul.f32 %v1364, %v3958
        %v4028 = vmul.f32 %v1365, %v3962
        %v4029 = vmul.f32 %v1366, %v3966
        %v4030 = vmul.f32 %v1367, %v3970
        %v4031 = vmul.f32 %v1368, %v3974
        %v4032 = vmul.f32 %v1369, %v3978
        %v4033 = vmul.f32 %v1370, %v3982
        %v4034 = vmul.f32 %v1371, %v3986
        %v4035 = vmul.f32 %v1372, %v3990
        %v4036 = vmul.f32 %v1373, %v3994
        %v4037 = vmul.f32 %v1374, %v3998
        %v4038 = vmul.f32 %v1343, %v4002
        %v4039 = vmul.f32 %v1344, %v4006
        %v4040 = vpack.c.bf16 %v4009, %v4008
        %v4041 = vpack.c.bf16 %v4011, %v4010
        %v4042 = vpack.c.bf16 %v4013, %v4012
        %v4043 = vpack.c.bf16 %v4015, %v4014
        %v4044 = vpack.c.bf16 %v4017, %v4016
        %v4045 = vpack.c.bf16 %v4019, %v4018
        %v4046 = vpack.c.bf16 %v4021, %v4020
        %v4047 = vpack.c.bf16 %v4023, %v4022
        %v4048 = vpack.c.bf16 %v4025, %v4024
        %v4049 = vpack.c.bf16 %v4027, %v4026
        %v4050 = vpack.c.bf16 %v4029, %v4028
        %v4051 = vpack.c.bf16 %v4031, %v4030
        %v4052 = vpack.c.bf16 %v4033, %v4032
        %v4053 = vpack.c.bf16 %v4035, %v4034
        %v4054 = vpack.c.bf16 %v4037, %v4036
        %v4055 = vpack.c.bf16 %v4039, %v4038
        %s4056 = scalar_lea.vmem %s6, 112
        %v4057 = vld [vmem:[%s4056] sm:$0xf]
        %v4058 = vld [vmem:[%s4056 + $0x4] sm:$0xf]
        %v4059 = vld [vmem:[%s4056 + $0x8] sm:$0xf]
        %v4060 = vld [vmem:[%s4056 + $0xc] sm:$0xf]
        %v4065 = vunpack.c.l.b16 %v4057
        %v4066 = vunpack.c.l.b16 %v4058
        %v4067 = vunpack.c.l.b16 %v4059
        %v4068 = vunpack.c.l.b16 %v4060
        %v4069 = vpack.c.b16 %v4066, %v4065
        %v4070 = vpack.c.b16 %v4068, %v4067
        %v4074 = vsel %vm378, %v4040, 0
        %v4077 = vsel %vm378, %v4041, 0
        %v4080 = vsel %vm378, %v4042, 0
        %v4083 = vsel %vm378, %v4043, 0
        %v4086 = vsel %vm378, %v4044, 0
        %v4089 = vsel %vm378, %v4045, 0
        %v4092 = vsel %vm378, %v4046, 0
        %v4095 = vsel %vm378, %v4047, 0
        %v4098 = vsel %vm378, %v4048, 0
        %v4101 = vsel %vm378, %v4049, 0
        %v4104 = vsel %vm378, %v4050, 0
        %v4107 = vsel %vm378, %v4051, 0
        %v4110 = vsel %vm378, %v4052, 0
        %v4113 = vsel %vm378, %v4053, 0
        %v4116 = vsel %vm378, %v4054, 0
        %v4119 = vsel %vm378, %v4055, 0
        %4121 = vmatpush.bf16.msra.mxu0 0
        %4122 = vmatpush.bf16.msra.mxu0 0
        %4123 = vmatpush.bf16.msra.mxu0 0
        %4124 = vmatpush.bf16.msra.mxu0 0
        %4125 = vmatpush.bf16.msra.mxu0 0
        %4126 = vmatpush.bf16.msra.mxu0 0
        %4127 = vmatpush.bf16.msra.mxu0 %v4070
        %4128 = vmatpush.bf16.msra.mxu0 %v4069
        %4129 = vmatmul.bf16.gmra.mxu0 %v4074
        %v4130 = vpop.f32.mrf.mxu0
        %v4131 = vadd.f32 0.0, %v4130
        %v4132 = vpop.f32.mrf.mxu0
        %v4133 = vadd.f32 0.0, %v4132
        %4134 = vmatmul.bf16.gmra.mxu0 %v4077
        %v4135 = vpop.f32.mrf.mxu0
        %v4136 = vadd.f32 0.0, %v4135
        %v4137 = vpop.f32.mrf.mxu0
        %v4138 = vadd.f32 0.0, %v4137
        %4139 = vmatmul.bf16.gmra.mxu0 %v4080
        %v4140 = vpop.f32.mrf.mxu0
        %v4141 = vadd.f32 0.0, %v4140
        %v4142 = vpop.f32.mrf.mxu0
        %v4143 = vadd.f32 0.0, %v4142
        %4144 = vmatmul.bf16.gmra.mxu0 %v4083
        %v4145 = vpop.f32.mrf.mxu0
        %v4146 = vadd.f32 0.0, %v4145
        %v4147 = vpop.f32.mrf.mxu0
        %v4148 = vadd.f32 0.0, %v4147
        %4149 = vmatmul.bf16.gmra.mxu0 %v4086
        %v4150 = vpop.f32.mrf.mxu0
        %v4151 = vadd.f32 0.0, %v4150
        %v4152 = vpop.f32.mrf.mxu0
        %v4153 = vadd.f32 0.0, %v4152
        %4154 = vmatmul.bf16.gmra.mxu0 %v4089
        %v4155 = vpop.f32.mrf.mxu0
        %v4156 = vadd.f32 0.0, %v4155
        %v4157 = vpop.f32.mrf.mxu0
        %v4158 = vadd.f32 0.0, %v4157
        %4159 = vmatmul.bf16.gmra.mxu0 %v4092
        %v4160 = vpop.f32.mrf.mxu0
        %v4161 = vadd.f32 0.0, %v4160
        %v4162 = vpop.f32.mrf.mxu0
        %v4163 = vadd.f32 0.0, %v4162
        %4164 = vmatmul.bf16.gmra.mxu0 %v4095
        %v4165 = vpop.f32.mrf.mxu0
        %v4166 = vadd.f32 0.0, %v4165
        %v4167 = vpop.f32.mrf.mxu0
        %v4168 = vadd.f32 0.0, %v4167
        %4169 = vmatmul.bf16.gmra.mxu0 %v4098
        %v4170 = vpop.f32.mrf.mxu0
        %v4171 = vadd.f32 0.0, %v4170
        %v4172 = vpop.f32.mrf.mxu0
        %v4173 = vadd.f32 0.0, %v4172
        %4174 = vmatmul.bf16.gmra.mxu0 %v4101
        %v4175 = vpop.f32.mrf.mxu0
        %v4176 = vadd.f32 0.0, %v4175
        %v4177 = vpop.f32.mrf.mxu0
        %v4178 = vadd.f32 0.0, %v4177
        %4179 = vmatmul.bf16.gmra.mxu0 %v4104
        %v4180 = vpop.f32.mrf.mxu0
        %v4181 = vadd.f32 0.0, %v4180
        %v4182 = vpop.f32.mrf.mxu0
        %v4183 = vadd.f32 0.0, %v4182
        %4184 = vmatmul.bf16.gmra.mxu0 %v4107
        %v4185 = vpop.f32.mrf.mxu0
        %v4186 = vadd.f32 0.0, %v4185
        %v4187 = vpop.f32.mrf.mxu0
        %v4188 = vadd.f32 0.0, %v4187
        %4189 = vmatmul.bf16.gmra.mxu0 %v4110
        %v4190 = vpop.f32.mrf.mxu0
        %v4191 = vadd.f32 0.0, %v4190
        %v4192 = vpop.f32.mrf.mxu0
        %v4193 = vadd.f32 0.0, %v4192
        %4194 = vmatmul.bf16.gmra.mxu0 %v4113
        %v4195 = vpop.f32.mrf.mxu0
        %v4196 = vadd.f32 0.0, %v4195
        %v4197 = vpop.f32.mrf.mxu0
        %v4198 = vadd.f32 0.0, %v4197
        %4199 = vmatmul.bf16.gmra.mxu0 %v4116
        %v4200 = vpop.f32.mrf.mxu0
        %v4201 = vadd.f32 0.0, %v4200
        %v4202 = vpop.f32.mrf.mxu0
        %v4203 = vadd.f32 0.0, %v4202
        %4204 = vmatmul.bf16.gmra.mxu0 %v4119
        %v4205 = vpop.f32.mrf.mxu0
        %v4206 = vadd.f32 0.0, %v4205
        %v4207 = vpop.f32.mrf.mxu0
        %v4208 = vadd.f32 0.0, %v4207
        %4209 = vdwg.mxu0
        %v4210 = vadd.f32 %v3848, %v4131
        %v4211 = vadd.f32 %v3849, %v4133
        %v4212 = vadd.f32 %v3850, %v4136
        %v4213 = vadd.f32 %v3851, %v4138
        %v4214 = vadd.f32 %v3852, %v4141
        %v4215 = vadd.f32 %v3853, %v4143
        %v4216 = vadd.f32 %v3854, %v4146
        %v4217 = vadd.f32 %v3855, %v4148
        %v4218 = vadd.f32 %v3856, %v4151
        %v4219 = vadd.f32 %v3857, %v4153
        %v4220 = vadd.f32 %v3858, %v4156
        %v4221 = vadd.f32 %v3859, %v4158
        %v4222 = vadd.f32 %v3860, %v4161
        %v4223 = vadd.f32 %v3861, %v4163
        %v4224 = vadd.f32 %v3862, %v4166
        %v4225 = vadd.f32 %v3863, %v4168
        %v4226 = vadd.f32 %v3864, %v4171
        %v4227 = vadd.f32 %v3865, %v4173
        %v4228 = vadd.f32 %v3866, %v4176
        %v4229 = vadd.f32 %v3867, %v4178
        %v4230 = vadd.f32 %v3868, %v4181
        %v4231 = vadd.f32 %v3869, %v4183
        %v4232 = vadd.f32 %v3870, %v4186
        %v4233 = vadd.f32 %v3871, %v4188
        %v4234 = vadd.f32 %v3872, %v4191
        %v4235 = vadd.f32 %v3873, %v4193
        %v4236 = vadd.f32 %v3874, %v4196
        %v4237 = vadd.f32 %v3875, %v4198
        %v4238 = vadd.f32 %v3876, %v4201
        %v4239 = vadd.f32 %v3877, %v4203
        %v4240 = vadd.f32 %v3878, %v4206
        %v4241 = vadd.f32 %v3879, %v4208
        %4242 = vset.pattern.permute.xlu0 8
        %4243 = vperm.xlu0 %4242, %v1442
        %v4244 = vpop.permute.xlu0 %4243
        %4246 = vset.pattern.permute.xlu0 8
        %4247 = vperm.xlu0 %4246, %v1443
        %v4248 = vpop.permute.xlu0 %4247
        %4250 = vset.pattern.permute.xlu0 8
        %4251 = vperm.xlu0 %4250, %v1444
        %v4252 = vpop.permute.xlu0 %4251
        %4254 = vset.pattern.permute.xlu0 8
        %4255 = vperm.xlu0 %4254, %v1445
        %v4256 = vpop.permute.xlu0 %4255
        %4258 = vset.pattern.permute.xlu0 8
        %4259 = vperm.xlu0 %4258, %v1446
        %v4260 = vpop.permute.xlu0 %4259
        %4262 = vset.pattern.permute.xlu0 8
        %4263 = vperm.xlu0 %4262, %v1447
        %v4264 = vpop.permute.xlu0 %4263
        %4266 = vset.pattern.permute.xlu0 8
        %4267 = vperm.xlu0 %4266, %v1448
        %v4268 = vpop.permute.xlu0 %4267
        %4270 = vset.pattern.permute.xlu0 8
        %4271 = vperm.xlu0 %4270, %v1449
        %v4272 = vpop.permute.xlu0 %4271
        %4274 = vset.pattern.permute.xlu0 8
        %4275 = vperm.xlu0 %4274, %v1450
        %v4276 = vpop.permute.xlu0 %4275
        %4278 = vset.pattern.permute.xlu0 8
        %4279 = vperm.xlu0 %4278, %v1451
        %v4280 = vpop.permute.xlu0 %4279
        %4282 = vset.pattern.permute.xlu0 8
        %4283 = vperm.xlu0 %4282, %v1452
        %v4284 = vpop.permute.xlu0 %4283
        %4286 = vset.pattern.permute.xlu0 8
        %4287 = vperm.xlu0 %4286, %v1453
        %v4288 = vpop.permute.xlu0 %4287
        %4290 = vset.pattern.permute.xlu0 8
        %4291 = vperm.xlu0 %4290, %v1454
        %v4292 = vpop.permute.xlu0 %4291
        %4294 = vset.pattern.permute.xlu0 8
        %4295 = vperm.xlu0 %4294, %v1455
        %v4296 = vpop.permute.xlu0 %4295
        %4298 = vset.pattern.permute.xlu0 8
        %4299 = vperm.xlu0 %4298, %v1456
        %v4300 = vpop.permute.xlu0 %4299
        %4302 = vset.pattern.permute.xlu0 8
        %4303 = vperm.xlu0 %4302, %v1457
        %v4304 = vpop.permute.xlu0 %4303
        %4306 = vset.pattern.permute.xlu0 8
        %4307 = vperm.xlu0 %4306, %v1458
        %v4308 = vpop.permute.xlu0 %4307
        %4310 = vset.pattern.permute.xlu0 8
        %4311 = vperm.xlu0 %4310, %v1459
        %v4312 = vpop.permute.xlu0 %4311
        %4314 = vset.pattern.permute.xlu0 8
        %4315 = vperm.xlu0 %4314, %v1460
        %v4316 = vpop.permute.xlu0 %4315
        %4318 = vset.pattern.permute.xlu0 8
        %4319 = vperm.xlu0 %4318, %v1461
        %v4320 = vpop.permute.xlu0 %4319
        %4322 = vset.pattern.permute.xlu0 8
        %4323 = vperm.xlu0 %4322, %v1462
        %v4324 = vpop.permute.xlu0 %4323
        %4326 = vset.pattern.permute.xlu0 8
        %4327 = vperm.xlu0 %4326, %v1463
        %v4328 = vpop.permute.xlu0 %4327
        %4330 = vset.pattern.permute.xlu0 8
        %4331 = vperm.xlu0 %4330, %v1464
        %v4332 = vpop.permute.xlu0 %4331
        %4334 = vset.pattern.permute.xlu0 8
        %4335 = vperm.xlu0 %4334, %v1465
        %v4336 = vpop.permute.xlu0 %4335
        %4338 = vset.pattern.permute.xlu0 8
        %4339 = vperm.xlu0 %4338, %v1466
        %v4340 = vpop.permute.xlu0 %4339
        %4342 = vset.pattern.permute.xlu0 8
        %4343 = vperm.xlu0 %4342, %v1467
        %v4344 = vpop.permute.xlu0 %4343
        %4346 = vset.pattern.permute.xlu0 8
        %4347 = vperm.xlu0 %4346, %v1468
        %v4348 = vpop.permute.xlu0 %4347
        %4350 = vset.pattern.permute.xlu0 8
        %4351 = vperm.xlu0 %4350, %v1469
        %v4352 = vpop.permute.xlu0 %4351
        %4354 = vset.pattern.permute.xlu0 8
        %4355 = vperm.xlu0 %4354, %v1470
        %v4356 = vpop.permute.xlu0 %4355
        %4358 = vset.pattern.permute.xlu0 8
        %4359 = vperm.xlu0 %4358, %v1471
        %v4360 = vpop.permute.xlu0 %4359
        %4362 = vset.pattern.permute.xlu0 8
        %4363 = vperm.xlu0 %4362, %v1472
        %v4364 = vpop.permute.xlu0 %4363
        %4366 = vset.pattern.permute.xlu0 8
        %4367 = vperm.xlu0 %4366, %v1473
        %v4368 = vpop.permute.xlu0 %4367
        %v4370 = vmul.f32 %v2226, %v4244
        %v4371 = vmul.f32 %v2225, %v4248
        %v4372 = vmul.f32 %v2224, %v4252
        %v4373 = vmul.f32 %v2223, %v4256
        %v4374 = vmul.f32 %v2222, %v4260
        %v4375 = vmul.f32 %v2221, %v4264
        %v4376 = vmul.f32 %v2220, %v4268
        %v4377 = vmul.f32 %v2219, %v4272
        %v4378 = vmul.f32 %v2218, %v4276
        %v4379 = vmul.f32 %v2217, %v4280
        %v4380 = vmul.f32 %v2216, %v4284
        %v4381 = vmul.f32 %v2215, %v4288
        %v4382 = vmul.f32 %v2214, %v4292
        %v4383 = vmul.f32 %v2213, %v4296
        %v4384 = vmul.f32 %v2212, %v4300
        %v4385 = vmul.f32 %v2211, %v4304
        %v4386 = vmul.f32 %v2210, %v4308
        %v4387 = vmul.f32 %v2209, %v4312
        %v4388 = vmul.f32 %v2208, %v4316
        %v4389 = vmul.f32 %v2207, %v4320
        %v4390 = vmul.f32 %v2206, %v4324
        %v4391 = vmul.f32 %v2205, %v4328
        %v4392 = vmul.f32 %v2204, %v4332
        %v4393 = vmul.f32 %v2203, %v4336
        %v4394 = vmul.f32 %v2202, %v4340
        %v4395 = vmul.f32 %v2201, %v4344
        %v4396 = vmul.f32 %v2200, %v4348
        %v4397 = vmul.f32 %v2199, %v4352
        %v4398 = vmul.f32 %v2198, %v4356
        %v4399 = vmul.f32 %v2229, %v4360
        %v4400 = vmul.f32 %v2228, %v4364
        %v4401 = vmul.f32 %v2227, %v4368
        %v4402 = vpack.c.bf16 %v4371, %v4370
        %v4403 = vpack.c.bf16 %v4373, %v4372
        %v4404 = vpack.c.bf16 %v4375, %v4374
        %v4405 = vpack.c.bf16 %v4377, %v4376
        %v4406 = vpack.c.bf16 %v4379, %v4378
        %v4407 = vpack.c.bf16 %v4381, %v4380
        %v4408 = vpack.c.bf16 %v4383, %v4382
        %v4409 = vpack.c.bf16 %v4385, %v4384
        %v4410 = vpack.c.bf16 %v4387, %v4386
        %v4411 = vpack.c.bf16 %v4389, %v4388
        %v4412 = vpack.c.bf16 %v4391, %v4390
        %v4413 = vpack.c.bf16 %v4393, %v4392
        %v4414 = vpack.c.bf16 %v4395, %v4394
        %v4415 = vpack.c.bf16 %v4397, %v4396
        %v4416 = vpack.c.bf16 %v4399, %v4398
        %v4417 = vpack.c.bf16 %v4401, %v4400
        %s4418 = scalar_lea.vmem %s6, 128
        %v4419 = vld [vmem:[%s4418] sm:$0xf]
        %v4420 = vld [vmem:[%s4418 + $0x4] sm:$0xf]
        %v4421 = vld [vmem:[%s4418 + $0x8] sm:$0xf]
        %v4422 = vld [vmem:[%s4418 + $0xc] sm:$0xf]
        %v4427 = vunpack.c.l.b16 %v4419
        %v4428 = vunpack.c.l.b16 %v4420
        %v4429 = vunpack.c.l.b16 %v4421
        %v4430 = vunpack.c.l.b16 %v4422
        %v4431 = vpack.c.b16 %v4428, %v4427
        %v4432 = vpack.c.b16 %v4430, %v4429
        %v4436 = vsel %vm378, %v4402, 0
        %v4439 = vsel %vm378, %v4403, 0
        %v4442 = vsel %vm378, %v4404, 0
        %v4445 = vsel %vm378, %v4405, 0
        %v4448 = vsel %vm378, %v4406, 0
        %v4451 = vsel %vm378, %v4407, 0
        %v4454 = vsel %vm378, %v4408, 0
        %v4457 = vsel %vm378, %v4409, 0
        %v4460 = vsel %vm378, %v4410, 0
        %v4463 = vsel %vm378, %v4411, 0
        %v4466 = vsel %vm378, %v4412, 0
        %v4469 = vsel %vm378, %v4413, 0
        %v4472 = vsel %vm378, %v4414, 0
        %v4475 = vsel %vm378, %v4415, 0
        %v4478 = vsel %vm378, %v4416, 0
        %v4481 = vsel %vm378, %v4417, 0
        %4483 = vmatpush.bf16.msra.mxu0 0
        %4484 = vmatpush.bf16.msra.mxu0 0
        %4485 = vmatpush.bf16.msra.mxu0 0
        %4486 = vmatpush.bf16.msra.mxu0 0
        %4487 = vmatpush.bf16.msra.mxu0 0
        %4488 = vmatpush.bf16.msra.mxu0 0
        %4489 = vmatpush.bf16.msra.mxu0 %v4432
        %4490 = vmatpush.bf16.msra.mxu0 %v4431
        %4491 = vmatmul.bf16.gmra.mxu0 %v4436
        %v4492 = vpop.f32.mrf.mxu0
        %v4493 = vadd.f32 0.0, %v4492
        %v4494 = vpop.f32.mrf.mxu0
        %v4495 = vadd.f32 0.0, %v4494
        %4496 = vmatmul.bf16.gmra.mxu0 %v4439
        %v4497 = vpop.f32.mrf.mxu0
        %v4498 = vadd.f32 0.0, %v4497
        %v4499 = vpop.f32.mrf.mxu0
        %v4500 = vadd.f32 0.0, %v4499
        %4501 = vmatmul.bf16.gmra.mxu0 %v4442
        %v4502 = vpop.f32.mrf.mxu0
        %v4503 = vadd.f32 0.0, %v4502
        %v4504 = vpop.f32.mrf.mxu0
        %v4505 = vadd.f32 0.0, %v4504
        %4506 = vmatmul.bf16.gmra.mxu0 %v4445
        %v4507 = vpop.f32.mrf.mxu0
        %v4508 = vadd.f32 0.0, %v4507
        %v4509 = vpop.f32.mrf.mxu0
        %v4510 = vadd.f32 0.0, %v4509
        %4511 = vmatmul.bf16.gmra.mxu0 %v4448
        %v4512 = vpop.f32.mrf.mxu0
        %v4513 = vadd.f32 0.0, %v4512
        %v4514 = vpop.f32.mrf.mxu0
        %v4515 = vadd.f32 0.0, %v4514
        %4516 = vmatmul.bf16.gmra.mxu0 %v4451
        %v4517 = vpop.f32.mrf.mxu0
        %v4518 = vadd.f32 0.0, %v4517
        %v4519 = vpop.f32.mrf.mxu0
        %v4520 = vadd.f32 0.0, %v4519
        %4521 = vmatmul.bf16.gmra.mxu0 %v4454
        %v4522 = vpop.f32.mrf.mxu0
        %v4523 = vadd.f32 0.0, %v4522
        %v4524 = vpop.f32.mrf.mxu0
        %v4525 = vadd.f32 0.0, %v4524
        %4526 = vmatmul.bf16.gmra.mxu0 %v4457
        %v4527 = vpop.f32.mrf.mxu0
        %v4528 = vadd.f32 0.0, %v4527
        %v4529 = vpop.f32.mrf.mxu0
        %v4530 = vadd.f32 0.0, %v4529
        %4531 = vmatmul.bf16.gmra.mxu0 %v4460
        %v4532 = vpop.f32.mrf.mxu0
        %v4533 = vadd.f32 0.0, %v4532
        %v4534 = vpop.f32.mrf.mxu0
        %v4535 = vadd.f32 0.0, %v4534
        %4536 = vmatmul.bf16.gmra.mxu0 %v4463
        %v4537 = vpop.f32.mrf.mxu0
        %v4538 = vadd.f32 0.0, %v4537
        %v4539 = vpop.f32.mrf.mxu0
        %v4540 = vadd.f32 0.0, %v4539
        %4541 = vmatmul.bf16.gmra.mxu0 %v4466
        %v4542 = vpop.f32.mrf.mxu0
        %v4543 = vadd.f32 0.0, %v4542
        %v4544 = vpop.f32.mrf.mxu0
        %v4545 = vadd.f32 0.0, %v4544
        %4546 = vmatmul.bf16.gmra.mxu0 %v4469
        %v4547 = vpop.f32.mrf.mxu0
        %v4548 = vadd.f32 0.0, %v4547
        %v4549 = vpop.f32.mrf.mxu0
        %v4550 = vadd.f32 0.0, %v4549
        %4551 = vmatmul.bf16.gmra.mxu0 %v4472
        %v4552 = vpop.f32.mrf.mxu0
        %v4553 = vadd.f32 0.0, %v4552
        %v4554 = vpop.f32.mrf.mxu0
        %v4555 = vadd.f32 0.0, %v4554
        %4556 = vmatmul.bf16.gmra.mxu0 %v4475
        %v4557 = vpop.f32.mrf.mxu0
        %v4558 = vadd.f32 0.0, %v4557
        %v4559 = vpop.f32.mrf.mxu0
        %v4560 = vadd.f32 0.0, %v4559
        %4561 = vmatmul.bf16.gmra.mxu0 %v4478
        %v4562 = vpop.f32.mrf.mxu0
        %v4563 = vadd.f32 0.0, %v4562
        %v4564 = vpop.f32.mrf.mxu0
        %v4565 = vadd.f32 0.0, %v4564
        %4566 = vmatmul.bf16.gmra.mxu0 %v4481
        %v4567 = vpop.f32.mrf.mxu0
        %v4568 = vadd.f32 0.0, %v4567
        %v4569 = vpop.f32.mrf.mxu0
        %v4570 = vadd.f32 0.0, %v4569
        %4571 = vdwg.mxu0
        %v4572 = vadd.f32 %v4210, %v4493
        %v4573 = vadd.f32 %v4211, %v4495
        %v4574 = vadd.f32 %v4212, %v4498
        %v4575 = vadd.f32 %v4213, %v4500
        %v4576 = vadd.f32 %v4214, %v4503
        %v4577 = vadd.f32 %v4215, %v4505
        %v4578 = vadd.f32 %v4216, %v4508
        %v4579 = vadd.f32 %v4217, %v4510
        %v4580 = vadd.f32 %v4218, %v4513
        %v4581 = vadd.f32 %v4219, %v4515
        %v4582 = vadd.f32 %v4220, %v4518
        %v4583 = vadd.f32 %v4221, %v4520
        %v4584 = vadd.f32 %v4222, %v4523
        %v4585 = vadd.f32 %v4223, %v4525
        %v4586 = vadd.f32 %v4224, %v4528
        %v4587 = vadd.f32 %v4225, %v4530
        %v4588 = vadd.f32 %v4226, %v4533
        %v4589 = vadd.f32 %v4227, %v4535
        %v4590 = vadd.f32 %v4228, %v4538
        %v4591 = vadd.f32 %v4229, %v4540
        %v4592 = vadd.f32 %v4230, %v4543
        %v4593 = vadd.f32 %v4231, %v4545
        %v4594 = vadd.f32 %v4232, %v4548
        %v4595 = vadd.f32 %v4233, %v4550
        %v4596 = vadd.f32 %v4234, %v4553
        %v4597 = vadd.f32 %v4235, %v4555
        %v4598 = vadd.f32 %v4236, %v4558
        %v4599 = vadd.f32 %v4237, %v4560
        %v4600 = vadd.f32 %v4238, %v4563
        %v4601 = vadd.f32 %v4239, %v4565
        %v4602 = vadd.f32 %v4240, %v4568
        %v4603 = vadd.f32 %v4241, %v4570
        %v4604 = vld [vmem:[%s344] sm:$0x1]
        %v4605 = vld [vmem:[%s7] sm:$0x1]
        %v4607 = vperm.slane %v4605, 0
        %v4609 = vadd.f32 %v4572, %v4607
        %v4610 = vadd.f32 %v4573, %v4607
        %v4611 = vadd.f32 %v4574, %v4607
        %v4612 = vadd.f32 %v4575, %v4607
        %v4613 = vadd.f32 %v4576, %v4607
        %v4614 = vadd.f32 %v4577, %v4607
        %v4615 = vadd.f32 %v4578, %v4607
        %v4616 = vadd.f32 %v4579, %v4607
        %v4617 = vadd.f32 %v4580, %v4607
        %v4618 = vadd.f32 %v4581, %v4607
        %v4619 = vadd.f32 %v4582, %v4607
        %v4620 = vadd.f32 %v4583, %v4607
        %v4621 = vadd.f32 %v4584, %v4607
        %v4622 = vadd.f32 %v4585, %v4607
        %v4623 = vadd.f32 %v4586, %v4607
        %v4624 = vadd.f32 %v4587, %v4607
        %v4625 = vadd.f32 %v4588, %v4607
        %v4626 = vadd.f32 %v4589, %v4607
        %v4627 = vadd.f32 %v4590, %v4607
        %v4628 = vadd.f32 %v4591, %v4607
        %v4629 = vadd.f32 %v4592, %v4607
        %v4630 = vadd.f32 %v4593, %v4607
        %v4631 = vadd.f32 %v4594, %v4607
        %v4632 = vadd.f32 %v4595, %v4607
        %v4633 = vadd.f32 %v4596, %v4607
        %v4634 = vadd.f32 %v4597, %v4607
        %v4635 = vadd.f32 %v4598, %v4607
        %v4636 = vadd.f32 %v4599, %v4607
        %v4637 = vadd.f32 %v4600, %v4607
        %v4638 = vadd.f32 %v4601, %v4607
        %v4639 = vadd.f32 %v4602, %v4607
        %v4640 = vadd.f32 %v4603, %v4607
        %v4642 = vperm.slane %v4604, 0
        %v4644 = vadd.f32 %v4609, %v4642
        %v4645 = vadd.f32 %v4610, %v4642
        %v4646 = vadd.f32 %v4611, %v4642
        %v4647 = vadd.f32 %v4612, %v4642
        %v4648 = vadd.f32 %v4613, %v4642
        %v4649 = vadd.f32 %v4614, %v4642
        %v4650 = vadd.f32 %v4615, %v4642
        %v4651 = vadd.f32 %v4616, %v4642
        %v4652 = vadd.f32 %v4617, %v4642
        %v4653 = vadd.f32 %v4618, %v4642
        %v4654 = vadd.f32 %v4619, %v4642
        %v4655 = vadd.f32 %v4620, %v4642
        %v4656 = vadd.f32 %v4621, %v4642
        %v4657 = vadd.f32 %v4622, %v4642
        %v4658 = vadd.f32 %v4623, %v4642
        %v4659 = vadd.f32 %v4624, %v4642
        %v4660 = vadd.f32 %v4625, %v4642
        %v4661 = vadd.f32 %v4626, %v4642
        %v4662 = vadd.f32 %v4627, %v4642
        %v4663 = vadd.f32 %v4628, %v4642
        %v4664 = vadd.f32 %v4629, %v4642
        %v4665 = vadd.f32 %v4630, %v4642
        %v4666 = vadd.f32 %v4631, %v4642
        %v4667 = vadd.f32 %v4632, %v4642
        %v4668 = vadd.f32 %v4633, %v4642
        %v4669 = vadd.f32 %v4634, %v4642
        %v4670 = vadd.f32 %v4635, %v4642
        %v4671 = vadd.f32 %v4636, %v4642
        %v4672 = vadd.f32 %v4637, %v4642
        %v4673 = vadd.f32 %v4638, %v4642
        %v4674 = vadd.f32 %v4639, %v4642
        %v4675 = vadd.f32 %v4640, %v4642
        %v4676 = vpack.c.bf16 %v4644, %v4644
        %v4677 = vpack.c.bf16 %v4645, %v4645
        %v4678 = vpack.c.bf16 %v4646, %v4646
        %v4679 = vpack.c.bf16 %v4647, %v4647
        %v4680 = vpack.c.bf16 %v4648, %v4648
        %v4681 = vpack.c.bf16 %v4649, %v4649
        %v4682 = vpack.c.bf16 %v4650, %v4650
        %v4683 = vpack.c.bf16 %v4651, %v4651
        %v4684 = vpack.c.bf16 %v4652, %v4652
        %v4685 = vpack.c.bf16 %v4653, %v4653
        %v4686 = vpack.c.bf16 %v4654, %v4654
        %v4687 = vpack.c.bf16 %v4655, %v4655
        %v4688 = vpack.c.bf16 %v4656, %v4656
        %v4689 = vpack.c.bf16 %v4657, %v4657
        %v4690 = vpack.c.bf16 %v4658, %v4658
        %v4691 = vpack.c.bf16 %v4659, %v4659
        %v4692 = vpack.c.bf16 %v4660, %v4660
        %v4693 = vpack.c.bf16 %v4661, %v4661
        %v4694 = vpack.c.bf16 %v4662, %v4662
        %v4695 = vpack.c.bf16 %v4663, %v4663
        %v4696 = vpack.c.bf16 %v4664, %v4664
        %v4697 = vpack.c.bf16 %v4665, %v4665
        %v4698 = vpack.c.bf16 %v4666, %v4666
        %v4699 = vpack.c.bf16 %v4667, %v4667
        %v4700 = vpack.c.bf16 %v4668, %v4668
        %v4701 = vpack.c.bf16 %v4669, %v4669
        %v4702 = vpack.c.bf16 %v4670, %v4670
        %v4703 = vpack.c.bf16 %v4671, %v4671
        %v4704 = vpack.c.bf16 %v4672, %v4672
        %v4705 = vpack.c.bf16 %v4673, %v4673
        %v4706 = vpack.c.bf16 %v4674, %v4674
        %v4707 = vpack.c.bf16 %v4675, %v4675
        %4708 = vst [vmem:[%s336] sm:$0xf] %v4676
        %4709 = vst [vmem:[%s336 + $0x4] sm:$0xf] %v4677
        %4710 = vst [vmem:[%s336 + $0x8] sm:$0xf] %v4678
        %4711 = vst [vmem:[%s336 + $0xc] sm:$0xf] %v4679
        %4712 = vst [vmem:[%s336 + $0x10] sm:$0xf] %v4680
        %4713 = vst [vmem:[%s336 + $0x14] sm:$0xf] %v4681
        %4714 = vst [vmem:[%s336 + $0x18] sm:$0xf] %v4682
        %4715 = vst [vmem:[%s336 + $0x1c] sm:$0xf] %v4683
        %4716 = vst [vmem:[%s336 + $0x20] sm:$0xf] %v4684
        %4717 = vst [vmem:[%s336 + $0x24] sm:$0xf] %v4685
        %4718 = vst [vmem:[%s336 + $0x28] sm:$0xf] %v4686
        %4719 = vst [vmem:[%s336 + $0x2c] sm:$0xf] %v4687
        %4720 = vst [vmem:[%s336 + $0x30] sm:$0xf] %v4688
        %4721 = vst [vmem:[%s336 + $0x34] sm:$0xf] %v4689
        %4722 = vst [vmem:[%s336 + $0x38] sm:$0xf] %v4690
        %4723 = vst [vmem:[%s336 + $0x3c] sm:$0xf] %v4691
        %4724 = vst [vmem:[%s336 + $0x40] sm:$0xf] %v4692
        %4725 = vst [vmem:[%s336 + $0x44] sm:$0xf] %v4693
        %4726 = vst [vmem:[%s336 + $0x48] sm:$0xf] %v4694
        %4727 = vst [vmem:[%s336 + $0x4c] sm:$0xf] %v4695
        %4728 = vst [vmem:[%s336 + $0x50] sm:$0xf] %v4696
        %4729 = vst [vmem:[%s336 + $0x54] sm:$0xf] %v4697
        %4730 = vst [vmem:[%s336 + $0x58] sm:$0xf] %v4698
        %4731 = vst [vmem:[%s336 + $0x5c] sm:$0xf] %v4699
        %4732 = vst [vmem:[%s336 + $0x60] sm:$0xf] %v4700
        %4733 = vst [vmem:[%s336 + $0x64] sm:$0xf] %v4701
        %4734 = vst [vmem:[%s336 + $0x68] sm:$0xf] %v4702
        %4735 = vst [vmem:[%s336 + $0x6c] sm:$0xf] %v4703
        %4736 = vst [vmem:[%s336 + $0x70] sm:$0xf] %v4704
        %4737 = vst [vmem:[%s336 + $0x74] sm:$0xf] %v4705
        %4738 = vst [vmem:[%s336 + $0x78] sm:$0xf] %v4706
        %4739 = vst [vmem:[%s336 + $0x7c] sm:$0xf] %v4707
        %s4740 = sand.u32 %s230, 1
        %s4741 = scalar_lea.sflag [#allocation3], %s4740
        %s4742 = sand.u32 %s230, 1
        %s4743 = smul.addr %s4742, 128
        %s4744 = scalar_lea.vmem [#allocation2], %s4743
        // Predicated region
        $region57: #{tpu_custom_call.1} parent=55 // pred_check
          %p4745 = pneg %p240
        $region58: #{tpu_custom_call.1} parent=55 // pred_check_branch
          %4747 = sbr.rel (%p4745) target = $region60
        $region59: #{tpu_custom_call.1} parent=55 // pred_region
          %4749 = vsyncadd %s4741, 0
          %s4750 = smul.addr %s23, 32
          %s4751 = smul.addr %s4750, 4
          %s4752 = scalar_lea.hbm %s9, %s4751
          %s4753 = sshll.u32 %s4744, 4
          %s4754 = int_to_ptr.vmem [resolvable:$true] %s4753
          %s4755 = sshll.u32 %s4752, 4
          %s4756 = int_to_ptr.hbm [resolvable:$true] %s4755
          %4761 = dma.vmem_to_hbm [thread:$0]  %s4754, 2048, %s4756, %s4741, 64, 64, 4
        $region60: #{tpu_custom_call.1} parent=55 // pred_fallthru
          _
      $region56: #{tpu_custom_call.1} parent=5 // pred_fallthru
        _
      %p4762 = scmp.le.s32.totalorder 2, %s18
      // Predicated region
      $region61: #{tpu_custom_call.1} parent=5 // pred_check
        %p4763 = pneg %p4762
      $region62: #{tpu_custom_call.1} parent=5 // pred_check_branch
        %4765 = sbr.rel (%p4763) target = $region64
      $region63: #{tpu_custom_call.1} parent=5 // pred_region
        %s4766 = ssub.s32 %s18, 2
        // Predicated region
        $region65: #{tpu_custom_call.1} parent=63 // pred_check
          %p4767 = pneg %p246
        $region66: #{tpu_custom_call.1} parent=63 // pred_check_branch
          %4769 = sbr.rel (%p4767) target = $region68
        $region67: #{tpu_custom_call.1} parent=63 // pred_region
          %s4770 = sand.u32 %s231, 1
          %s4771 = scalar_lea.sflag [#allocation3], %s4770
          %s4772 = sand.u32 %s231, 1
          %s4773 = smul.addr %s4772, 128
          %s4774 = scalar_lea.vmem [#allocation2], %s4773
          %4776 = dma.done %s4771, 2048
        $region68: #{tpu_custom_call.1} parent=63 // pred_fallthru
          _
      $region64: #{tpu_custom_call.1} parent=5 // pred_fallthru
        _
    $region6: #{tpu_custom_call.1} parent=1 // loop_footer
      %s22 = sadd.s32 1, %s18
    $region7: #{tpu_custom_call.1} parent=1 // loop_footer_branch
      %17 = sbr.rel target = $region3
    $region8: #{tpu_custom_call.1} parent=1 // loop_exit
      _
    %4777 = vsyncpa [#allocation3], 1
    %s4778 = scalar_lea.sflag [#allocation3], 1
    %4779 = vsyncpa %s4778, 1

</llo_original>
